<compile_context>
chip_gen: v5e
topology: v5e:2x2
jax: 0.10.0
libtpu: 0.0.40
codegen_flags: <defaults>
</compile_context>

<pallas_src>
import functools

import jax
import jax.numpy as jnp
import numpy as np
from jax.experimental import pallas as pl
from jax.experimental.pallas import tpu as pltpu


_PARALLEL = pltpu.CompilerParams(dimension_semantics=("parallel",))


# ----------------------------- Pallas kernels -----------------------------

def _stacked_taps(x, mask_ref, H, W):
    """Build the (9*Cin, HW) bf16 stacked-tap operand for a 3x3 SAME conv.

    x is a bf16 (Cin, HW) tile.  The pixel axis is zero-padded by (W+1) on both
    sides in VMEM so every (dh, dw) tap becomes a static lane-window slice;
    pixels whose w+dw falls outside the row are zeroed with a per-dw mask
    (h out-of-bounds lands in the zero pad).  Tap order matches _stacked_weight.
    """
    Cin, HW = x.shape
    m_l = mask_ref[0:1, :].astype(x.dtype)   # valid for dw = -1  (w >= 1)
    m_r = mask_ref[2:3, :].astype(x.dtype)   # valid for dw = +1  (w <= W-2)
    zpad = jnp.zeros((Cin, W + 1), x.dtype)
    xp = jnp.concatenate([zpad, x, zpad], axis=1)          # (Cin, HW + 2W + 2)
    taps = []
    for dh in (-1, 0, 1):
        for dw in (-1, 0, 1):
            start = dh * W + dw + (W + 1)
            xs = xp[:, start:start + HW]
            if dw == -1:
                xs = xs * m_l
            elif dw == 1:
                xs = xs * m_r
            taps.append(xs)
    return jnp.concatenate(taps, axis=0)                   # (9*Cin, HW) bf16


def _conv3x3_dual_kernel(x_ref, w_ref, mask_ref, scale_ref, shift_ref,
                         oa_ref, oc_ref, *, H, W):
    # Fused conv5a / conv5c: one read of the input tile, one stacked matmul
    # (wa and wc stacked along M), folded-BN scale/shift + ReLU in f32.
    Cout, HW = oa_ref.shape
    taps = _stacked_taps(x_ref[...], mask_ref, H, W)
    acc = jnp.dot(w_ref[...], taps, preferred_element_type=jnp.float32)  # (2*Cout, HW)
    y = jnp.maximum(acc * scale_ref[...] + shift_ref[...], 0.0)
    oa_ref[...] = y[:Cout].astype(oa_ref.dtype)
    oc_ref[...] = y[Cout:].astype(oc_ref.dtype)


def _conv3x3_kernel(x_ref, w_ref, mask_ref, scale_ref, shift_ref, o_ref, *, H, W):
    taps = _stacked_taps(x_ref[...], mask_ref, H, W)
    acc = jnp.dot(w_ref[...], taps, preferred_element_type=jnp.float32)
    o_ref[...] = jnp.maximum(acc * scale_ref[...] + shift_ref[...], 0.0).astype(o_ref.dtype)


def _pam_kernel(x_ref, wqkv_ref, bqkv_ref, gamma_ref, o_ref, *, cq_pad):
    # Position attention for one batch element, channels-first (C, HW).
    # q/k/v projections fused into one matmul; q/k row blocks are padded to
    # 8-row sublane boundaries (pad rows are exactly zero -> contraction exact).
    x = x_ref[...]                                                      # bf16 (C, HW)
    qkv = jnp.dot(wqkv_ref[...], x, preferred_element_type=jnp.float32) + bqkv_ref[...]
    qkv = qkv.astype(jnp.bfloat16)
    q = qkv[0:cq_pad, :]
    k = qkv[cq_pad:2 * cq_pad, :]
    v = qkv[2 * cq_pad:, :]
    # e[j, i] = <k_j, q_i> == torch energy[i, j]; softmax over j (axis 0).
    # TODO(synk): flash-style online softmax over key tiles for HW >= 4K.
    e = jax.lax.dot_general(k, q, (((0,), (0,)), ((), ())),
                            preferred_element_type=jnp.float32)         # (HW, HW)
    e = e - jnp.max(e, axis=0, keepdims=True)
    p = jnp.exp(e)
    denom = jnp.sum(p, axis=0, keepdims=True)                           # (1, HW)
    out = jnp.dot(v, p.astype(jnp.bfloat16), preferred_element_type=jnp.float32)
    # deferred softmax normalization (EUP reciprocal instead of HW*HW divides)
    out = out * pl.reciprocal(denom, approx=True)
    o_ref[...] = (gamma_ref[0] * out + x.astype(jnp.float32)).astype(o_ref.dtype)


def _cam_kernel(x_ref, gamma_ref, o_ref):
    # Channel attention for one batch element, channels-first (C, HW).
    x = x_ref[...]                                                      # bf16 (C, HW)
    energy = jax.lax.dot_general(x, x, (((1,), (1,)), ((), ())),
                                 preferred_element_type=jnp.float32)    # (C, C)
    en = jnp.max(energy, axis=-1, keepdims=True) - energy
    en = en - jnp.max(en, axis=-1, keepdims=True)
    p = jnp.exp(en)
    denom = jnp.sum(p, axis=-1, keepdims=True)                          # (C, 1)
    out = jnp.dot(p.astype(jnp.bfloat16), x, preferred_element_type=jnp.float32)
    out = out * pl.reciprocal(denom, approx=True)
    o_ref[...] = (gamma_ref[0] * out + x.astype(jnp.float32)).astype(o_ref.dtype)


def _tail_kernel(sa_ref, sc_ref, w68_ref, w78_ref, b6_ref, b7_ref, b8_ref,
                 o6_ref, o7_ref, o8_ref):
    # Fused conv6 / conv7 / conv8 (+ feat_sum): sa_conv / sc_conv are read once;
    # w6|w8 and w7|w8 are stacked along M so only two matmuls are issued.
    Cout = o6_ref.shape[0]
    sa = sa_ref[...]                                                    # bf16 (C, HW)
    sc = sc_ref[...]
    r1 = jnp.dot(w68_ref[...], sa, preferred_element_type=jnp.float32)  # (2*Cout, HW)
    r2 = jnp.dot(w78_ref[...], sc, preferred_element_type=jnp.float32)
    o6_ref[...] = r1[:Cout] + b6_ref[...]
    o7_ref[...] = r2[:Cout] + b7_ref[...]
    o8_ref[...] = r1[Cout:] + r2[Cout:] + b8_ref[...]


# ----------------------------- wrappers (glue) -----------------------------

def _dw_masks(H, W):
    # row 0: dw=-1 valid, row 1: dw=0 (unused, all ones), row 2: dw=+1 valid
    col = jnp.arange(H * W, dtype=jnp.int32) % W
    return jnp.stack([(col >= 1).astype(jnp.float32),
                      jnp.ones((H * W,), jnp.float32),
                      (col <= W - 2).astype(jnp.float32)], axis=0)      # (3, HW)


def _stacked_weight(w):
    # (Cout, Cin, 3, 3) -> (Cout, 9*Cin) with column block t = kh*3+kw, bf16.
    Cout, Cin = w.shape[0], w.shape[1]
    return jnp.transpose(w, (0, 2, 3, 1)).reshape(Cout, 9 * Cin).astype(jnp.bfloat16)


def _full_spec(shape):
    return pl.BlockSpec(shape, lambda b: (0,) * len(shape))


def conv3x3_dual_bn_relu(x, wa, scale_a, shift_a, wc, scale_c, shift_c, H, W):
    """Two fused 3x3 convs (padding=1, no bias) + folded BN + ReLU on one input."""
    B, Cin, HW = x.shape
    Cout = wa.shape[0]
    w = jnp.concatenate([_stacked_weight(wa), _stacked_weight(wc)], axis=0)  # (2Cout, 9Cin)
    scale = jnp.concatenate([scale_a, scale_c]).reshape(2 * Cout, 1)
    shift = jnp.concatenate([shift_a, shift_c]).reshape(2 * Cout, 1)
    mask = _dw_masks(H, W)
    kern = functools.partial(_conv3x3_dual_kernel, H=H, W=W)
    # TODO(synk): add an HW tile axis (with +/-W halo) + vmem_limit_bytes at production sizes.
    return pl.pallas_call(
        kern,
        out_shape=(jax.ShapeDtypeStruct((B, Cout, HW), jnp.bfloat16),
                   jax.ShapeDtypeStruct((B, Cout, HW), jnp.bfloat16)),
        grid=(B,),
        in_specs=[pl.BlockSpec((None, Cin, HW), lambda b: (b, 0, 0)),
                  _full_spec((2 * Cout, 9 * Cin)), _full_spec((3, HW)),
                  _full_spec((2 * Cout, 1)), _full_spec((2 * Cout, 1))],
        out_specs=(pl.BlockSpec((None, Cout, HW), lambda b: (b, 0, 0)),
                   pl.BlockSpec((None, Cout, HW), lambda b: (b, 0, 0))),
        compiler_params=_PARALLEL,
    )(x.astype(jnp.bfloat16), w, mask, scale, shift)


def conv3x3_bn_relu(x, w, scale, shift, H, W):
    B, Cin, HW = x.shape
    Cout = w.shape[0]
    w9 = _stacked_weight(w)
    mask = _dw_masks(H, W)
    kern = functools.partial(_conv3x3_kernel, H=H, W=W)
    return pl.pallas_call(
        kern,
        out_shape=jax.ShapeDtypeStruct((B, Cout, HW), jnp.bfloat16),
        grid=(B,),
        in_specs=[pl.BlockSpec((None, Cin, HW), lambda b: (b, 0, 0)),
                  _full_spec((Cout, 9 * Cin)), _full_spec((3, HW)),
                  _full_spec((Cout, 1)), _full_spec((Cout, 1))],
        out_specs=pl.BlockSpec((None, Cout, HW), lambda b: (b, 0, 0)),
        compiler_params=_PARALLEL,
    )(x.astype(jnp.bfloat16), w9, mask, scale.reshape(Cout, 1), shift.reshape(Cout, 1))


def pam_module(x, wq, bq, wk, bk, wv, bv, gamma):
    B, C, HW = x.shape
    Cq = wq.shape[0]
    cq_pad = ((Cq + 7) // 8) * 8                       # q/k blocks on sublane-tile boundaries
    zw = jnp.zeros((cq_pad - Cq, C), jnp.float32)
    zb = jnp.zeros((cq_pad - Cq,), jnp.float32)
    wqkv = jnp.concatenate([wq[:, :, 0, 0], zw, wk[:, :, 0, 0], zw, wv[:, :, 0, 0]],
                           axis=0).astype(jnp.bfloat16)
    bqkv = jnp.concatenate([bq, zb, bk, zb, bv]).reshape(-1, 1)
    n_rows = 2 * cq_pad + C
    return pl.pallas_call(
        functools.partial(_pam_kernel, cq_pad=cq_pad),
        out_shape=jax.ShapeDtypeStruct((B, C, HW), jnp.bfloat16),
        grid=(B,),
        in_specs=[pl.BlockSpec((None, C, HW), lambda b: (b, 0, 0)),
                  _full_spec((n_rows, C)), _full_spec((n_rows, 1)),
                  pl.BlockSpec((1,), lambda b: (0,),
                               memory_space=pltpu.MemorySpace.SMEM)],
        out_specs=pl.BlockSpec((None, C, HW), lambda b: (b, 0, 0)),
        compiler_params=_PARALLEL,
    )(x, wqkv, bqkv, gamma)


def cam_module(x, gamma):
    B, C, HW = x.shape
    return pl.pallas_call(
        _cam_kernel,
        out_shape=jax.ShapeDtypeStruct((B, C, HW), jnp.bfloat16),
        grid=(B,),
        in_specs=[pl.BlockSpec((None, C, HW), lambda b: (b, 0, 0)),
                  pl.BlockSpec((1,), lambda b: (0,),
                               memory_space=pltpu.MemorySpace.SMEM)],
        out_specs=pl.BlockSpec((None, C, HW), lambda b: (b, 0, 0)),
        compiler_params=_PARALLEL,
    )(x, gamma)


def tail_1x1_fused(sa_conv, sc_conv, w6, b6, w7, b7, w8, b8):
    B, C, HW = sa_conv.shape
    Cout = w6.shape[0]
    w8f = w8[:, :, 0, 0]
    w68 = jnp.concatenate([w6[:, :, 0, 0], w8f], axis=0).astype(jnp.bfloat16)
    w78 = jnp.concatenate([w7[:, :, 0, 0], w8f], axis=0).astype(jnp.bfloat16)
    act_spec = pl.BlockSpec((None, C, HW), lambda b: (b, 0, 0))
    out_spec = pl.BlockSpec((None, Cout, HW), lambda b: (b, 0, 0))
    outs = pl.pallas_call(
        _tail_kernel,
        out_shape=tuple(jax.ShapeDtypeStruct((B, Cout, HW), jnp.float32)
                        for _ in range(3)),
        grid=(B,),
        in_specs=[act_spec, act_spec,
                  _full_spec((2 * Cout, C)), _full_spec((2 * Cout, C)),
                  _full_spec((Cout, 1)), _full_spec((Cout, 1)), _full_spec((Cout, 1))],
        out_specs=(out_spec, out_spec, out_spec),
        compiler_params=_PARALLEL,
    )(sa_conv, sc_conv, w68, w78,
      b6.reshape(Cout, 1), b7.reshape(Cout, 1), b8.reshape(Cout, 1))
    return outs  # (sa_output, sc_output, sasc_output)


# ----------------------------- DANetHead forward -----------------------------

def danet_head_forward(x_nchw, p):
    B, Cin, H, W = x_nchw.shape
    HW = H * W
    x = x_nchw.reshape(B, Cin, HW).astype(jnp.bfloat16)   # channels-first, flat pixels

    # shared first stage: conv5a + conv5c from one read of x (one stacked matmul)
    feat1, feat2 = conv3x3_dual_bn_relu(
        x, p['conv5a_w'], *p['bn5a'], p['conv5c_w'], *p['bn5c'], H=H, W=W)

    # position-attention branch
    sa_feat = pam_module(feat1, p['pam_wq'], p['pam_bq'], p['pam_wk'],
                         p['pam_bk'], p['pam_wv'], p['pam_bv'], p['pam_gamma'])
    sa_conv = conv3x3_bn_relu(sa_feat, p['conv51_w'], *p['bn51'], H=H, W=W)

    # channel-attention branch
    sc_feat = cam_module(feat2, p['cam_gamma'])
    sc_conv = conv3x3_bn_relu(sc_feat, p['conv52_w'], *p['bn52'], H=H, W=W)

    # fused 1x1 tail (Dropout2d is identity in eval mode)
    sa_output, sc_output, sasc_output = tail_1x1_fused(
        sa_conv, sc_conv, p['conv6_w'], p['conv6_b'],
        p['conv7_w'], p['conv7_b'], p['conv8_w'], p['conv8_b'])

    to4 = lambda t: t.reshape(B, -1, H, W)                # already NCHW order
    return to4(sasc_output), to4(sa_output), to4(sc_output)


# ----------------------------- pure-JAX reference -----------------------------

def _ref_conv3x3_bn_relu(x, w, scale, shift):
    y = jax.lax.conv_general_dilated(
        x, w, (1, 1), 'SAME', dimension_numbers=('NCHW', 'OIHW', 'NCHW'))
    return jnp.maximum(y * scale[None, :, None, None] + shift[None, :, None, None], 0.0)


def _ref_conv1x1(x, w, b):
    return jnp.einsum('oc,bchw->bohw', w[:, :, 0, 0], x) + b[None, :, None, None]


def _ref_pam(x, wq, bq, wk, bk, wv, bv, gamma):
    B, C, H, W = x.shape
    xf = x.reshape(B, C, H * W)
    q = jnp.einsum('oc,bcp->bop', wq[:, :, 0, 0], xf) + bq[None, :, None]
    k = jnp.einsum('oc,bcp->bop', wk[:, :, 0, 0], xf) + bk[None, :, None]
    v = jnp.einsum('oc,bcp->bop', wv[:, :, 0, 0], xf) + bv[None, :, None]
    energy = jnp.einsum('bci,bcj->bij', q, k)
    attn = jax.nn.softmax(energy, axis=-1)
    out = jnp.einsum('bcj,bij->bci', v, attn)
    return (gamma[0] * out + xf).reshape(B, C, H, W)


def _ref_cam(x, gamma):
    B, C, H, W = x.shape
    xf = x.reshape(B, C, H * W)
    energy = jnp.einsum('bcp,bdp->bcd', xf, xf)
    energy_new = jnp.max(energy, axis=-1, keepdims=True) - energy
    attn = jax.nn.softmax(energy_new, axis=-1)
    out = jnp.einsum('bcd,bdp->bcp', attn, xf)
    return (gamma[0] * out + xf).reshape(B, C, H, W)


def danet_head_reference(x, p):
    feat1 = _ref_conv3x3_bn_relu(x, p['conv5a_w'], *p['bn5a'])
    sa_feat = _ref_pam(feat1, p['pam_wq'], p['pam_bq'], p['pam_wk'],
                       p['pam_bk'], p['pam_wv'], p['pam_bv'], p['pam_gamma'])
    sa_conv = _ref_conv3x3_bn_relu(sa_feat, p['conv51_w'], *p['bn51'])
    sa_output = _ref_conv1x1(sa_conv, p['conv6_w'], p['conv6_b'])
    feat2 = _ref_conv3x3_bn_relu(x, p['conv5c_w'], *p['bn5c'])
    sc_feat = _ref_cam(feat2, p['cam_gamma'])
    sc_conv = _ref_conv3x3_bn_relu(sc_feat, p['conv52_w'], *p['bn52'])
    sc_output = _ref_conv1x1(sc_conv, p['conv7_w'], p['conv7_b'])
    feat_sum = sa_conv + sc_conv
    sasc_output = _ref_conv1x1(feat_sum, p['conv8_w'], p['conv8_b'])
    return sasc_output, sa_output, sc_output


# ----------------------------- parameter init -----------------------------

def init_params(key, in_channels, out_channels):
    inter = in_channels // 4
    q_dim = inter // 8
    ks = iter(jax.random.split(key, 40))

    def nrm(shape, s=0.05):
        return s * jax.random.normal(next(ks), shape, dtype=jnp.float32)

    def bn(c):
        w = 1.0 + nrm((c,), 0.1)
        b = nrm((c,), 0.05)
        mean = nrm((c,), 0.1)
        var = 1.0 + 0.1 * jax.random.uniform(next(ks), (c,), dtype=jnp.float32)
        eps = 1e-5
        scale = w / jnp.sqrt(var + eps)
        shift = b - mean * scale
        return scale, shift

    p = {}
    p['conv5a_w'] = nrm((inter, in_channels, 3, 3)); p['bn5a'] = bn(inter)
    p['conv5c_w'] = nrm((inter, in_channels, 3, 3)); p['bn5c'] = bn(inter)
    # PAM params (torch inits gamma to 0; nonzero here to exercise the path)
    p['pam_wq'] = nrm((q_dim, inter, 1, 1)); p['pam_bq'] = nrm((q_dim,))
    p['pam_wk'] = nrm((q_dim, inter, 1, 1)); p['pam_bk'] = nrm((q_dim,))
    p['pam_wv'] = nrm((inter, inter, 1, 1)); p['pam_bv'] = nrm((inter,))
    p['pam_gamma'] = jnp.array([0.3], dtype=jnp.float32)
    p['cam_gamma'] = jnp.array([0.2], dtype=jnp.float32)
    p['conv51_w'] = nrm((inter, inter, 3, 3)); p['bn51'] = bn(inter)
    p['conv52_w'] = nrm((inter, inter, 3, 3)); p['bn52'] = bn(inter)
    p['conv6_w'] = nrm((out_channels, inter, 1, 1)); p['conv6_b'] = nrm((out_channels,))
    p['conv7_w'] = nrm((out_channels, inter, 1, 1)); p['conv7_b'] = nrm((out_channels,))
    p['conv8_w'] = nrm((out_channels, inter, 1, 1)); p['conv8_b'] = nrm((out_channels,))
    return p


# ----------------------------- main -----------------------------

if __name__ == "__main__":
    B, Cin, H, W = 2, 64, 16, 16      # inter_channels = 16, PAM q/k dim = 2
    Cout = 16
    key = jax.random.PRNGKey(0)
    kx, kp = jax.random.split(key)
    x = 0.5 * jax.random.normal(kx, (B, Cin, H, W), dtype=jnp.float32)
    params = init_params(kp, Cin, Cout)

    fwd = jax.jit(danet_head_forward)
    outs = jax.block_until_ready(fwd(x, params))
    refs = jax.block_until_ready(danet_head_reference(x, params))

    assert len(outs) == 3
    for o, r in zip(outs, refs):
        assert o.shape == (B, Cout, H, W)
        assert bool(jnp.all(jnp.isfinite(o)))
        np.testing.assert_allclose(np.asarray(o), np.asarray(r),
                                   rtol=3e-2, atol=3e-2)
    print("KERNEL_OK")
</pallas_src>

<mosaic_0001>
module attributes {stable_mosaic.version = 11 : i64} {
  func.func @_conv3x3_dual_kernel(%arg0: i32, %arg1: memref<1x64x256xbf16, #tpu.memory_space<vmem>>, %arg2: memref<32x576xbf16, #tpu.memory_space<vmem>>, %arg3: memref<3x256xf32, #tpu.memory_space<vmem>>, %arg4: memref<32x1xf32, #tpu.memory_space<vmem>>, %arg5: memref<32x1xf32, #tpu.memory_space<vmem>>, %arg6: memref<1x16x256xbf16, #tpu.memory_space<vmem>>, %arg7: memref<1x16x256xbf16, #tpu.memory_space<vmem>>) attributes {dimension_semantics = [#tpu.dimension_semantics<parallel>], iteration_bounds = array<i64: 2>, scalar_prefetch = 0 : i64, scratch_operands = 0 : i64, tpu.core_type = #tpu.core_type<tc>, window_params = [{transform_indices = @transform_0, window_bounds = array<i64: 1, 64, 256>}, {pipeline_mode = #tpu.pipeline_mode<synchronous>, transform_indices = @transform_1, window_bounds = array<i64: 32, 576>}, {pipeline_mode = #tpu.pipeline_mode<synchronous>, transform_indices = @transform_2, window_bounds = array<i64: 3, 256>}, {pipeline_mode = #tpu.pipeline_mode<synchronous>, transform_indices = @transform_3, window_bounds = array<i64: 32, 1>}, {pipeline_mode = #tpu.pipeline_mode<synchronous>, transform_indices = @transform_4, window_bounds = array<i64: 32, 1>}, {transform_indices = @transform_5, window_bounds = array<i64: 1, 16, 256>}, {transform_indices = @transform_6, window_bounds = array<i64: 1, 16, 256>}]} {
    %c0 = arith.constant 0 : index
    %c0_0 = arith.constant 0 : index
    %c0_1 = arith.constant 0 : index
    %0 = vector.load %arg1[%c0, %c0_0, %c0_1] : memref<1x64x256xbf16, #tpu.memory_space<vmem>>, vector<1x64x256xbf16>
    %1 = vector.shape_cast %0 : vector<1x64x256xbf16> to vector<64x256xbf16>
    %c0_2 = arith.constant 0 : index
    %c0_3 = arith.constant 0 : index
    %2 = vector.load %arg3[%c0_2, %c0_3] : memref<3x256xf32, #tpu.memory_space<vmem>>, vector<1x256xf32>
    %3 = arith.truncf %2 : vector<1x256xf32> to vector<1x256xbf16>
    %c2 = arith.constant 2 : index
    %c0_4 = arith.constant 0 : index
    %4 = vector.load %arg3[%c2, %c0_4] : memref<3x256xf32, #tpu.memory_space<vmem>>, vector<1x256xf32>
    %5 = arith.truncf %4 : vector<1x256xf32> to vector<1x256xbf16>
    %cst = arith.constant 0.000000e+00 : bf16
    %6 = vector.broadcast %cst : bf16 to vector<64x17xbf16>
    %7 = tpu.concatenate %6, %1, %6 in 1 : vector<64x17xbf16>, vector<64x256xbf16>, vector<64x17xbf16> -> vector<64x290xbf16>
    %8 = vector.extract_strided_slice %7 {offsets = [0, 0], sizes = [64, 256], strides = [1, 1]} : vector<64x290xbf16> to vector<64x256xbf16>
    %9 = vector.broadcast %3 : vector<1x256xbf16> to vector<64x256xbf16>
    %10 = arith.mulf %8, %9 : vector<64x256xbf16>
    %11 = vector.extract_strided_slice %7 {offsets = [0, 1], sizes = [64, 256], strides = [1, 1]} : vector<64x290xbf16> to vector<64x256xbf16>
    %12 = vector.extract_strided_slice %7 {offsets = [0, 2], sizes = [64, 256], strides = [1, 1]} : vector<64x290xbf16> to vector<64x256xbf16>
    %13 = vector.broadcast %5 : vector<1x256xbf16> to vector<64x256xbf16>
    %14 = arith.mulf %12, %13 : vector<64x256xbf16>
    %15 = vector.extract_strided_slice %7 {offsets = [0, 16], sizes = [64, 256], strides = [1, 1]} : vector<64x290xbf16> to vector<64x256xbf16>
    %16 = vector.broadcast %3 : vector<1x256xbf16> to vector<64x256xbf16>
    %17 = arith.mulf %15, %16 : vector<64x256xbf16>
    %18 = vector.extract_strided_slice %7 {offsets = [0, 17], sizes = [64, 256], strides = [1, 1]} : vector<64x290xbf16> to vector<64x256xbf16>
    %19 = vector.extract_strided_slice %7 {offsets = [0, 18], sizes = [64, 256], strides = [1, 1]} : vector<64x290xbf16> to vector<64x256xbf16>
    %20 = vector.broadcast %5 : vector<1x256xbf16> to vector<64x256xbf16>
    %21 = arith.mulf %19, %20 : vector<64x256xbf16>
    %22 = vector.extract_strided_slice %7 {offsets = [0, 32], sizes = [64, 256], strides = [1, 1]} : vector<64x290xbf16> to vector<64x256xbf16>
    %23 = vector.broadcast %3 : vector<1x256xbf16> to vector<64x256xbf16>
    %24 = arith.mulf %22, %23 : vector<64x256xbf16>
    %25 = vector.extract_strided_slice %7 {offsets = [0, 33], sizes = [64, 256], strides = [1, 1]} : vector<64x290xbf16> to vector<64x256xbf16>
    %26 = vector.extract_strided_slice %7 {offsets = [0, 34], sizes = [64, 256], strides = [1, 1]} : vector<64x290xbf16> to vector<64x256xbf16>
    %27 = vector.broadcast %5 : vector<1x256xbf16> to vector<64x256xbf16>
    %28 = arith.mulf %26, %27 : vector<64x256xbf16>
    %29 = tpu.concatenate %10, %11, %14, %17, %18, %21, %24, %25, %28 in 0 : vector<64x256xbf16>, vector<64x256xbf16>, vector<64x256xbf16>, vector<64x256xbf16>, vector<64x256xbf16>, vector<64x256xbf16>, vector<64x256xbf16>, vector<64x256xbf16>, vector<64x256xbf16> -> vector<576x256xbf16>
    %c0_5 = arith.constant 0 : index
    %c0_6 = arith.constant 0 : index
    %30 = vector.load %arg2[%c0_5, %c0_6] : memref<32x576xbf16, #tpu.memory_space<vmem>>, vector<32x576xbf16>
    %cst_7 = arith.constant dense<0.000000e+00> : vector<32x256xf32>
    %31 = tpu.matmul %30, %29, %cst_7 {dimension_numbers = #tpu.dot_dimension_numbers<[1], [0], [0], [1], [0, 0, 1, 1], [], []>} : vector<32x576xbf16>, vector<576x256xbf16>, vector<32x256xf32> -> vector<32x256xf32>
    %c0_8 = arith.constant 0 : index
    %c0_9 = arith.constant 0 : index
    %32 = vector.load %arg4[%c0_8, %c0_9] : memref<32x1xf32, #tpu.memory_space<vmem>>, vector<32x1xf32>
    %33 = vector.broadcast %32 : vector<32x1xf32> to vector<32x256xf32>
    %34 = arith.mulf %31, %33 : vector<32x256xf32>
    %c0_10 = arith.constant 0 : index
    %c0_11 = arith.constant 0 : index
    %35 = vector.load %arg5[%c0_10, %c0_11] : memref<32x1xf32, #tpu.memory_space<vmem>>, vector<32x1xf32>
    %36 = vector.broadcast %35 : vector<32x1xf32> to vector<32x256xf32>
    %37 = arith.addf %34, %36 : vector<32x256xf32>
    %cst_12 = arith.constant 0.000000e+00 : f32
    %38 = vector.broadcast %cst_12 : f32 to vector<32x256xf32>
    %39 = arith.maximumf %37, %38 : vector<32x256xf32>
    %40 = vector.extract_strided_slice %39 {offsets = [0, 0], sizes = [16, 256], strides = [1, 1]} : vector<32x256xf32> to vector<16x256xf32>
    %41 = arith.truncf %40 : vector<16x256xf32> to vector<16x256xbf16>
    %c0_13 = arith.constant 0 : index
    %c0_14 = arith.constant 0 : index
    %c0_15 = arith.constant 0 : index
    %42 = vector.load %arg6[%c0_13, %c0_14, %c0_15] : memref<1x16x256xbf16, #tpu.memory_space<vmem>>, vector<1x16x256xbf16>
    %43 = vector.shape_cast %42 : vector<1x16x256xbf16> to vector<16x256xbf16>
    %44 = vector.shape_cast %41 : vector<16x256xbf16> to vector<1x16x256xbf16>
    tpu.vector_store %arg6[%c0_13, %c0_14, %c0_15], %44 {strides = array<i32>} : memref<1x16x256xbf16, #tpu.memory_space<vmem>>, vector<1x16x256xbf16>,
    %45 = vector.extract_strided_slice %39 {offsets = [16, 0], sizes = [16, 256], strides = [1, 1]} : vector<32x256xf32> to vector<16x256xf32>
    %46 = arith.truncf %45 : vector<16x256xf32> to vector<16x256xbf16>
    %c0_16 = arith.constant 0 : index
    %c0_17 = arith.constant 0 : index
    %c0_18 = arith.constant 0 : index
    %47 = vector.load %arg7[%c0_16, %c0_17, %c0_18] : memref<1x16x256xbf16, #tpu.memory_space<vmem>>, vector<1x16x256xbf16>
    %48 = vector.shape_cast %47 : vector<1x16x256xbf16> to vector<16x256xbf16>
    %49 = vector.shape_cast %46 : vector<16x256xbf16> to vector<1x16x256xbf16>
    tpu.vector_store %arg7[%c0_16, %c0_17, %c0_18], %49 {strides = array<i32>} : memref<1x16x256xbf16, #tpu.memory_space<vmem>>, vector<1x16x256xbf16>,
    return
  }
  func.func @transform_0(%arg0: i32) -> (i32, i32, i32) {
    %c0_i32 = arith.constant 0 : i32
    %c0_i32_0 = arith.constant 0 : i32
    %c0_i32_1 = arith.constant 0 : i32
    return %arg0, %c0_i32, %c0_i32_0 : i32, i32, i32
  }
  func.func @transform_1(%arg0: i32) -> (i32, i32) {
    %c0_i32 = arith.constant 0 : i32
    %c0_i32_0 = arith.constant 0 : i32
    %c0_i32_1 = arith.constant 0 : i32
    return %c0_i32, %c0_i32_0 : i32, i32
  }
  func.func @transform_2(%arg0: i32) -> (i32, i32) {
    %c0_i32 = arith.constant 0 : i32
    %c0_i32_0 = arith.constant 0 : i32
    %c0_i32_1 = arith.constant 0 : i32
    return %c0_i32, %c0_i32_0 : i32, i32
  }
  func.func @transform_3(%arg0: i32) -> (i32, i32) {
    %c0_i32 = arith.constant 0 : i32
    %c0_i32_0 = arith.constant 0 : i32
    %c0_i32_1 = arith.constant 0 : i32
    return %c0_i32, %c0_i32_0 : i32, i32
  }
  func.func @transform_4(%arg0: i32) -> (i32, i32) {
    %c0_i32 = arith.constant 0 : i32
    %c0_i32_0 = arith.constant 0 : i32
    %c0_i32_1 = arith.constant 0 : i32
    return %c0_i32, %c0_i32_0 : i32, i32
  }
  func.func @transform_5(%arg0: i32) -> (i32, i32, i32) {
    %c0_i32 = arith.constant 0 : i32
    %c0_i32_0 = arith.constant 0 : i32
    %c0_i32_1 = arith.constant 0 : i32
    return %arg0, %c0_i32, %c0_i32_0 : i32, i32, i32
  }
  func.func @transform_6(%arg0: i32) -> (i32, i32, i32) {
    %c0_i32 = arith.constant 0 : i32
    %c0_i32_0 = arith.constant 0 : i32
    %c0_i32_1 = arith.constant 0 : i32
    return %arg0, %c0_i32, %c0_i32_0 : i32, i32, i32
  }
}

module attributes {stable_mosaic.version = 11 : i64} {
  func.func @_conv3x3_kernel(%arg0: i32, %arg1: memref<1x16x256xbf16, #tpu.memory_space<vmem>>, %arg2: memref<16x144xbf16, #tpu.memory_space<vmem>>, %arg3: memref<3x256xf32, #tpu.memory_space<vmem>>, %arg4: memref<16x1xf32, #tpu.memory_space<vmem>>, %arg5: memref<16x1xf32, #tpu.memory_space<vmem>>, %arg6: memref<1x16x256xbf16, #tpu.memory_space<vmem>>) attributes {dimension_semantics = [#tpu.dimension_semantics<parallel>], iteration_bounds = array<i64: 2>, scalar_prefetch = 0 : i64, scratch_operands = 0 : i64, tpu.core_type = #tpu.core_type<tc>, window_params = [{transform_indices = @transform_0, window_bounds = array<i64: 1, 16, 256>}, {pipeline_mode = #tpu.pipeline_mode<synchronous>, transform_indices = @transform_1, window_bounds = array<i64: 16, 144>}, {pipeline_mode = #tpu.pipeline_mode<synchronous>, transform_indices = @transform_2, window_bounds = array<i64: 3, 256>}, {pipeline_mode = #tpu.pipeline_mode<synchronous>, transform_indices = @transform_3, window_bounds = array<i64: 16, 1>}, {pipeline_mode = #tpu.pipeline_mode<synchronous>, transform_indices = @transform_4, window_bounds = array<i64: 16, 1>}, {transform_indices = @transform_5, window_bounds = array<i64: 1, 16, 256>}]} {
    %c0 = arith.constant 0 : index
    %c0_0 = arith.constant 0 : index
    %c0_1 = arith.constant 0 : index
    %0 = vector.load %arg1[%c0, %c0_0, %c0_1] : memref<1x16x256xbf16, #tpu.memory_space<vmem>>, vector<1x16x256xbf16>
    %1 = vector.shape_cast %0 : vector<1x16x256xbf16> to vector<16x256xbf16>
    %c0_2 = arith.constant 0 : index
    %c0_3 = arith.constant 0 : index
    %2 = vector.load %arg3[%c0_2, %c0_3] : memref<3x256xf32, #tpu.memory_space<vmem>>, vector<1x256xf32>
    %3 = arith.truncf %2 : vector<1x256xf32> to vector<1x256xbf16>
    %c2 = arith.constant 2 : index
    %c0_4 = arith.constant 0 : index
    %4 = vector.load %arg3[%c2, %c0_4] : memref<3x256xf32, #tpu.memory_space<vmem>>, vector<1x256xf32>
    %5 = arith.truncf %4 : vector<1x256xf32> to vector<1x256xbf16>
    %cst = arith.constant 0.000000e+00 : bf16
    %6 = vector.broadcast %cst : bf16 to vector<16x17xbf16>
    %7 = tpu.concatenate %6, %1, %6 in 1 : vector<16x17xbf16>, vector<16x256xbf16>, vector<16x17xbf16> -> vector<16x290xbf16>
    %8 = vector.extract_strided_slice %7 {offsets = [0, 0], sizes = [16, 256], strides = [1, 1]} : vector<16x290xbf16> to vector<16x256xbf16>
    %9 = vector.broadcast %3 : vector<1x256xbf16> to vector<16x256xbf16>
    %10 = arith.mulf %8, %9 : vector<16x256xbf16>
    %11 = vector.extract_strided_slice %7 {offsets = [0, 1], sizes = [16, 256], strides = [1, 1]} : vector<16x290xbf16> to vector<16x256xbf16>
    %12 = vector.extract_strided_slice %7 {offsets = [0, 2], sizes = [16, 256], strides = [1, 1]} : vector<16x290xbf16> to vector<16x256xbf16>
    %13 = vector.broadcast %5 : vector<1x256xbf16> to vector<16x256xbf16>
    %14 = arith.mulf %12, %13 : vector<16x256xbf16>
    %15 = vector.extract_strided_slice %7 {offsets = [0, 16], sizes = [16, 256], strides = [1, 1]} : vector<16x290xbf16> to vector<16x256xbf16>
    %16 = vector.broadcast %3 : vector<1x256xbf16> to vector<16x256xbf16>
    %17 = arith.mulf %15, %16 : vector<16x256xbf16>
    %18 = vector.extract_strided_slice %7 {offsets = [0, 17], sizes = [16, 256], strides = [1, 1]} : vector<16x290xbf16> to vector<16x256xbf16>
    %19 = vector.extract_strided_slice %7 {offsets = [0, 18], sizes = [16, 256], strides = [1, 1]} : vector<16x290xbf16> to vector<16x256xbf16>
    %20 = vector.broadcast %5 : vector<1x256xbf16> to vector<16x256xbf16>
    %21 = arith.mulf %19, %20 : vector<16x256xbf16>
    %22 = vector.extract_strided_slice %7 {offsets = [0, 32], sizes = [16, 256], strides = [1, 1]} : vector<16x290xbf16> to vector<16x256xbf16>
    %23 = vector.broadcast %3 : vector<1x256xbf16> to vector<16x256xbf16>
    %24 = arith.mulf %22, %23 : vector<16x256xbf16>
    %25 = vector.extract_strided_slice %7 {offsets = [0, 33], sizes = [16, 256], strides = [1, 1]} : vector<16x290xbf16> to vector<16x256xbf16>
    %26 = vector.extract_strided_slice %7 {offsets = [0, 34], sizes = [16, 256], strides = [1, 1]} : vector<16x290xbf16> to vector<16x256xbf16>
    %27 = vector.broadcast %5 : vector<1x256xbf16> to vector<16x256xbf16>
    %28 = arith.mulf %26, %27 : vector<16x256xbf16>
    %29 = tpu.concatenate %10, %11, %14, %17, %18, %21, %24, %25, %28 in 0 : vector<16x256xbf16>, vector<16x256xbf16>, vector<16x256xbf16>, vector<16x256xbf16>, vector<16x256xbf16>, vector<16x256xbf16>, vector<16x256xbf16>, vector<16x256xbf16>, vector<16x256xbf16> -> vector<144x256xbf16>
    %c0_5 = arith.constant 0 : index
    %c0_6 = arith.constant 0 : index
    %30 = vector.load %arg2[%c0_5, %c0_6] : memref<16x144xbf16, #tpu.memory_space<vmem>>, vector<16x144xbf16>
    %cst_7 = arith.constant dense<0.000000e+00> : vector<16x256xf32>
    %31 = tpu.matmul %30, %29, %cst_7 {dimension_numbers = #tpu.dot_dimension_numbers<[1], [0], [0], [1], [0, 0, 1, 1], [], []>} : vector<16x144xbf16>, vector<144x256xbf16>, vector<16x256xf32> -> vector<16x256xf32>
    %c0_8 = arith.constant 0 : index
    %c0_9 = arith.constant 0 : index
    %32 = vector.load %arg4[%c0_8, %c0_9] : memref<16x1xf32, #tpu.memory_space<vmem>>, vector<16x1xf32>
    %33 = vector.broadcast %32 : vector<16x1xf32> to vector<16x256xf32>
    %34 = arith.mulf %31, %33 : vector<16x256xf32>
    %c0_10 = arith.constant 0 : index
    %c0_11 = arith.constant 0 : index
    %35 = vector.load %arg5[%c0_10, %c0_11] : memref<16x1xf32, #tpu.memory_space<vmem>>, vector<16x1xf32>
    %36 = vector.broadcast %35 : vector<16x1xf32> to vector<16x256xf32>
    %37 = arith.addf %34, %36 : vector<16x256xf32>
    %cst_12 = arith.constant 0.000000e+00 : f32
    %38 = vector.broadcast %cst_12 : f32 to vector<16x256xf32>
    %39 = arith.maximumf %37, %38 : vector<16x256xf32>
    %40 = arith.truncf %39 : vector<16x256xf32> to vector<16x256xbf16>
    %c0_13 = arith.constant 0 : index
    %c0_14 = arith.constant 0 : index
    %c0_15 = arith.constant 0 : index
    %41 = vector.load %arg6[%c0_13, %c0_14, %c0_15] : memref<1x16x256xbf16, #tpu.memory_space<vmem>>, vector<1x16x256xbf16>
    %42 = vector.shape_cast %41 : vector<1x16x256xbf16> to vector<16x256xbf16>
    %43 = vector.shape_cast %40 : vector<16x256xbf16> to vector<1x16x256xbf16>
    tpu.vector_store %arg6[%c0_13, %c0_14, %c0_15], %43 {strides = array<i32>} : memref<1x16x256xbf16, #tpu.memory_space<vmem>>, vector<1x16x256xbf16>,
    return
  }
  func.func @transform_0(%arg0: i32) -> (i32, i32, i32) {
    %c0_i32 = arith.constant 0 : i32
    %c0_i32_0 = arith.constant 0 : i32
    %c0_i32_1 = arith.constant 0 : i32
    return %arg0, %c0_i32, %c0_i32_0 : i32, i32, i32
  }
  func.func @transform_1(%arg0: i32) -> (i32, i32) {
    %c0_i32 = arith.constant 0 : i32
    %c0_i32_0 = arith.constant 0 : i32
    %c0_i32_1 = arith.constant 0 : i32
    return %c0_i32, %c0_i32_0 : i32, i32
  }
  func.func @transform_2(%arg0: i32) -> (i32, i32) {
    %c0_i32 = arith.constant 0 : i32
    %c0_i32_0 = arith.constant 0 : i32
    %c0_i32_1 = arith.constant 0 : i32
    return %c0_i32, %c0_i32_0 : i32, i32
  }
  func.func @transform_3(%arg0: i32) -> (i32, i32) {
    %c0_i32 = arith.constant 0 : i32
    %c0_i32_0 = arith.constant 0 : i32
    %c0_i32_1 = arith.constant 0 : i32
    return %c0_i32, %c0_i32_0 : i32, i32
  }
  func.func @transform_4(%arg0: i32) -> (i32, i32) {
    %c0_i32 = arith.constant 0 : i32
    %c0_i32_0 = arith.constant 0 : i32
    %c0_i32_1 = arith.constant 0 : i32
    return %c0_i32, %c0_i32_0 : i32, i32
  }
  func.func @transform_5(%arg0: i32) -> (i32, i32, i32) {
    %c0_i32 = arith.constant 0 : i32
    %c0_i32_0 = arith.constant 0 : i32
    %c0_i32_1 = arith.constant 0 : i32
    return %arg0, %c0_i32, %c0_i32_0 : i32, i32, i32
  }
}

module attributes {stable_mosaic.version = 11 : i64} {
  func.func @_pam_kernel(%arg0: i32, %arg1: memref<1x16x256xbf16, #tpu.memory_space<vmem>>, %arg2: memref<32x16xbf16, #tpu.memory_space<vmem>>, %arg3: memref<32x1xf32, #tpu.memory_space<vmem>>, %arg4: memref<1xf32, #tpu.memory_space<smem>>, %arg5: memref<1x16x256xbf16, #tpu.memory_space<vmem>>) attributes {dimension_semantics = [#tpu.dimension_semantics<parallel>], iteration_bounds = array<i64: 2>, scalar_prefetch = 0 : i64, scratch_operands = 0 : i64, tpu.core_type = #tpu.core_type<tc>, window_params = [{transform_indices = @transform_0, window_bounds = array<i64: 1, 16, 256>}, {pipeline_mode = #tpu.pipeline_mode<synchronous>, transform_indices = @transform_1, window_bounds = array<i64: 32, 16>}, {pipeline_mode = #tpu.pipeline_mode<synchronous>, transform_indices = @transform_2, window_bounds = array<i64: 32, 1>}, {transform_indices = @transform_3, window_bounds = array<i64: 1>}, {transform_indices = @transform_4, window_bounds = array<i64: 1, 16, 256>}]} {
    %c0 = arith.constant 0 : index
    %c0_0 = arith.constant 0 : index
    %c0_1 = arith.constant 0 : index
    %0 = vector.load %arg1[%c0, %c0_0, %c0_1] : memref<1x16x256xbf16, #tpu.memory_space<vmem>>, vector<1x16x256xbf16>
    %1 = vector.shape_cast %0 : vector<1x16x256xbf16> to vector<16x256xbf16>
    %c0_2 = arith.constant 0 : index
    %c0_3 = arith.constant 0 : index
    %2 = vector.load %arg2[%c0_2, %c0_3] : memref<32x16xbf16, #tpu.memory_space<vmem>>, vector<32x16xbf16>
    %cst = arith.constant dense<0.000000e+00> : vector<32x256xf32>
    %3 = tpu.matmul %2, %1, %cst {dimension_numbers = #tpu.dot_dimension_numbers<[1], [0], [0], [1], [0, 0, 1, 1], [], []>} : vector<32x16xbf16>, vector<16x256xbf16>, vector<32x256xf32> -> vector<32x256xf32>
    %c0_4 = arith.constant 0 : index
    %c0_5 = arith.constant 0 : index
    %4 = vector.load %arg3[%c0_4, %c0_5] : memref<32x1xf32, #tpu.memory_space<vmem>>, vector<32x1xf32>
    %5 = vector.broadcast %4 : vector<32x1xf32> to vector<32x256xf32>
    %6 = arith.addf %3, %5 : vector<32x256xf32>
    %7 = arith.truncf %6 : vector<32x256xf32> to vector<32x256xbf16>
    %8 = vector.extract_strided_slice %7 {offsets = [0, 0], sizes = [8, 256], strides = [1, 1]} : vector<32x256xbf16> to vector<8x256xbf16>
    %9 = vector.extract_strided_slice %7 {offsets = [8, 0], sizes = [8, 256], strides = [1, 1]} : vector<32x256xbf16> to vector<8x256xbf16>
    %10 = vector.extract_strided_slice %7 {offsets = [16, 0], sizes = [16, 256], strides = [1, 1]} : vector<32x256xbf16> to vector<16x256xbf16>
    %cst_6 = arith.constant dense<0.000000e+00> : vector<256x256xf32>
    %11 = tpu.matmul %9, %8, %cst_6 {dimension_numbers = #tpu.dot_dimension_numbers<[0], [0], [1], [1], [0, 1, 1, 1], [], []>} : vector<8x256xbf16>, vector<8x256xbf16>, vector<256x256xf32> -> vector<256x256xf32>
    %cst_7 = arith.constant dense<0xFF800000> : vector<256xf32>
    %12 = vector.multi_reduction <maximumf>, %11, %cst_7 [0] : vector<256x256xf32> to vector<256xf32>
    %13 = vector.shape_cast %12 : vector<256xf32> to vector<1x256xf32>
    %14 = vector.broadcast %13 : vector<1x256xf32> to vector<256x256xf32>
    %15 = arith.subf %11, %14 : vector<256x256xf32>
    %16 = math.exp %15 : vector<256x256xf32>
    %cst_8 = arith.constant dense<0.000000e+00> : vector<256xf32>
    %17 = vector.multi_reduction <add>, %16, %cst_8 [0] : vector<256x256xf32> to vector<256xf32>
    %18 = vector.shape_cast %17 : vector<256xf32> to vector<1x256xf32>
    %19 = arith.truncf %16 : vector<256x256xf32> to vector<256x256xbf16>
    %cst_9 = arith.constant dense<0.000000e+00> : vector<16x256xf32>
    %20 = tpu.matmul %10, %19, %cst_9 {dimension_numbers = #tpu.dot_dimension_numbers<[1], [0], [0], [1], [0, 0, 1, 1], [], []>} : vector<16x256xbf16>, vector<256x256xbf16>, vector<16x256xf32> -> vector<16x256xf32>
    %21 = tpu.reciprocal %18 {approx = true} : vector<1x256xf32> -> vector<1x256xf32>
    %22 = vector.broadcast %21 : vector<1x256xf32> to vector<16x256xf32>
    %23 = arith.mulf %20, %22 : vector<16x256xf32>
    %c0_10 = arith.constant 0 : index
    %24 = memref.load %arg4[%c0_10] : memref<1xf32, #tpu.memory_space<smem>>
    %25 = vector.broadcast %24 : f32 to vector<16x256xf32>
    %26 = arith.mulf %25, %23 : vector<16x256xf32>
    %27 = arith.extf %1 : vector<16x256xbf16> to vector<16x256xf32>
    %28 = arith.addf %26, %27 : vector<16x256xf32>
    %29 = arith.truncf %28 : vector<16x256xf32> to vector<16x256xbf16>
    %c0_11 = arith.constant 0 : index
    %c0_12 = arith.constant 0 : index
    %c0_13 = arith.constant 0 : index
    %30 = vector.load %arg5[%c0_11, %c0_12, %c0_13] : memref<1x16x256xbf16, #tpu.memory_space<vmem>>, vector<1x16x256xbf16>
    %31 = vector.shape_cast %30 : vector<1x16x256xbf16> to vector<16x256xbf16>
    %32 = vector.shape_cast %29 : vector<16x256xbf16> to vector<1x16x256xbf16>
    tpu.vector_store %arg5[%c0_11, %c0_12, %c0_13], %32 {strides = array<i32>} : memref<1x16x256xbf16, #tpu.memory_space<vmem>>, vector<1x16x256xbf16>,
    return
  }
  func.func @transform_0(%arg0: i32) -> (i32, i32, i32) {
    %c0_i32 = arith.constant 0 : i32
    %c0_i32_0 = arith.constant 0 : i32
    %c0_i32_1 = arith.constant 0 : i32
    return %arg0, %c0_i32, %c0_i32_0 : i32, i32, i32
  }
  func.func @transform_1(%arg0: i32) -> (i32, i32) {
    %c0_i32 = arith.constant 0 : i32
    %c0_i32_0 = arith.constant 0 : i32
    %c0_i32_1 = arith.constant 0 : i32
    return %c0_i32, %c0_i32_0 : i32, i32
  }
  func.func @transform_2(%arg0: i32) -> (i32, i32) {
    %c0_i32 = arith.constant 0 : i32
    %c0_i32_0 = arith.constant 0 : i32
    %c0_i32_1 = arith.constant 0 : i32
    return %c0_i32, %c0_i32_0 : i32, i32
  }
  func.func @transform_3(%arg0: i32) -> i32 {
    %c0_i32 = arith.constant 0 : i32
    %c0_i32_0 = arith.constant 0 : i32
    return %c0_i32 : i32
  }
  func.func @transform_4(%arg0: i32) -> (i32, i32, i32) {
    %c0_i32 = arith.constant 0 : i32
    %c0_i32_0 = arith.constant 0 : i32
    %c0_i32_1 = arith.constant 0 : i32
    return %arg0, %c0_i32, %c0_i32_0 : i32, i32, i32
  }
}

module attributes {stable_mosaic.version = 11 : i64} {
  func.func @_cam_kernel(%arg0: i32, %arg1: memref<1x16x256xbf16, #tpu.memory_space<vmem>>, %arg2: memref<1xf32, #tpu.memory_space<smem>>, %arg3: memref<1x16x256xbf16, #tpu.memory_space<vmem>>) attributes {dimension_semantics = [#tpu.dimension_semantics<parallel>], iteration_bounds = array<i64: 2>, scalar_prefetch = 0 : i64, scratch_operands = 0 : i64, tpu.core_type = #tpu.core_type<tc>, window_params = [{transform_indices = @transform_0, window_bounds = array<i64: 1, 16, 256>}, {transform_indices = @transform_1, window_bounds = array<i64: 1>}, {transform_indices = @transform_2, window_bounds = array<i64: 1, 16, 256>}]} {
    %c0 = arith.constant 0 : index
    %c0_0 = arith.constant 0 : index
    %c0_1 = arith.constant 0 : index
    %0 = vector.load %arg1[%c0, %c0_0, %c0_1] : memref<1x16x256xbf16, #tpu.memory_space<vmem>>, vector<1x16x256xbf16>
    %1 = vector.shape_cast %0 : vector<1x16x256xbf16> to vector<16x256xbf16>
    %cst = arith.constant dense<0.000000e+00> : vector<16x16xf32>
    %2 = tpu.matmul %1, %1, %cst {dimension_numbers = #tpu.dot_dimension_numbers<[1], [1], [0], [0], [0, 0, 1, 0], [], []>} : vector<16x256xbf16>, vector<16x256xbf16>, vector<16x16xf32> -> vector<16x16xf32>
    %cst_2 = arith.constant dense<0xFF800000> : vector<16xf32>
    %3 = vector.multi_reduction <maximumf>, %2, %cst_2 [1] : vector<16x16xf32> to vector<16xf32>
    %4 = vector.shape_cast %3 : vector<16xf32> to vector<16x1xf32>
    %5 = vector.broadcast %4 : vector<16x1xf32> to vector<16x16xf32>
    %6 = arith.subf %5, %2 : vector<16x16xf32>
    %cst_3 = arith.constant dense<0xFF800000> : vector<16xf32>
    %7 = vector.multi_reduction <maximumf>, %6, %cst_3 [1] : vector<16x16xf32> to vector<16xf32>
    %8 = vector.shape_cast %7 : vector<16xf32> to vector<16x1xf32>
    %9 = vector.broadcast %8 : vector<16x1xf32> to vector<16x16xf32>
    %10 = arith.subf %6, %9 : vector<16x16xf32>
    %11 = math.exp %10 : vector<16x16xf32>
    %cst_4 = arith.constant dense<0.000000e+00> : vector<16xf32>
    %12 = vector.multi_reduction <add>, %11, %cst_4 [1] : vector<16x16xf32> to vector<16xf32>
    %13 = vector.shape_cast %12 : vector<16xf32> to vector<16x1xf32>
    %14 = arith.truncf %11 : vector<16x16xf32> to vector<16x16xbf16>
    %cst_5 = arith.constant dense<0.000000e+00> : vector<16x256xf32>
    %15 = tpu.matmul %14, %1, %cst_5 {dimension_numbers = #tpu.dot_dimension_numbers<[1], [0], [0], [1], [0, 0, 1, 1], [], []>} : vector<16x16xbf16>, vector<16x256xbf16>, vector<16x256xf32> -> vector<16x256xf32>
    %16 = tpu.reciprocal %13 {approx = true} : vector<16x1xf32> -> vector<16x1xf32>
    %17 = vector.broadcast %16 : vector<16x1xf32> to vector<16x256xf32>
    %18 = arith.mulf %15, %17 : vector<16x256xf32>
    %c0_6 = arith.constant 0 : index
    %19 = memref.load %arg2[%c0_6] : memref<1xf32, #tpu.memory_space<smem>>
    %20 = vector.broadcast %19 : f32 to vector<16x256xf32>
    %21 = arith.mulf %20, %18 : vector<16x256xf32>
    %22 = arith.extf %1 : vector<16x256xbf16> to vector<16x256xf32>
    %23 = arith.addf %21, %22 : vector<16x256xf32>
    %24 = arith.truncf %23 : vector<16x256xf32> to vector<16x256xbf16>
    %c0_7 = arith.constant 0 : index
    %c0_8 = arith.constant 0 : index
    %c0_9 = arith.constant 0 : index
    %25 = vector.load %arg3[%c0_7, %c0_8, %c0_9] : memref<1x16x256xbf16, #tpu.memory_space<vmem>>, vector<1x16x256xbf16>
    %26 = vector.shape_cast %25 : vector<1x16x256xbf16> to vector<16x256xbf16>
    %27 = vector.shape_cast %24 : vector<16x256xbf16> to vector<1x16x256xbf16>
    tpu.vector_store %arg3[%c0_7, %c0_8, %c0_9], %27 {strides = array<i32>} : memref<1x16x256xbf16, #tpu.memory_space<vmem>>, vector<1x16x256xbf16>,
    return
  }
  func.func @transform_0(%arg0: i32) -> (i32, i32, i32) {
    %c0_i32 = arith.constant 0 : i32
    %c0_i32_0 = arith.constant 0 : i32
    %c0_i32_1 = arith.constant 0 : i32
    return %arg0, %c0_i32, %c0_i32_0 : i32, i32, i32
  }
  func.func @transform_1(%arg0: i32) -> i32 {
    %c0_i32 = arith.constant 0 : i32
    %c0_i32_0 = arith.constant 0 : i32
    return %c0_i32 : i32
  }
  func.func @transform_2(%arg0: i32) -> (i32, i32, i32) {
    %c0_i32 = arith.constant 0 : i32
    %c0_i32_0 = arith.constant 0 : i32
    %c0_i32_1 = arith.constant 0 : i32
    return %arg0, %c0_i32, %c0_i32_0 : i32, i32, i32
  }
}

module attributes {stable_mosaic.version = 11 : i64} {
  func.func @_tail_kernel(%arg0: i32, %arg1: memref<1x16x256xbf16, #tpu.memory_space<vmem>>, %arg2: memref<1x16x256xbf16, #tpu.memory_space<vmem>>, %arg3: memref<32x16xbf16, #tpu.memory_space<vmem>>, %arg4: memref<32x16xbf16, #tpu.memory_space<vmem>>, %arg5: memref<16x1xf32, #tpu.memory_space<vmem>>, %arg6: memref<16x1xf32, #tpu.memory_space<vmem>>, %arg7: memref<16x1xf32, #tpu.memory_space<vmem>>, %arg8: memref<1x16x256xf32, #tpu.memory_space<vmem>>, %arg9: memref<1x16x256xf32, #tpu.memory_space<vmem>>, %arg10: memref<1x16x256xf32, #tpu.memory_space<vmem>>) attributes {dimension_semantics = [#tpu.dimension_semantics<parallel>], iteration_bounds = array<i64: 2>, scalar_prefetch = 0 : i64, scratch_operands = 0 : i64, tpu.core_type = #tpu.core_type<tc>, window_params = [{transform_indices = @transform_0, window_bounds = array<i64: 1, 16, 256>}, {transform_indices = @transform_1, window_bounds = array<i64: 1, 16, 256>}, {pipeline_mode = #tpu.pipeline_mode<synchronous>, transform_indices = @transform_2, window_bounds = array<i64: 32, 16>}, {pipeline_mode = #tpu.pipeline_mode<synchronous>, transform_indices = @transform_3, window_bounds = array<i64: 32, 16>}, {pipeline_mode = #tpu.pipeline_mode<synchronous>, transform_indices = @transform_4, window_bounds = array<i64: 16, 1>}, {pipeline_mode = #tpu.pipeline_mode<synchronous>, transform_indices = @transform_5, window_bounds = array<i64: 16, 1>}, {pipeline_mode = #tpu.pipeline_mode<synchronous>, transform_indices = @transform_6, window_bounds = array<i64: 16, 1>}, {transform_indices = @transform_7, window_bounds = array<i64: 1, 16, 256>}, {transform_indices = @transform_8, window_bounds = array<i64: 1, 16, 256>}, {transform_indices = @transform_9, window_bounds = array<i64: 1, 16, 256>}]} {
    %c0 = arith.constant 0 : index
    %c0_0 = arith.constant 0 : index
    %c0_1 = arith.constant 0 : index
    %0 = vector.load %arg1[%c0, %c0_0, %c0_1] : memref<1x16x256xbf16, #tpu.memory_space<vmem>>, vector<1x16x256xbf16>
    %1 = vector.shape_cast %0 : vector<1x16x256xbf16> to vector<16x256xbf16>
    %c0_2 = arith.constant 0 : index
    %c0_3 = arith.constant 0 : index
    %c0_4 = arith.constant 0 : index
    %2 = vector.load %arg2[%c0_2, %c0_3, %c0_4] : memref<1x16x256xbf16, #tpu.memory_space<vmem>>, vector<1x16x256xbf16>
    %3 = vector.shape_cast %2 : vector<1x16x256xbf16> to vector<16x256xbf16>
    %c0_5 = arith.constant 0 : index
    %c0_6 = arith.constant 0 : index
    %4 = vector.load %arg3[%c0_5, %c0_6] : memref<32x16xbf16, #tpu.memory_space<vmem>>, vector<32x16xbf16>
    %cst = arith.constant dense<0.000000e+00> : vector<32x256xf32>
    %5 = tpu.matmul %4, %1, %cst {dimension_numbers = #tpu.dot_dimension_numbers<[1], [0], [0], [1], [0, 0, 1, 1], [], []>} : vector<32x16xbf16>, vector<16x256xbf16>, vector<32x256xf32> -> vector<32x256xf32>
    %c0_7 = arith.constant 0 : index
    %c0_8 = arith.constant 0 : index
    %6 = vector.load %arg4[%c0_7, %c0_8] : memref<32x16xbf16, #tpu.memory_space<vmem>>, vector<32x16xbf16>
    %cst_9 = arith.constant dense<0.000000e+00> : vector<32x256xf32>
    %7 = tpu.matmul %6, %3, %cst_9 {dimension_numbers = #tpu.dot_dimension_numbers<[1], [0], [0], [1], [0, 0, 1, 1], [], []>} : vector<32x16xbf16>, vector<16x256xbf16>, vector<32x256xf32> -> vector<32x256xf32>
    %8 = vector.extract_strided_slice %5 {offsets = [0, 0], sizes = [16, 256], strides = [1, 1]} : vector<32x256xf32> to vector<16x256xf32>
    %c0_10 = arith.constant 0 : index
    %c0_11 = arith.constant 0 : index
    %9 = vector.load %arg5[%c0_10, %c0_11] : memref<16x1xf32, #tpu.memory_space<vmem>>, vector<16x1xf32>
    %10 = vector.broadcast %9 : vector<16x1xf32> to vector<16x256xf32>
    %11 = arith.addf %8, %10 : vector<16x256xf32>
    %c0_12 = arith.constant 0 : index
    %c0_13 = arith.constant 0 : index
    %c0_14 = arith.constant 0 : index
    %12 = vector.load %arg8[%c0_12, %c0_13, %c0_14] : memref<1x16x256xf32, #tpu.memory_space<vmem>>, vector<1x16x256xf32>
    %13 = vector.shape_cast %12 : vector<1x16x256xf32> to vector<16x256xf32>
    %14 = vector.shape_cast %11 : vector<16x256xf32> to vector<1x16x256xf32>
    tpu.vector_store %arg8[%c0_12, %c0_13, %c0_14], %14 {strides = array<i32>} : memref<1x16x256xf32, #tpu.memory_space<vmem>>, vector<1x16x256xf32>,
    %15 = vector.extract_strided_slice %7 {offsets = [0, 0], sizes = [16, 256], strides = [1, 1]} : vector<32x256xf32> to vector<16x256xf32>
    %c0_15 = arith.constant 0 : index
    %c0_16 = arith.constant 0 : index
    %16 = vector.load %arg6[%c0_15, %c0_16] : memref<16x1xf32, #tpu.memory_space<vmem>>, vector<16x1xf32>
    %17 = vector.broadcast %16 : vector<16x1xf32> to vector<16x256xf32>
    %18 = arith.addf %15, %17 : vector<16x256xf32>
    %c0_17 = arith.constant 0 : index
    %c0_18 = arith.constant 0 : index
    %c0_19 = arith.constant 0 : index
    %19 = vector.load %arg9[%c0_17, %c0_18, %c0_19] : memref<1x16x256xf32, #tpu.memory_space<vmem>>, vector<1x16x256xf32>
    %20 = vector.shape_cast %19 : vector<1x16x256xf32> to vector<16x256xf32>
    %21 = vector.shape_cast %18 : vector<16x256xf32> to vector<1x16x256xf32>
    tpu.vector_store %arg9[%c0_17, %c0_18, %c0_19], %21 {strides = array<i32>} : memref<1x16x256xf32, #tpu.memory_space<vmem>>, vector<1x16x256xf32>,
    %22 = vector.extract_strided_slice %5 {offsets = [16, 0], sizes = [16, 256], strides = [1, 1]} : vector<32x256xf32> to vector<16x256xf32>
    %23 = vector.extract_strided_slice %7 {offsets = [16, 0], sizes = [16, 256], strides = [1, 1]} : vector<32x256xf32> to vector<16x256xf32>
    %24 = arith.addf %22, %23 : vector<16x256xf32>
    %c0_20 = arith.constant 0 : index
    %c0_21 = arith.constant 0 : index
    %25 = vector.load %arg7[%c0_20, %c0_21] : memref<16x1xf32, #tpu.memory_space<vmem>>, vector<16x1xf32>
    %26 = vector.broadcast %25 : vector<16x1xf32> to vector<16x256xf32>
    %27 = arith.addf %24, %26 : vector<16x256xf32>
    %c0_22 = arith.constant 0 : index
    %c0_23 = arith.constant 0 : index
    %c0_24 = arith.constant 0 : index
    %28 = vector.load %arg10[%c0_22, %c0_23, %c0_24] : memref<1x16x256xf32, #tpu.memory_space<vmem>>, vector<1x16x256xf32>
    %29 = vector.shape_cast %28 : vector<1x16x256xf32> to vector<16x256xf32>
    %30 = vector.shape_cast %27 : vector<16x256xf32> to vector<1x16x256xf32>
    tpu.vector_store %arg10[%c0_22, %c0_23, %c0_24], %30 {strides = array<i32>} : memref<1x16x256xf32, #tpu.memory_space<vmem>>, vector<1x16x256xf32>,
    return
  }
  func.func @transform_0(%arg0: i32) -> (i32, i32, i32) {
    %c0_i32 = arith.constant 0 : i32
    %c0_i32_0 = arith.constant 0 : i32
    %c0_i32_1 = arith.constant 0 : i32
    return %arg0, %c0_i32, %c0_i32_0 : i32, i32, i32
  }
  func.func @transform_1(%arg0: i32) -> (i32, i32, i32) {
    %c0_i32 = arith.constant 0 : i32
    %c0_i32_0 = arith.constant 0 : i32
    %c0_i32_1 = arith.constant 0 : i32
    return %arg0, %c0_i32, %c0_i32_0 : i32, i32, i32
  }
  func.func @transform_2(%arg0: i32) -> (i32, i32) {
    %c0_i32 = arith.constant 0 : i32
    %c0_i32_0 = arith.constant 0 : i32
    %c0_i32_1 = arith.constant 0 : i32
    return %c0_i32, %c0_i32_0 : i32, i32
  }
  func.func @transform_3(%arg0: i32) -> (i32, i32) {
    %c0_i32 = arith.constant 0 : i32
    %c0_i32_0 = arith.constant 0 : i32
    %c0_i32_1 = arith.constant 0 : i32
    return %c0_i32, %c0_i32_0 : i32, i32
  }
  func.func @transform_4(%arg0: i32) -> (i32, i32) {
    %c0_i32 = arith.constant 0 : i32
    %c0_i32_0 = arith.constant 0 : i32
    %c0_i32_1 = arith.constant 0 : i32
    return %c0_i32, %c0_i32_0 : i32, i32
  }
  func.func @transform_5(%arg0: i32) -> (i32, i32) {
    %c0_i32 = arith.constant 0 : i32
    %c0_i32_0 = arith.constant 0 : i32
    %c0_i32_1 = arith.constant 0 : i32
    return %c0_i32, %c0_i32_0 : i32, i32
  }
  func.func @transform_6(%arg0: i32) -> (i32, i32) {
    %c0_i32 = arith.constant 0 : i32
    %c0_i32_0 = arith.constant 0 : i32
    %c0_i32_1 = arith.constant 0 : i32
    return %c0_i32, %c0_i32_0 : i32, i32
  }
  func.func @transform_7(%arg0: i32) -> (i32, i32, i32) {
    %c0_i32 = arith.constant 0 : i32
    %c0_i32_0 = arith.constant 0 : i32
    %c0_i32_1 = arith.constant 0 : i32
    return %arg0, %c0_i32, %c0_i32_0 : i32, i32, i32
  }
  func.func @transform_8(%arg0: i32) -> (i32, i32, i32) {
    %c0_i32 = arith.constant 0 : i32
    %c0_i32_0 = arith.constant 0 : i32
    %c0_i32_1 = arith.constant 0 : i32
    return %arg0, %c0_i32, %c0_i32_0 : i32, i32, i32
  }
  func.func @transform_9(%arg0: i32) -> (i32, i32, i32) {
    %c0_i32 = arith.constant 0 : i32
    %c0_i32_0 = arith.constant 0 : i32
    %c0_i32_1 = arith.constant 0 : i32
    return %arg0, %c0_i32, %c0_i32_0 : i32, i32, i32
  }
}

</mosaic_0001>

<llo_original>
// kernel: danet_head_forward.9
$region0: #{danet_head_forward.9}
  #allocation0 [shape = 'u32[]', space=smem, size = 0x4, offset = 0x4, fixed_abs, tag = 'smem constant byte address 0x4 - core index']
  #allocation1 [shape = 'u32[72,128]{1,0:T(1,128)}', space=vmem, size = 0x9000, scoped, tag = 'internal scratch']
  #allocation2 [shape = 'f32[1]{0:T(128)S(6)}', space=smem, size = 0x200, scoped, tag = 'scoped memory for danet_head_forward.9']
  %s0 = inlined_call_operand.vmem [shape: bf16[2,16,256], index: 0, kind: input, shape index: {}]
  %s1 = inlined_call_operand.<no memory space> [shape: f32[1], index: 1, kind: input, shape index: {}]
  %s2 = inlined_call_operand.vmem [shape: bf16[2,16,256], index: 2, kind: output, shape index: {}]
  %s3 = sld [smem:[#allocation0]]
  $region41: #{danet_head_forward.9} parent=0
    _
  %s5 = ssub.s32 1, %s3
  %s6 = scalar_select 0, %s5, %s3
  %7 = sst [smem:[#allocation2]] %s1
  loop: start=0, step=1, limit=4
  $region2: #{danet_head_forward.9} parent=0 // loop_pre_header
    _
  $region3: #{danet_head_forward.9} parent=0 // loop_header
    %s9 = sphi 0, %s13
    %p10 = scmp.ge.s32.totalorder %s9, 4
    %s19 = sphi 0, %s21
    %s22 = sphi 0, %s19
    %s23 = sphi 0, %s22
    %s39 = sphi 0, %s23
    %s43 = sphi 0, %s43
    %s45 = sphi 0, %s43
    %s46 = sphi 0, %s45
    %s60 = sphi 0, %s46
    %s66 = sphi 0, %s68
    %s69 = sphi 0, %s66
    %s70 = sphi 0, %s69
    %s86 = sphi 0, %s70
  $region4: #{danet_head_forward.9} parent=0 // loop_header_branch
    %12 = sbr.rel (%p10) target = $region8
  $region5: #{danet_head_forward.9} parent=0 // loop_body
    %s14 = ssub.s32 %s9, 1
    %s15 = ssub.s32 %s9, 2
    %s16 = sadd.s32 %s9, 1
    %s17 = ssub.s32 %s9, %s16
    %p18 = scmp.eq.s32.totalorder %s17, 0
    %s20 = sadd.s32 %s19, 1
    %s21 = scalar_select %p18, %s19, %s20
    %p24 = pneg %p18
    %p25 = scmp.eq.s32.totalorder %s9, 1
    %p26 = por %p24, %p25
    %p27 = scmp.ne.s32.totalorder %s19, %s22
    %p28 = scmp.eq.s32.totalorder %s9, 0
    %p29 = por %p27, %p28
    %p30 = scmp.ne.s32.totalorder %s19, %s22
    %p31 = scmp.eq.s32.totalorder %s14, 1
    %p32 = por %p30, %p31
    %p33 = scmp.ne.s32.totalorder %s22, %s23
    %p34 = scmp.eq.s32.totalorder %s14, 0
    %p35 = por %p33, %p34
    %p36 = scmp.ne.s32.totalorder %s22, %s23
    %p37 = scmp.eq.s32.totalorder %s15, 1
    %p38 = por %p36, %p37
    %p40 = scmp.ne.s32.totalorder %s23, %s39
    %p41 = scmp.eq.s32.totalorder %s15, 0
    %p42 = por %p40, %p41
    %s44 = sadd.s32 %s43, 1
    %p47 = scmp.eq.s32.totalorder %s9, 1
    %p48 = scmp.ne.s32.totalorder %s43, %s45
    %p49 = scmp.eq.s32.totalorder %s9, 0
    %p50 = por %p48, %p49
    %p51 = scmp.ne.s32.totalorder %s43, %s45
    %p52 = scmp.eq.s32.totalorder %s14, 1
    %p53 = por %p51, %p52
    %p54 = scmp.ne.s32.totalorder %s45, %s46
    %p55 = scmp.eq.s32.totalorder %s14, 0
    %p56 = por %p54, %p55
    %p57 = scmp.ne.s32.totalorder %s45, %s46
    %p58 = scmp.eq.s32.totalorder %s15, 1
    %p59 = por %p57, %p58
    %p61 = scmp.ne.s32.totalorder %s46, %s60
    %p62 = scmp.eq.s32.totalorder %s15, 0
    %p63 = por %p61, %p62
    %s64 = ssub.s32 %s9, %s16
    %p65 = scmp.eq.s32.totalorder %s64, 0
    %s67 = sadd.s32 %s66, 1
    %s68 = scalar_select %p65, %s66, %s67
    %p71 = pneg %p65
    %p72 = scmp.eq.s32.totalorder %s9, 1
    %p73 = por %p71, %p72
    %p74 = scmp.ne.s32.totalorder %s66, %s69
    %p75 = scmp.eq.s32.totalorder %s9, 0
    %p76 = por %p74, %p75
    %p77 = scmp.ne.s32.totalorder %s66, %s69
    %p78 = scmp.eq.s32.totalorder %s14, 1
    %p79 = por %p77, %p78
    %p80 = scmp.ne.s32.totalorder %s69, %s70
    %p81 = scmp.eq.s32.totalorder %s14, 0
    %p82 = por %p80, %p81
    %p83 = scmp.ne.s32.totalorder %s69, %s70
    %p84 = scmp.eq.s32.totalorder %s15, 1
    %p85 = por %p83, %p84
    %p87 = scmp.ne.s32.totalorder %s70, %s86
    %p88 = scmp.eq.s32.totalorder %s15, 0
    %p89 = por %p87, %p88
    %p90 = scmp.le.s32.totalorder 1, %s9
    %p91 = scmp.lt.s32.totalorder %s9, 3
    %p92 = pnand %p90, %p91
    %p93 = pneg %p92
    // Predicated region
    $region9: #{danet_head_forward.9} parent=5 // pred_check
      _
    $region10: #{danet_head_forward.9} parent=5 // pred_check_branch
      %95 = sbr.rel (%p92) target = $region12
    $region11: #{danet_head_forward.9} parent=5 // pred_region
      %s96 = ssub.s32 %s9, 1
      // Predicated region
      $region13: #{danet_head_forward.9} parent=11 // pred_check
        %p97 = pneg %p56
      $region14: #{danet_head_forward.9} parent=11 // pred_check_branch
        %99 = sbr.rel (%p97) target = $region16
      $region15: #{danet_head_forward.9} parent=11 // pred_region
        _
      $region16: #{danet_head_forward.9} parent=11 // pred_fallthru
        _
    $region12: #{danet_head_forward.9} parent=5 // pred_fallthru
      _
    %p100 = scmp.lt.s32.totalorder %s9, 2
    // Predicated region
    $region17: #{danet_head_forward.9} parent=5 // pred_check
      %p101 = pneg %p100
    $region18: #{danet_head_forward.9} parent=5 // pred_check_branch
      %103 = sbr.rel (%p101) target = $region20
    $region19: #{danet_head_forward.9} parent=5 // pred_region
      // Predicated region
      $region21: #{danet_head_forward.9} parent=19 // pred_check
        %p104 = pneg %p29
      $region22: #{danet_head_forward.9} parent=19 // pred_check_branch
        %106 = sbr.rel (%p104) target = $region24
      $region23: #{danet_head_forward.9} parent=19 // pred_region
        %p107 = scmp.lt.s32.totalorder %s9, 1
        %s108 = scalar_select %p107, %s9, 1
        %s109 = smul.addr %s108, 4
        %s110 = smul.addr %s109, 4
        %s111 = scalar_lea.vmem %s0, %s110
      $region24: #{danet_head_forward.9} parent=19 // pred_fallthru
        _
    $region20: #{danet_head_forward.9} parent=5 // pred_fallthru
      _
    %p112 = scmp.le.s32.totalorder 1, %s9
    %p113 = scmp.lt.s32.totalorder %s9, 3
    %p114 = pnand %p112, %p113
    %p115 = pneg %p114
    // Predicated region
    $region25: #{danet_head_forward.9} parent=5 // pred_check
      _
    $region26: #{danet_head_forward.9} parent=5 // pred_check_branch
      %117 = sbr.rel (%p114) target = $region28
    $region27: #{danet_head_forward.9} parent=5 // pred_region
      %s118 = ssub.s32 %s9, 1
      %p119 = scmp.lt.s32.totalorder %s14, 1
      %s120 = scalar_select %p119, %s14, 1
      %s121 = smul.addr %s120, 4
      %s122 = smul.addr %s121, 4
      %s123 = scalar_lea.vmem %s0, %s122
      %p124 = pneg %p35
      %p125 = pneg %p32
      %p126 = pneg %p56
      %p127 = pneg %p53
      %p128 = pneg %p82
      %p129 = pneg %p79
      %p130 = scmp.lt.s32.totalorder %s14, 1
      %s131 = scalar_select %p130, %s14, 1
      %s132 = smul.addr %s131, 4
      %s133 = smul.addr %s132, 4
      %s134 = scalar_lea.vmem %s2, %s133
      %p135 = scmp.lt.s32.totalorder %s14, 1
      %s136 = scalar_select %p135, %s14, 1
      %s137 = smul.addr %s136, 4
      %s138 = smul.addr %s137, 4
      %s139 = scalar_lea.vmem %s0, %s138
      %p140 = scmp.lt.s32.totalorder %s14, 1
      %s141 = scalar_select %p140, %s14, 1
      %s142 = smul.addr %s141, 4
      %s143 = smul.addr %s142, 4
      %s144 = scalar_lea.vmem %s2, %s143
      %v146 = vld [vmem:[%s139] sm:$0xff]
      %v147 = vld [vmem:[%s139 + $0x8] sm:$0xff]
      %v150 = vunpack.c.l.b16 %v146
      %v151 = vunpack.c.h.b16 %v146
      %v152 = vunpack.c.l.b16 %v147
      %v153 = vunpack.c.h.b16 %v147
      %v154 = vpack.c.b16 %v152, %v150
      %v155 = vpack.c.b16 %v153, %v151
      %158 = vmatpush.bf16.xpose.msra.mxu0 0
      %159 = vmatpush.bf16.xpose.msra.mxu0 0
      %160 = vmatpush.bf16.xpose.msra.mxu0 0
      %161 = vmatpush.bf16.xpose.msra.mxu0 0
      %162 = vmatpush.bf16.xpose.msra.mxu0 0
      %163 = vmatpush.bf16.xpose.msra.mxu0 0
      %164 = vmatpush.bf16.xpose.msra.mxu0 0
      %165 = vmatpush.bf16.xpose.msra.mxu0 %v154
      %166 = vmatmul.bf16.gmra.mxu0 %v154
      %v167 = vpop.f32.mrf.mxu0
      %v168 = vadd.f32 0.0, %v167
      %v169 = vpop.f32.mrf.mxu0
      %v170 = vadd.f32 0.0, %v169
      %171 = vdwg.mxu0
      %172 = vmatpush.bf16.xpose.msra.mxu0 0
      %173 = vmatpush.bf16.xpose.msra.mxu0 0
      %174 = vmatpush.bf16.xpose.msra.mxu0 0
      %175 = vmatpush.bf16.xpose.msra.mxu0 0
      %176 = vmatpush.bf16.xpose.msra.mxu0 0
      %177 = vmatpush.bf16.xpose.msra.mxu0 0
      %178 = vmatpush.bf16.xpose.msra.mxu0 0
      %179 = vmatpush.bf16.xpose.msra.mxu0 %v155
      %180 = vmatmul.bf16.gmra.mxu0 %v155
      %v181 = vpop.f32.mrf.mxu0
      %v182 = vadd.f32 %v168, %v181
      %v183 = vpop.f32.mrf.mxu0
      %v184 = vadd.f32 %v170, %v183
      %185 = vdwg.mxu0
      %vm186 = vcmask 130048
      %v187 = vsel %vm186, %v182, -inf
      %188 = vmax.xlane.f32.xlu0 %v187
      %v189 = vpop.xlane.xlu0 %188
      %v190 = vsel %vm186, %v184, -inf
      %191 = vmax.xlane.f32.xlu0 %v190
      %v192 = vpop.xlane.xlu0 %191
      %v193 = vsub.f32 %v189, %v182
      %v194 = vsub.f32 %v192, %v184
      %v195 = vsel %vm186, %v193, -inf
      %196 = vmax.xlane.f32.xlu0 %v195
      %v197 = vpop.xlane.xlu0 %196
      %v198 = vsel %vm186, %v194, -inf
      %199 = vmax.xlane.f32.xlu0 %v198
      %v200 = vpop.xlane.xlu0 %199
      %v201 = vsub.f32 %v193, %v197
      %v202 = vsub.f32 %v194, %v200
      %v203 = vmul.f32 %v201, 1.442695
      %v204 = vpow.pop %v203
      %v205 = vmul.f32 %v202, 1.442695
      %v206 = vpow.pop %v205
      %v207 = vsel %vm186, %v204, 0.0
      %208 = vadd.xlane.f32.xlu0 %v207
      %v209 = vpop.xlane.xlu0 %208
      %v210 = vsel %vm186, %v206, 0.0
      %211 = vadd.xlane.f32.xlu0 %v210
      %v212 = vpop.xlane.xlu0 %211
      %v213 = vpack.c.bf16 %v206, %v204
      %v215 = vsel %vm186, %v213, 0
      %217 = vmatpush.bf16.msra.mxu0 0
      %218 = vmatpush.bf16.msra.mxu0 0
      %219 = vmatpush.bf16.msra.mxu0 0
      %220 = vmatpush.bf16.msra.mxu0 0
      %221 = vmatpush.bf16.msra.mxu0 0
      %222 = vmatpush.bf16.msra.mxu0 0
      %223 = vmatpush.bf16.msra.mxu0 0
      %224 = vmatpush.bf16.msra.mxu0 %v154
      %225 = vmatmul.bf16.gmra.mxu0 %v215
      %v226 = vpop.f32.mrf.mxu0
      %v227 = vadd.f32 0.0, %v226
      %v228 = vpop.f32.mrf.mxu0
      %v229 = vadd.f32 0.0, %v228
      %230 = vdwg.mxu0
      %231 = vmatpush.bf16.msra.mxu0 0
      %232 = vmatpush.bf16.msra.mxu0 0
      %233 = vmatpush.bf16.msra.mxu0 0
      %234 = vmatpush.bf16.msra.mxu0 0
      %235 = vmatpush.bf16.msra.mxu0 0
      %236 = vmatpush.bf16.msra.mxu0 0
      %237 = vmatpush.bf16.msra.mxu0 0
      %238 = vmatpush.bf16.msra.mxu0 %v155
      %239 = vmatmul.bf16.gmra.mxu0 %v215
      %v240 = vpop.f32.mrf.mxu0
      %v241 = vadd.f32 0.0, %v240
      %v242 = vpop.f32.mrf.mxu0
      %v243 = vadd.f32 0.0, %v242
      %244 = vdwg.mxu0
      %v245 = vrcp.pop %v209
      %v246 = vrcp.pop %v212
      %v247 = vmul.f32 %v227, %v245
      %v248 = vmul.f32 %v241, %v245
      %v249 = vmul.f32 %v229, %v246
      %v250 = vmul.f32 %v243, %v246
      %s251 = sld [smem:[#allocation2]]
      %v252 = vstv %s251
      %v253 = vmul.f32 %v252, %v247
      %v254 = vmul.f32 %v252, %v248
      %v255 = vmul.f32 %v252, %v249
      %v256 = vmul.f32 %v252, %v250
      %v257 = vunpack.c.l.bf16 %v146
      %v258 = vunpack.c.h.bf16 %v146
      %v259 = vunpack.c.l.bf16 %v147
      %v260 = vunpack.c.h.bf16 %v147
      %v261 = vadd.f32 %v253, %v257
      %v262 = vadd.f32 %v254, %v258
      %v263 = vadd.f32 %v255, %v259
      %v264 = vadd.f32 %v256, %v260
      %v265 = vpack.c.bf16 %v262, %v261
      %v266 = vpack.c.bf16 %v264, %v263
      %267 = vst [vmem:[%s144] sm:$0xff] %v265
      %268 = vst [vmem:[%s144 + $0x8] sm:$0xff] %v266
      %p269 = scmp.lt.s32.totalorder %s14, 1
      %s270 = scalar_select %p269, %s14, 1
      %s271 = smul.addr %s270, 4
      %s272 = smul.addr %s271, 4
      %s273 = scalar_lea.vmem %s2, %s272
      // Predicated region
      $region29: #{danet_head_forward.9} parent=27 // pred_check
        %p274 = pneg %p79
      $region30: #{danet_head_forward.9} parent=27 // pred_check_branch
        %276 = sbr.rel (%p274) target = $region32
      $region31: #{danet_head_forward.9} parent=27 // pred_region
        _
      $region32: #{danet_head_forward.9} parent=27 // pred_fallthru
        _
    $region28: #{danet_head_forward.9} parent=5 // pred_fallthru
      _
    %p277 = scmp.le.s32.totalorder 2, %s9
    // Predicated region
    $region33: #{danet_head_forward.9} parent=5 // pred_check
      %p278 = pneg %p277
    $region34: #{danet_head_forward.9} parent=5 // pred_check_branch
      %280 = sbr.rel (%p278) target = $region36
    $region35: #{danet_head_forward.9} parent=5 // pred_region
      %s281 = ssub.s32 %s9, 2
      // Predicated region
      $region37: #{danet_head_forward.9} parent=35 // pred_check
        %p282 = pneg %p85
      $region38: #{danet_head_forward.9} parent=35 // pred_check_branch
        %284 = sbr.rel (%p282) target = $region40
      $region39: #{danet_head_forward.9} parent=35 // pred_region
        %p285 = scmp.lt.s32.totalorder %s15, 1
        %s286 = scalar_select %p285, %s15, 1
        %s287 = smul.addr %s286, 4
        %s288 = smul.addr %s287, 4
        %s289 = scalar_lea.vmem %s2, %s288
      $region40: #{danet_head_forward.9} parent=35 // pred_fallthru
        _
    $region36: #{danet_head_forward.9} parent=5 // pred_fallthru
      _
  $region6: #{danet_head_forward.9} parent=0 // loop_footer
    %s13 = sadd.s32 1, %s9
  $region7: #{danet_head_forward.9} parent=0 // loop_footer_branch
    %8 = sbr.rel target = $region3
  $region8: #{danet_head_forward.9} parent=0 // loop_exit
    _

// kernel: danet_head_forward.8
$region0: #{danet_head_forward.8}
  #allocation0 [shape = 'u32[]', space=smem, size = 0x4, offset = 0x4, fixed_abs, tag = 'smem constant byte address 0x4 - core index']
  #allocation1 [shape = 'u32[72,128]{1,0:T(1,128)}', space=vmem, size = 0x9000, scoped, tag = 'internal scratch']
  %s0 = inlined_call_operand.vmem [shape: bf16[2,16,256], index: 0, kind: input, shape index: {}]
  %s1 = inlined_call_operand.vmem [shape: bf16[16,144], index: 1, kind: input, shape index: {}]
  %s2 = inlined_call_operand.vmem [shape: f32[3,256], index: 2, kind: input, shape index: {}]
  %s3 = inlined_call_operand.vmem [shape: f32[16,1], index: 3, kind: input, shape index: {}]
  %s4 = inlined_call_operand.vmem [shape: f32[16,1], index: 4, kind: input, shape index: {}]
  %s5 = inlined_call_operand.vmem [shape: bf16[2,16,256], index: 5, kind: output, shape index: {}]
  %s6 = sld [smem:[#allocation0]]
  $region53: #{danet_head_forward.8} parent=0
    _
  %s8 = ssub.s32 1, %s6
  %s9 = scalar_select 0, %s8, %s6
  loop: start=0, step=1, limit=4
  $region2: #{danet_head_forward.8} parent=0 // loop_pre_header
    _
  $region3: #{danet_head_forward.8} parent=0 // loop_header
    %s11 = sphi 0, %s15
    %p12 = scmp.ge.s32.totalorder %s11, 4
    %s21 = sphi 0, %s23
    %s24 = sphi 0, %s21
    %s25 = sphi 0, %s24
    %s41 = sphi 0, %s25
    %s45 = sphi 0, %s45
    %s47 = sphi 0, %s45
    %s48 = sphi 0, %s47
    %s62 = sphi 0, %s48
    %s66 = sphi 0, %s66
    %s68 = sphi 0, %s66
    %s69 = sphi 0, %s68
    %s83 = sphi 0, %s69
    %s87 = sphi 0, %s87
    %s89 = sphi 0, %s87
    %s90 = sphi 0, %s89
    %s104 = sphi 0, %s90
    %s108 = sphi 0, %s108
    %s110 = sphi 0, %s108
    %s111 = sphi 0, %s110
    %s125 = sphi 0, %s111
    %s131 = sphi 0, %s133
    %s134 = sphi 0, %s131
    %s135 = sphi 0, %s134
    %s151 = sphi 0, %s135
  $region4: #{danet_head_forward.8} parent=0 // loop_header_branch
    %14 = sbr.rel (%p12) target = $region8
  $region5: #{danet_head_forward.8} parent=0 // loop_body
    %s16 = ssub.s32 %s11, 1
    %s17 = ssub.s32 %s11, 2
    %s18 = sadd.s32 %s11, 1
    %s19 = ssub.s32 %s11, %s18
    %p20 = scmp.eq.s32.totalorder %s19, 0
    %s22 = sadd.s32 %s21, 1
    %s23 = scalar_select %p20, %s21, %s22
    %p26 = pneg %p20
    %p27 = scmp.eq.s32.totalorder %s11, 1
    %p28 = por %p26, %p27
    %p29 = scmp.ne.s32.totalorder %s21, %s24
    %p30 = scmp.eq.s32.totalorder %s11, 0
    %p31 = por %p29, %p30
    %p32 = scmp.ne.s32.totalorder %s21, %s24
    %p33 = scmp.eq.s32.totalorder %s16, 1
    %p34 = por %p32, %p33
    %p35 = scmp.ne.s32.totalorder %s24, %s25
    %p36 = scmp.eq.s32.totalorder %s16, 0
    %p37 = por %p35, %p36
    %p38 = scmp.ne.s32.totalorder %s24, %s25
    %p39 = scmp.eq.s32.totalorder %s17, 1
    %p40 = por %p38, %p39
    %p42 = scmp.ne.s32.totalorder %s25, %s41
    %p43 = scmp.eq.s32.totalorder %s17, 0
    %p44 = por %p42, %p43
    %s46 = sadd.s32 %s45, 1
    %p49 = scmp.eq.s32.totalorder %s11, 1
    %p50 = scmp.ne.s32.totalorder %s45, %s47
    %p51 = scmp.eq.s32.totalorder %s11, 0
    %p52 = por %p50, %p51
    %p53 = scmp.ne.s32.totalorder %s45, %s47
    %p54 = scmp.eq.s32.totalorder %s16, 1
    %p55 = por %p53, %p54
    %p56 = scmp.ne.s32.totalorder %s47, %s48
    %p57 = scmp.eq.s32.totalorder %s16, 0
    %p58 = por %p56, %p57
    %p59 = scmp.ne.s32.totalorder %s47, %s48
    %p60 = scmp.eq.s32.totalorder %s17, 1
    %p61 = por %p59, %p60
    %p63 = scmp.ne.s32.totalorder %s48, %s62
    %p64 = scmp.eq.s32.totalorder %s17, 0
    %p65 = por %p63, %p64
    %s67 = sadd.s32 %s66, 1
    %p70 = scmp.eq.s32.totalorder %s11, 1
    %p71 = scmp.ne.s32.totalorder %s66, %s68
    %p72 = scmp.eq.s32.totalorder %s11, 0
    %p73 = por %p71, %p72
    %p74 = scmp.ne.s32.totalorder %s66, %s68
    %p75 = scmp.eq.s32.totalorder %s16, 1
    %p76 = por %p74, %p75
    %p77 = scmp.ne.s32.totalorder %s68, %s69
    %p78 = scmp.eq.s32.totalorder %s16, 0
    %p79 = por %p77, %p78
    %p80 = scmp.ne.s32.totalorder %s68, %s69
    %p81 = scmp.eq.s32.totalorder %s17, 1
    %p82 = por %p80, %p81
    %p84 = scmp.ne.s32.totalorder %s69, %s83
    %p85 = scmp.eq.s32.totalorder %s17, 0
    %p86 = por %p84, %p85
    %s88 = sadd.s32 %s87, 1
    %p91 = scmp.eq.s32.totalorder %s11, 1
    %p92 = scmp.ne.s32.totalorder %s87, %s89
    %p93 = scmp.eq.s32.totalorder %s11, 0
    %p94 = por %p92, %p93
    %p95 = scmp.ne.s32.totalorder %s87, %s89
    %p96 = scmp.eq.s32.totalorder %s16, 1
    %p97 = por %p95, %p96
    %p98 = scmp.ne.s32.totalorder %s89, %s90
    %p99 = scmp.eq.s32.totalorder %s16, 0
    %p100 = por %p98, %p99
    %p101 = scmp.ne.s32.totalorder %s89, %s90
    %p102 = scmp.eq.s32.totalorder %s17, 1
    %p103 = por %p101, %p102
    %p105 = scmp.ne.s32.totalorder %s90, %s104
    %p106 = scmp.eq.s32.totalorder %s17, 0
    %p107 = por %p105, %p106
    %s109 = sadd.s32 %s108, 1
    %p112 = scmp.eq.s32.totalorder %s11, 1
    %p113 = scmp.ne.s32.totalorder %s108, %s110
    %p114 = scmp.eq.s32.totalorder %s11, 0
    %p115 = por %p113, %p114
    %p116 = scmp.ne.s32.totalorder %s108, %s110
    %p117 = scmp.eq.s32.totalorder %s16, 1
    %p118 = por %p116, %p117
    %p119 = scmp.ne.s32.totalorder %s110, %s111
    %p120 = scmp.eq.s32.totalorder %s16, 0
    %p121 = por %p119, %p120
    %p122 = scmp.ne.s32.totalorder %s110, %s111
    %p123 = scmp.eq.s32.totalorder %s17, 1
    %p124 = por %p122, %p123
    %p126 = scmp.ne.s32.totalorder %s111, %s125
    %p127 = scmp.eq.s32.totalorder %s17, 0
    %p128 = por %p126, %p127
    %s129 = ssub.s32 %s11, %s18
    %p130 = scmp.eq.s32.totalorder %s129, 0
    %s132 = sadd.s32 %s131, 1
    %s133 = scalar_select %p130, %s131, %s132
    %p136 = pneg %p130
    %p137 = scmp.eq.s32.totalorder %s11, 1
    %p138 = por %p136, %p137
    %p139 = scmp.ne.s32.totalorder %s131, %s134
    %p140 = scmp.eq.s32.totalorder %s11, 0
    %p141 = por %p139, %p140
    %p142 = scmp.ne.s32.totalorder %s131, %s134
    %p143 = scmp.eq.s32.totalorder %s16, 1
    %p144 = por %p142, %p143
    %p145 = scmp.ne.s32.totalorder %s134, %s135
    %p146 = scmp.eq.s32.totalorder %s16, 0
    %p147 = por %p145, %p146
    %p148 = scmp.ne.s32.totalorder %s134, %s135
    %p149 = scmp.eq.s32.totalorder %s17, 1
    %p150 = por %p148, %p149
    %p152 = scmp.ne.s32.totalorder %s135, %s151
    %p153 = scmp.eq.s32.totalorder %s17, 0
    %p154 = por %p152, %p153
    %p155 = scmp.le.s32.totalorder 1, %s11
    %p156 = scmp.lt.s32.totalorder %s11, 3
    %p157 = pnand %p155, %p156
    %p158 = pneg %p157
    // Predicated region
    $region9: #{danet_head_forward.8} parent=5 // pred_check
      _
    $region10: #{danet_head_forward.8} parent=5 // pred_check_branch
      %160 = sbr.rel (%p157) target = $region12
    $region11: #{danet_head_forward.8} parent=5 // pred_region
      %s161 = ssub.s32 %s11, 1
      // Predicated region
      $region13: #{danet_head_forward.8} parent=11 // pred_check
        %p162 = pneg %p58
      $region14: #{danet_head_forward.8} parent=11 // pred_check_branch
        %164 = sbr.rel (%p162) target = $region16
      $region15: #{danet_head_forward.8} parent=11 // pred_region
        _
      $region16: #{danet_head_forward.8} parent=11 // pred_fallthru
        _
      // Predicated region
      $region17: #{danet_head_forward.8} parent=11 // pred_check
        %p165 = pneg %p79
      $region18: #{danet_head_forward.8} parent=11 // pred_check_branch
        %167 = sbr.rel (%p165) target = $region20
      $region19: #{danet_head_forward.8} parent=11 // pred_region
        _
      $region20: #{danet_head_forward.8} parent=11 // pred_fallthru
        _
      // Predicated region
      $region21: #{danet_head_forward.8} parent=11 // pred_check
        %p168 = pneg %p100
      $region22: #{danet_head_forward.8} parent=11 // pred_check_branch
        %170 = sbr.rel (%p168) target = $region24
      $region23: #{danet_head_forward.8} parent=11 // pred_region
        _
      $region24: #{danet_head_forward.8} parent=11 // pred_fallthru
        _
      // Predicated region
      $region25: #{danet_head_forward.8} parent=11 // pred_check
        %p171 = pneg %p121
      $region26: #{danet_head_forward.8} parent=11 // pred_check_branch
        %173 = sbr.rel (%p171) target = $region28
      $region27: #{danet_head_forward.8} parent=11 // pred_region
        _
      $region28: #{danet_head_forward.8} parent=11 // pred_fallthru
        _
    $region12: #{danet_head_forward.8} parent=5 // pred_fallthru
      _
    %p174 = scmp.lt.s32.totalorder %s11, 2
    // Predicated region
    $region29: #{danet_head_forward.8} parent=5 // pred_check
      %p175 = pneg %p174
    $region30: #{danet_head_forward.8} parent=5 // pred_check_branch
      %177 = sbr.rel (%p175) target = $region32
    $region31: #{danet_head_forward.8} parent=5 // pred_region
      // Predicated region
      $region33: #{danet_head_forward.8} parent=31 // pred_check
        %p178 = pneg %p31
      $region34: #{danet_head_forward.8} parent=31 // pred_check_branch
        %180 = sbr.rel (%p178) target = $region36
      $region35: #{danet_head_forward.8} parent=31 // pred_region
        %p181 = scmp.lt.s32.totalorder %s11, 1
        %s182 = scalar_select %p181, %s11, 1
        %s183 = smul.addr %s182, 4
        %s184 = smul.addr %s183, 4
        %s185 = scalar_lea.vmem %s0, %s184
      $region36: #{danet_head_forward.8} parent=31 // pred_fallthru
        _
    $region32: #{danet_head_forward.8} parent=5 // pred_fallthru
      _
    %p186 = scmp.le.s32.totalorder 1, %s11
    %p187 = scmp.lt.s32.totalorder %s11, 3
    %p188 = pnand %p186, %p187
    %p189 = pneg %p188
    // Predicated region
    $region37: #{danet_head_forward.8} parent=5 // pred_check
      _
    $region38: #{danet_head_forward.8} parent=5 // pred_check_branch
      %191 = sbr.rel (%p188) target = $region40
    $region39: #{danet_head_forward.8} parent=5 // pred_region
      %s192 = ssub.s32 %s11, 1
      %p193 = scmp.lt.s32.totalorder %s16, 1
      %s194 = scalar_select %p193, %s16, 1
      %s195 = smul.addr %s194, 4
      %s196 = smul.addr %s195, 4
      %s197 = scalar_lea.vmem %s0, %s196
      %p198 = pneg %p37
      %p199 = pneg %p34
      %p200 = pneg %p58
      %p201 = pneg %p55
      %p202 = pneg %p79
      %p203 = pneg %p76
      %p204 = pneg %p100
      %p205 = pneg %p97
      %p206 = pneg %p121
      %p207 = pneg %p118
      %p208 = pneg %p147
      %p209 = pneg %p144
      %p210 = scmp.lt.s32.totalorder %s16, 1
      %s211 = scalar_select %p210, %s16, 1
      %s212 = smul.addr %s211, 4
      %s213 = smul.addr %s212, 4
      %s214 = scalar_lea.vmem %s5, %s213
      %p215 = scmp.lt.s32.totalorder %s16, 1
      %s216 = scalar_select %p215, %s16, 1
      %s217 = smul.addr %s216, 4
      %s218 = smul.addr %s217, 4
      %s219 = scalar_lea.vmem %s0, %s218
      %p220 = scmp.lt.s32.totalorder %s16, 1
      %s221 = scalar_select %p220, %s16, 1
      %s222 = smul.addr %s221, 4
      %s223 = smul.addr %s222, 4
      %s224 = scalar_lea.vmem %s5, %s223
      %v226 = vld [vmem:[%s219] sm:$0xff]
      %v227 = vld [vmem:[%s219 + $0x8] sm:$0xff]
      %v228 = vld [vmem:[%s2] ss:$4 sm:$0x3]
      %v230 = vperm.slane %v228, 0
      %v231 = vperm.slane %v228, 1
      %v234 = vpack.c.bf16 %v231, %v230
      %s235 = scalar_lea.vmem %s2, 2
      %v236 = vld [vmem:[%s235] ss:$4 sm:$0x3]
      %v238 = vperm.slane %v236, 0
      %v239 = vperm.slane %v236, 1
      %v242 = vpack.c.bf16 %v239, %v238
      %v245 = vunpack.c.l.b16 %v226
      %v246 = vunpack.c.h.b16 %v226
      %v247 = vunpack.c.l.b16 %v227
      %v248 = vunpack.c.h.b16 %v227
      %v249 = vpack.c.b16 %v247, %v245
      %v250 = vpack.c.b16 %v248, %v246
      %251 = vrot.lane.b32.xlu0 %v249, 17
      %v252 = vpop.permute.xlu0 %251
      %253 = vrot.lane.b32.xlu0 %v250, 17
      %v254 = vpop.permute.xlu0 %253
      %vm255 = vcmask 138240
      %v256 = vsel %vm255, %v252, %v254
      %vm258 = vcmask 138240
      %v261 = vsel %vm258, 0, %v252
      %v264 = vsel %vm258, %v254, 0
      %v267 = vunpack.c.l.b16 %v234
      %v268 = vunpack.c.h.b16 %v234
      %v269 = vpack.c.b16 %v267, %v267
      %v270 = vpack.c.b16 %v268, %v268
      %v272 = vpack.i.b16 %v269, %v269
      %v274 = vperm.slane %v272, 0
      %v276 = vpack.i.b16 %v270, %v270
      %v278 = vperm.slane %v276, 0
      %v279 = vunpack.c.l.bf16 %v261
      %v280 = vunpack.c.l.bf16 %v256
      %v281 = vunpack.c.h.bf16 %v261
      %v282 = vunpack.c.h.bf16 %v256
      %v283 = vunpack.c.l.bf16 %v274
      %v284 = vunpack.c.l.bf16 %v278
      %v285 = vmul.f32 %v279, %v283
      %v286 = vmul.f32 %v280, %v284
      %v287 = vmul.f32 %v281, %v283
      %v288 = vmul.f32 %v282, %v284
      %v289 = vpack.c.bf16 %v286, %v285
      %v290 = vpack.c.bf16 %v288, %v287
      %v292 = vunpack.c.l.b16 %v242
      %v293 = vunpack.c.h.b16 %v242
      %v294 = vpack.c.b16 %v292, %v292
      %v295 = vpack.c.b16 %v293, %v293
      %v297 = vpack.i.b16 %v294, %v294
      %v299 = vperm.slane %v297, 0
      %v301 = vpack.i.b16 %v295, %v295
      %v303 = vperm.slane %v301, 0
      %v304 = vunpack.c.l.bf16 %v264
      %v305 = vunpack.c.h.bf16 %v264
      %v306 = vunpack.c.l.bf16 %v299
      %v307 = vunpack.c.l.bf16 %v303
      %310 = vrot.lane.b32.xlu0 %v306, 2
      %v311 = vpop.permute.xlu0 %310
      %312 = vrot.lane.b32.xlu0 %v307, 2
      %v313 = vpop.permute.xlu0 %312
      %vm314 = vcmask 15360
      %v315 = vsel %vm314, %v311, %v313
      %v319 = vmul.f32 %v279, %v311
      %v320 = vmul.f32 %v280, %v315
      %v321 = vmul.f32 %v304, %v313
      %v322 = vmul.f32 %v281, %v311
      %v323 = vmul.f32 %v282, %v315
      %v324 = vmul.f32 %v305, %v313
      %v325 = vpack.c.bf16 %v320, %v319
      %v326 = vpack.c.bf16 %v321, %v321
      %v327 = vpack.c.bf16 %v323, %v322
      %v328 = vpack.c.bf16 %v324, %v324
      %331 = vrot.lane.b32.xlu0 %v283, 16
      %v332 = vpop.permute.xlu0 %331
      %333 = vrot.lane.b32.xlu0 %v284, 16
      %v334 = vpop.permute.xlu0 %333
      %vm335 = vcmask 130048
      %v336 = vsel %vm335, %v332, %v334
      %v340 = vmul.f32 %v279, %v332
      %v341 = vmul.f32 %v280, %v336
      %v342 = vmul.f32 %v304, %v334
      %v343 = vmul.f32 %v281, %v332
      %v344 = vmul.f32 %v282, %v336
      %v345 = vmul.f32 %v305, %v334
      %v346 = vpack.c.bf16 %v341, %v340
      %v347 = vpack.c.bf16 %v342, %v342
      %v348 = vpack.c.bf16 %v344, %v343
      %v349 = vpack.c.bf16 %v345, %v345
      %350 = vrot.lane.b32.xlu0 %v306, 18
      %v351 = vpop.permute.xlu0 %350
      %352 = vrot.lane.b32.xlu0 %v307, 18
      %v353 = vpop.permute.xlu0 %352
      %vm354 = vcmask 146432
      %v355 = vsel %vm354, %v351, %v353
      %v359 = vmul.f32 %v279, %v351
      %v360 = vmul.f32 %v280, %v355
      %v361 = vmul.f32 %v304, %v353
      %v362 = vmul.f32 %v281, %v351
      %v363 = vmul.f32 %v282, %v355
      %v364 = vmul.f32 %v305, %v353
      %v365 = vpack.c.bf16 %v360, %v359
      %v366 = vpack.c.bf16 %v361, %v361
      %v367 = vpack.c.bf16 %v363, %v362
      %v368 = vpack.c.bf16 %v364, %v364
      %369 = vrot.lane.b32.xlu0 %v283, 32
      %v370 = vpop.permute.xlu0 %369
      %371 = vrot.lane.b32.xlu0 %v284, 32
      %v372 = vpop.permute.xlu0 %371
      %vm373 = vcmask 261120
      %v374 = vsel %vm373, %v370, %v372
      %v378 = vmul.f32 %v279, %v370
      %v379 = vmul.f32 %v280, %v374
      %v380 = vmul.f32 %v304, %v372
      %v381 = vmul.f32 %v281, %v370
      %v382 = vmul.f32 %v282, %v374
      %v383 = vmul.f32 %v305, %v372
      %v384 = vpack.c.bf16 %v379, %v378
      %v385 = vpack.c.bf16 %v380, %v380
      %v386 = vpack.c.bf16 %v382, %v381
      %v387 = vpack.c.bf16 %v383, %v383
      %388 = vrot.lane.b32.xlu0 %v306, 34
      %v389 = vpop.permute.xlu0 %388
      %390 = vrot.lane.b32.xlu0 %v307, 34
      %v391 = vpop.permute.xlu0 %390
      %vm392 = vcmask 277504
      %v393 = vsel %vm392, %v389, %v391
      %v397 = vmul.f32 %v279, %v389
      %v398 = vmul.f32 %v280, %v393
      %v399 = vmul.f32 %v304, %v391
      %v400 = vmul.f32 %v281, %v389
      %v401 = vmul.f32 %v282, %v393
      %v402 = vmul.f32 %v305, %v391
      %v403 = vpack.c.bf16 %v398, %v397
      %v404 = vpack.c.bf16 %v399, %v399
      %v405 = vpack.c.bf16 %v401, %v400
      %v406 = vpack.c.bf16 %v402, %v402
      %v409 = vunpack.c.l.b16 %v289
      %v410 = vunpack.c.h.b16 %v289
      %v411 = vunpack.c.l.b16 %v290
      %v412 = vunpack.c.h.b16 %v290
      %v413 = vpack.c.b16 %v411, %v409
      %v414 = vpack.c.b16 %v412, %v410
      %419 = vrot.lane.b32.xlu0 %v261, 127
      %v420 = vpop.permute.xlu0 %419
      %421 = vrot.lane.b32.xlu0 %v256, 127
      %v422 = vpop.permute.xlu0 %421
      %423 = vrot.lane.b32.xlu0 %v264, 127
      %v424 = vpop.permute.xlu0 %423
      %vm425 = vcmask 1039360
      %v426 = vsel %vm425, %v420, %v422
      %v427 = vsel %vm425, %v422, %v424
      %v434 = vunpack.c.l.b16 %v325
      %v435 = vunpack.c.h.b16 %v325
      %v436 = vunpack.c.l.b16 %v326
      %v437 = vunpack.c.l.b16 %v327
      %v438 = vunpack.c.h.b16 %v327
      %v439 = vunpack.c.l.b16 %v328
      %v440 = vpack.c.b16 %v437, %v434
      %v441 = vpack.c.b16 %v438, %v435
      %v442 = vpack.c.b16 %v439, %v436
      %443 = vrot.lane.b32.xlu0 %v440, 126
      %v444 = vpop.permute.xlu0 %443
      %445 = vrot.lane.b32.xlu0 %v441, 126
      %v446 = vpop.permute.xlu0 %445
      %447 = vrot.lane.b32.xlu0 %v442, 126
      %v448 = vpop.permute.xlu0 %447
      %vm449 = vcmask 1031168
      %v450 = vsel %vm449, %v444, %v446
      %v451 = vsel %vm449, %v446, %v448
      %v458 = vunpack.c.l.b16 %v346
      %v459 = vunpack.c.h.b16 %v346
      %v460 = vunpack.c.l.b16 %v347
      %v461 = vunpack.c.l.b16 %v348
      %v462 = vunpack.c.h.b16 %v348
      %v463 = vunpack.c.l.b16 %v349
      %v464 = vpack.c.b16 %v461, %v458
      %v465 = vpack.c.b16 %v462, %v459
      %v466 = vpack.c.b16 %v463, %v460
      %467 = vrot.lane.b32.xlu0 %v464, 112
      %v468 = vpop.permute.xlu0 %467
      %469 = vrot.lane.b32.xlu0 %v465, 112
      %v470 = vpop.permute.xlu0 %469
      %471 = vrot.lane.b32.xlu0 %v466, 112
      %v472 = vpop.permute.xlu0 %471
      %vm473 = vcmask 916480
      %v474 = vsel %vm473, %v468, %v470
      %v475 = vsel %vm473, %v470, %v472
      %478 = vrot.lane.b32.xlu0 %v261, 111
      %v479 = vpop.permute.xlu0 %478
      %480 = vrot.lane.b32.xlu0 %v256, 111
      %v481 = vpop.permute.xlu0 %480
      %482 = vrot.lane.b32.xlu0 %v264, 111
      %v483 = vpop.permute.xlu0 %482
      %vm484 = vcmask 908288
      %v485 = vsel %vm484, %v479, %v481
      %v486 = vsel %vm484, %v481, %v483
      %v493 = vunpack.c.l.b16 %v365
      %v494 = vunpack.c.h.b16 %v365
      %v495 = vunpack.c.l.b16 %v366
      %v496 = vunpack.c.l.b16 %v367
      %v497 = vunpack.c.h.b16 %v367
      %v498 = vunpack.c.l.b16 %v368
      %v499 = vpack.c.b16 %v496, %v493
      %v500 = vpack.c.b16 %v497, %v494
      %v501 = vpack.c.b16 %v498, %v495
      %502 = vrot.lane.b32.xlu0 %v499, 110
      %v503 = vpop.permute.xlu0 %502
      %504 = vrot.lane.b32.xlu0 %v500, 110
      %v505 = vpop.permute.xlu0 %504
      %506 = vrot.lane.b32.xlu0 %v501, 110
      %v507 = vpop.permute.xlu0 %506
      %vm508 = vcmask 900096
      %v509 = vsel %vm508, %v503, %v505
      %v510 = vsel %vm508, %v505, %v507
      %v517 = vunpack.c.l.b16 %v384
      %v518 = vunpack.c.h.b16 %v384
      %v519 = vunpack.c.l.b16 %v385
      %v520 = vunpack.c.l.b16 %v386
      %v521 = vunpack.c.h.b16 %v386
      %v522 = vunpack.c.l.b16 %v387
      %v523 = vpack.c.b16 %v520, %v517
      %v524 = vpack.c.b16 %v521, %v518
      %v525 = vpack.c.b16 %v522, %v519
      %526 = vrot.lane.b32.xlu0 %v523, 96
      %v527 = vpop.permute.xlu0 %526
      %528 = vrot.lane.b32.xlu0 %v524, 96
      %v529 = vpop.permute.xlu0 %528
      %530 = vrot.lane.b32.xlu0 %v525, 96
      %v531 = vpop.permute.xlu0 %530
      %vm532 = vcmask 785408
      %v533 = vsel %vm532, %v527, %v529
      %v534 = vsel %vm532, %v529, %v531
      %537 = vrot.lane.b32.xlu0 %v261, 95
      %v538 = vpop.permute.xlu0 %537
      %539 = vrot.lane.b32.xlu0 %v256, 95
      %v540 = vpop.permute.xlu0 %539
      %541 = vrot.lane.b32.xlu0 %v264, 95
      %v542 = vpop.permute.xlu0 %541
      %vm543 = vcmask 777216
      %v544 = vsel %vm543, %v538, %v540
      %v545 = vsel %vm543, %v540, %v542
      %v552 = vunpack.c.l.b16 %v403
      %v553 = vunpack.c.h.b16 %v403
      %v554 = vunpack.c.l.b16 %v404
      %v555 = vunpack.c.l.b16 %v405
      %v556 = vunpack.c.h.b16 %v405
      %v557 = vunpack.c.l.b16 %v406
      %v558 = vpack.c.b16 %v555, %v552
      %v559 = vpack.c.b16 %v556, %v553
      %v560 = vpack.c.b16 %v557, %v554
      %561 = vrot.lane.b32.xlu0 %v558, 94
      %v562 = vpop.permute.xlu0 %561
      %563 = vrot.lane.b32.xlu0 %v559, 94
      %v564 = vpop.permute.xlu0 %563
      %565 = vrot.lane.b32.xlu0 %v560, 94
      %v566 = vpop.permute.xlu0 %565
      %vm567 = vcmask 769024
      %v568 = vsel %vm567, %v562, %v564
      %v569 = vsel %vm567, %v564, %v566
      %v572 = vld [vmem:[%s1] sm:$0xff]
      %v573 = vld [vmem:[%s1 + $0x8] sm:$0xff]
      %v576 = vunpack.c.l.b16 %v572
      %v577 = vunpack.c.h.b16 %v572
      %v578 = vunpack.c.l.b16 %v573
      %v579 = vunpack.c.h.b16 %v573
      %v580 = vpack.c.b16 %v578, %v576
      %v581 = vpack.c.b16 %v579, %v577
      %v584 = vsel %vm335, %v581, 0
      %586 = vmatpush.bf16.msra.mxu0 %v544
      %587 = vmatpush.bf16.msra.mxu0 %v533
      %588 = vmatpush.bf16.msra.mxu0 %v509
      %589 = vmatpush.bf16.msra.mxu0 %v485
      %590 = vmatpush.bf16.msra.mxu0 %v474
      %591 = vmatpush.bf16.msra.mxu0 %v450
      %592 = vmatpush.bf16.msra.mxu0 %v426
      %593 = vmatpush.bf16.msra.mxu0 %v413
      %594 = vmatmul.bf16.gmra.mxu0 %v580
      %v595 = vpop.f32.mrf.mxu0
      %v596 = vadd.f32 0.0, %v595
      %v597 = vpop.f32.mrf.mxu0
      %v598 = vadd.f32 0.0, %v597
      %599 = vdwg.mxu0
      %600 = vmatpush.bf16.msra.mxu0 0
      %601 = vmatpush.bf16.msra.mxu0 0
      %602 = vmatpush.bf16.msra.mxu0 0
      %603 = vmatpush.bf16.msra.mxu0 0
      %604 = vmatpush.bf16.msra.mxu0 0
      %605 = vmatpush.bf16.msra.mxu0 0
      %606 = vmatpush.bf16.msra.mxu0 0
      %607 = vmatpush.bf16.msra.mxu0 %v568
      %608 = vmatmul.bf16.gmra.mxu0 %v584
      %v609 = vpop.f32.mrf.mxu0
      %v610 = vadd.f32 %v596, %v609
      %v611 = vpop.f32.mrf.mxu0
      %v612 = vadd.f32 %v598, %v611
      %613 = vdwg.mxu0
      %614 = vmatpush.bf16.msra.mxu0 %v545
      %615 = vmatpush.bf16.msra.mxu0 %v534
      %616 = vmatpush.bf16.msra.mxu0 %v510
      %617 = vmatpush.bf16.msra.mxu0 %v486
      %618 = vmatpush.bf16.msra.mxu0 %v475
      %619 = vmatpush.bf16.msra.mxu0 %v451
      %620 = vmatpush.bf16.msra.mxu0 %v427
      %621 = vmatpush.bf16.msra.mxu0 %v414
      %622 = vmatmul.bf16.gmra.mxu0 %v580
      %v623 = vpop.f32.mrf.mxu0
      %v624 = vadd.f32 0.0, %v623
      %v625 = vpop.f32.mrf.mxu0
      %v626 = vadd.f32 0.0, %v625
      %627 = vdwg.mxu0
      %628 = vmatpush.bf16.msra.mxu0 0
      %629 = vmatpush.bf16.msra.mxu0 0
      %630 = vmatpush.bf16.msra.mxu0 0
      %631 = vmatpush.bf16.msra.mxu0 0
      %632 = vmatpush.bf16.msra.mxu0 0
      %633 = vmatpush.bf16.msra.mxu0 0
      %634 = vmatpush.bf16.msra.mxu0 0
      %635 = vmatpush.bf16.msra.mxu0 %v569
      %636 = vmatmul.bf16.gmra.mxu0 %v584
      %v637 = vpop.f32.mrf.mxu0
      %v638 = vadd.f32 %v624, %v637
      %v639 = vpop.f32.mrf.mxu0
      %v640 = vadd.f32 %v626, %v639
      %641 = vdwg.mxu0
      %v642 = vld [vmem:[%s3] sm:$0xff]
      %v643 = vld [vmem:[%s3 + $0x8] sm:$0xff]
      %645 = vset.pattern.permute.xlu0 0
      %646 = vperm.xlu0 %645, %v642
      %v647 = vpop.permute.xlu0 %646
      %650 = vset.pattern.permute.xlu0 0
      %651 = vperm.xlu0 %650, %v643
      %v652 = vpop.permute.xlu0 %651
      %v654 = vmul.f32 %v610, %v647
      %v655 = vmul.f32 %v638, %v647
      %v656 = vmul.f32 %v612, %v652
      %v657 = vmul.f32 %v640, %v652
      %v658 = vld [vmem:[%s4] sm:$0xff]
      %v659 = vld [vmem:[%s4 + $0x8] sm:$0xff]
      %661 = vset.pattern.permute.xlu0 0
      %662 = vperm.xlu0 %661, %v658
      %v663 = vpop.permute.xlu0 %662
      %666 = vset.pattern.permute.xlu0 0
      %667 = vperm.xlu0 %666, %v659
      %v668 = vpop.permute.xlu0 %667
      %v670 = vadd.f32 %v654, %v663
      %v671 = vadd.f32 %v655, %v663
      %v672 = vadd.f32 %v656, %v668
      %v673 = vadd.f32 %v657, %v668
      %v674 = vmax.f32 %v670, 0.0
      %v675 = vmax.f32 %v671, 0.0
      %v676 = vmax.f32 %v672, 0.0
      %v677 = vmax.f32 %v673, 0.0
      %v678 = vpack.c.bf16 %v675, %v674
      %v679 = vpack.c.bf16 %v677, %v676
      %680 = vst [vmem:[%s224] sm:$0xff] %v678
      %681 = vst [vmem:[%s224 + $0x8] sm:$0xff] %v679
      %p682 = scmp.lt.s32.totalorder %s16, 1
      %s683 = scalar_select %p682, %s16, 1
      %s684 = smul.addr %s683, 4
      %s685 = smul.addr %s684, 4
      %s686 = scalar_lea.vmem %s5, %s685
      // Predicated region
      $region41: #{danet_head_forward.8} parent=39 // pred_check
        %p687 = pneg %p144
      $region42: #{danet_head_forward.8} parent=39 // pred_check_branch
        %689 = sbr.rel (%p687) target = $region44
      $region43: #{danet_head_forward.8} parent=39 // pred_region
        _
      $region44: #{danet_head_forward.8} parent=39 // pred_fallthru
        _
    $region40: #{danet_head_forward.8} parent=5 // pred_fallthru
      _
    %p690 = scmp.le.s32.totalorder 2, %s11
    // Predicated region
    $region45: #{danet_head_forward.8} parent=5 // pred_check
      %p691 = pneg %p690
    $region46: #{danet_head_forward.8} parent=5 // pred_check_branch
      %693 = sbr.rel (%p691) target = $region48
    $region47: #{danet_head_forward.8} parent=5 // pred_region
      %s694 = ssub.s32 %s11, 2
      // Predicated region
      $region49: #{danet_head_forward.8} parent=47 // pred_check
        %p695 = pneg %p150
      $region50: #{danet_head_forward.8} parent=47 // pred_check_branch
        %697 = sbr.rel (%p695) target = $region52
      $region51: #{danet_head_forward.8} parent=47 // pred_region
        %p698 = scmp.lt.s32.totalorder %s17, 1
        %s699 = scalar_select %p698, %s17, 1
        %s700 = smul.addr %s699, 4
        %s701 = smul.addr %s700, 4
        %s702 = scalar_lea.vmem %s5, %s701
      $region52: #{danet_head_forward.8} parent=47 // pred_fallthru
        _
    $region48: #{danet_head_forward.8} parent=5 // pred_fallthru
      _
  $region6: #{danet_head_forward.8} parent=0 // loop_footer
    %s15 = sadd.s32 1, %s11
  $region7: #{danet_head_forward.8} parent=0 // loop_footer_branch
    %10 = sbr.rel target = $region3
  $region8: #{danet_head_forward.8} parent=0 // loop_exit
    _

// kernel: danet_head_forward.7
$region0: #{danet_head_forward.7}
  #allocation0 [shape = 'u32[]', space=smem, size = 0x4, offset = 0x4, fixed_abs, tag = 'smem constant byte address 0x4 - core index']
  #allocation1 [shape = 'u32[72,128]{1,0:T(1,128)}', space=vmem, size = 0x9000, scoped, tag = 'internal scratch']
  #allocation2 [shape = 'f32[1]{0:T(128)S(6)}', space=smem, size = 0x200, scoped, tag = 'scoped memory for danet_head_forward.7']
  %s0 = inlined_call_operand.vmem [shape: bf16[2,16,256], index: 0, kind: input, shape index: {}]
  %s1 = inlined_call_operand.vmem [shape: bf16[32,16], index: 1, kind: input, shape index: {}]
  %s2 = inlined_call_operand.vmem [shape: f32[32,1], index: 2, kind: input, shape index: {}]
  %s3 = inlined_call_operand.<no memory space> [shape: f32[1], index: 3, kind: input, shape index: {}]
  %s4 = inlined_call_operand.vmem [shape: bf16[2,16,256], index: 4, kind: output, shape index: {}]
  %s5 = sld [smem:[#allocation0]]
  $region49: #{danet_head_forward.7} parent=0
    _
  %s7 = ssub.s32 1, %s5
  %s8 = scalar_select 0, %s7, %s5
  %9 = sst [smem:[#allocation2]] %s3
  loop: start=0, step=1, limit=4
  $region2: #{danet_head_forward.7} parent=0 // loop_pre_header
    _
  $region3: #{danet_head_forward.7} parent=0 // loop_header
    %s11 = sphi 0, %s15
    %p12 = scmp.ge.s32.totalorder %s11, 4
    %s21 = sphi 0, %s23
    %s24 = sphi 0, %s21
    %s25 = sphi 0, %s24
    %s41 = sphi 0, %s25
    %s45 = sphi 0, %s45
    %s47 = sphi 0, %s45
    %s48 = sphi 0, %s47
    %s62 = sphi 0, %s48
    %s66 = sphi 0, %s66
    %s68 = sphi 0, %s66
    %s69 = sphi 0, %s68
    %s83 = sphi 0, %s69
    %s87 = sphi 0, %s87
    %s89 = sphi 0, %s87
    %s90 = sphi 0, %s89
    %s104 = sphi 0, %s90
    %s110 = sphi 0, %s112
    %s113 = sphi 0, %s110
    %s114 = sphi 0, %s113
    %s130 = sphi 0, %s114
  $region4: #{danet_head_forward.7} parent=0 // loop_header_branch
    %14 = sbr.rel (%p12) target = $region8
  $region5: #{danet_head_forward.7} parent=0 // loop_body
    %s16 = ssub.s32 %s11, 1
    %s17 = ssub.s32 %s11, 2
    %s18 = sadd.s32 %s11, 1
    %s19 = ssub.s32 %s11, %s18
    %p20 = scmp.eq.s32.totalorder %s19, 0
    %s22 = sadd.s32 %s21, 1
    %s23 = scalar_select %p20, %s21, %s22
    %p26 = pneg %p20
    %p27 = scmp.eq.s32.totalorder %s11, 1
    %p28 = por %p26, %p27
    %p29 = scmp.ne.s32.totalorder %s21, %s24
    %p30 = scmp.eq.s32.totalorder %s11, 0
    %p31 = por %p29, %p30
    %p32 = scmp.ne.s32.totalorder %s21, %s24
    %p33 = scmp.eq.s32.totalorder %s16, 1
    %p34 = por %p32, %p33
    %p35 = scmp.ne.s32.totalorder %s24, %s25
    %p36 = scmp.eq.s32.totalorder %s16, 0
    %p37 = por %p35, %p36
    %p38 = scmp.ne.s32.totalorder %s24, %s25
    %p39 = scmp.eq.s32.totalorder %s17, 1
    %p40 = por %p38, %p39
    %p42 = scmp.ne.s32.totalorder %s25, %s41
    %p43 = scmp.eq.s32.totalorder %s17, 0
    %p44 = por %p42, %p43
    %s46 = sadd.s32 %s45, 1
    %p49 = scmp.eq.s32.totalorder %s11, 1
    %p50 = scmp.ne.s32.totalorder %s45, %s47
    %p51 = scmp.eq.s32.totalorder %s11, 0
    %p52 = por %p50, %p51
    %p53 = scmp.ne.s32.totalorder %s45, %s47
    %p54 = scmp.eq.s32.totalorder %s16, 1
    %p55 = por %p53, %p54
    %p56 = scmp.ne.s32.totalorder %s47, %s48
    %p57 = scmp.eq.s32.totalorder %s16, 0
    %p58 = por %p56, %p57
    %p59 = scmp.ne.s32.totalorder %s47, %s48
    %p60 = scmp.eq.s32.totalorder %s17, 1
    %p61 = por %p59, %p60
    %p63 = scmp.ne.s32.totalorder %s48, %s62
    %p64 = scmp.eq.s32.totalorder %s17, 0
    %p65 = por %p63, %p64
    %s67 = sadd.s32 %s66, 1
    %p70 = scmp.eq.s32.totalorder %s11, 1
    %p71 = scmp.ne.s32.totalorder %s66, %s68
    %p72 = scmp.eq.s32.totalorder %s11, 0
    %p73 = por %p71, %p72
    %p74 = scmp.ne.s32.totalorder %s66, %s68
    %p75 = scmp.eq.s32.totalorder %s16, 1
    %p76 = por %p74, %p75
    %p77 = scmp.ne.s32.totalorder %s68, %s69
    %p78 = scmp.eq.s32.totalorder %s16, 0
    %p79 = por %p77, %p78
    %p80 = scmp.ne.s32.totalorder %s68, %s69
    %p81 = scmp.eq.s32.totalorder %s17, 1
    %p82 = por %p80, %p81
    %p84 = scmp.ne.s32.totalorder %s69, %s83
    %p85 = scmp.eq.s32.totalorder %s17, 0
    %p86 = por %p84, %p85
    %s88 = sadd.s32 %s87, 1
    %p91 = scmp.eq.s32.totalorder %s11, 1
    %p92 = scmp.ne.s32.totalorder %s87, %s89
    %p93 = scmp.eq.s32.totalorder %s11, 0
    %p94 = por %p92, %p93
    %p95 = scmp.ne.s32.totalorder %s87, %s89
    %p96 = scmp.eq.s32.totalorder %s16, 1
    %p97 = por %p95, %p96
    %p98 = scmp.ne.s32.totalorder %s89, %s90
    %p99 = scmp.eq.s32.totalorder %s16, 0
    %p100 = por %p98, %p99
    %p101 = scmp.ne.s32.totalorder %s89, %s90
    %p102 = scmp.eq.s32.totalorder %s17, 1
    %p103 = por %p101, %p102
    %p105 = scmp.ne.s32.totalorder %s90, %s104
    %p106 = scmp.eq.s32.totalorder %s17, 0
    %p107 = por %p105, %p106
    %s108 = ssub.s32 %s11, %s18
    %p109 = scmp.eq.s32.totalorder %s108, 0
    %s111 = sadd.s32 %s110, 1
    %s112 = scalar_select %p109, %s110, %s111
    %p115 = pneg %p109
    %p116 = scmp.eq.s32.totalorder %s11, 1
    %p117 = por %p115, %p116
    %p118 = scmp.ne.s32.totalorder %s110, %s113
    %p119 = scmp.eq.s32.totalorder %s11, 0
    %p120 = por %p118, %p119
    %p121 = scmp.ne.s32.totalorder %s110, %s113
    %p122 = scmp.eq.s32.totalorder %s16, 1
    %p123 = por %p121, %p122
    %p124 = scmp.ne.s32.totalorder %s113, %s114
    %p125 = scmp.eq.s32.totalorder %s16, 0
    %p126 = por %p124, %p125
    %p127 = scmp.ne.s32.totalorder %s113, %s114
    %p128 = scmp.eq.s32.totalorder %s17, 1
    %p129 = por %p127, %p128
    %p131 = scmp.ne.s32.totalorder %s114, %s130
    %p132 = scmp.eq.s32.totalorder %s17, 0
    %p133 = por %p131, %p132
    %p134 = scmp.le.s32.totalorder 1, %s11
    %p135 = scmp.lt.s32.totalorder %s11, 3
    %p136 = pnand %p134, %p135
    %p137 = pneg %p136
    // Predicated region
    $region9: #{danet_head_forward.7} parent=5 // pred_check
      _
    $region10: #{danet_head_forward.7} parent=5 // pred_check_branch
      %139 = sbr.rel (%p136) target = $region12
    $region11: #{danet_head_forward.7} parent=5 // pred_region
      %s140 = ssub.s32 %s11, 1
      // Predicated region
      $region13: #{danet_head_forward.7} parent=11 // pred_check
        %p141 = pneg %p58
      $region14: #{danet_head_forward.7} parent=11 // pred_check_branch
        %143 = sbr.rel (%p141) target = $region16
      $region15: #{danet_head_forward.7} parent=11 // pred_region
        _
      $region16: #{danet_head_forward.7} parent=11 // pred_fallthru
        _
      // Predicated region
      $region17: #{danet_head_forward.7} parent=11 // pred_check
        %p144 = pneg %p79
      $region18: #{danet_head_forward.7} parent=11 // pred_check_branch
        %146 = sbr.rel (%p144) target = $region20
      $region19: #{danet_head_forward.7} parent=11 // pred_region
        _
      $region20: #{danet_head_forward.7} parent=11 // pred_fallthru
        _
      // Predicated region
      $region21: #{danet_head_forward.7} parent=11 // pred_check
        %p147 = pneg %p100
      $region22: #{danet_head_forward.7} parent=11 // pred_check_branch
        %149 = sbr.rel (%p147) target = $region24
      $region23: #{danet_head_forward.7} parent=11 // pred_region
        _
      $region24: #{danet_head_forward.7} parent=11 // pred_fallthru
        _
    $region12: #{danet_head_forward.7} parent=5 // pred_fallthru
      _
    %p150 = scmp.lt.s32.totalorder %s11, 2
    // Predicated region
    $region25: #{danet_head_forward.7} parent=5 // pred_check
      %p151 = pneg %p150
    $region26: #{danet_head_forward.7} parent=5 // pred_check_branch
      %153 = sbr.rel (%p151) target = $region28
    $region27: #{danet_head_forward.7} parent=5 // pred_region
      // Predicated region
      $region29: #{danet_head_forward.7} parent=27 // pred_check
        %p154 = pneg %p31
      $region30: #{danet_head_forward.7} parent=27 // pred_check_branch
        %156 = sbr.rel (%p154) target = $region32
      $region31: #{danet_head_forward.7} parent=27 // pred_region
        %p157 = scmp.lt.s32.totalorder %s11, 1
        %s158 = scalar_select %p157, %s11, 1
        %s159 = smul.addr %s158, 4
        %s160 = smul.addr %s159, 4
        %s161 = scalar_lea.vmem %s0, %s160
      $region32: #{danet_head_forward.7} parent=27 // pred_fallthru
        _
    $region28: #{danet_head_forward.7} parent=5 // pred_fallthru
      _
    %p162 = scmp.le.s32.totalorder 1, %s11
    %p163 = scmp.lt.s32.totalorder %s11, 3
    %p164 = pnand %p162, %p163
    %p165 = pneg %p164
    // Predicated region
    $region33: #{danet_head_forward.7} parent=5 // pred_check
      _
    $region34: #{danet_head_forward.7} parent=5 // pred_check_branch
      %167 = sbr.rel (%p164) target = $region36
    $region35: #{danet_head_forward.7} parent=5 // pred_region
      %s168 = ssub.s32 %s11, 1
      %p169 = scmp.lt.s32.totalorder %s16, 1
      %s170 = scalar_select %p169, %s16, 1
      %s171 = smul.addr %s170, 4
      %s172 = smul.addr %s171, 4
      %s173 = scalar_lea.vmem %s0, %s172
      %p174 = pneg %p37
      %p175 = pneg %p34
      %p176 = pneg %p58
      %p177 = pneg %p55
      %p178 = pneg %p79
      %p179 = pneg %p76
      %p180 = pneg %p100
      %p181 = pneg %p97
      %p182 = pneg %p126
      %p183 = pneg %p123
      %p184 = scmp.lt.s32.totalorder %s16, 1
      %s185 = scalar_select %p184, %s16, 1
      %s186 = smul.addr %s185, 4
      %s187 = smul.addr %s186, 4
      %s188 = scalar_lea.vmem %s4, %s187
      %p189 = scmp.lt.s32.totalorder %s16, 1
      %s190 = scalar_select %p189, %s16, 1
      %s191 = smul.addr %s190, 4
      %s192 = smul.addr %s191, 4
      %s193 = scalar_lea.vmem %s0, %s192
      %p194 = scmp.lt.s32.totalorder %s16, 1
      %s195 = scalar_select %p194, %s16, 1
      %s196 = smul.addr %s195, 4
      %s197 = smul.addr %s196, 4
      %s198 = scalar_lea.vmem %s4, %s197
      %v200 = vld [vmem:[%s193] sm:$0xff]
      %v201 = vld [vmem:[%s193 + $0x8] sm:$0xff]
      %v202 = vld [vmem:[%s1] sm:$0xf]
      %v203 = vld [vmem:[%s1 + $0x4] sm:$0xf]
      %v204 = vld [vmem:[%s1 + $0x8] sm:$0xf]
      %v205 = vld [vmem:[%s1 + $0xc] sm:$0xf]
      %v206 = vld [vmem:[%s2] sm:$0xff]
      %v207 = vld [vmem:[%s2 + $0x8] sm:$0xff]
      %v208 = vld [vmem:[%s2 + $0x10] sm:$0xff]
      %v209 = vld [vmem:[%s2 + $0x18] sm:$0xff]
      %211 = vset.pattern.permute.xlu0 0
      %212 = vperm.xlu0 %211, %v206
      %v213 = vpop.permute.xlu0 %212
      %216 = vset.pattern.permute.xlu0 0
      %217 = vperm.xlu0 %216, %v207
      %v218 = vpop.permute.xlu0 %217
      %221 = vset.pattern.permute.xlu0 0
      %222 = vperm.xlu0 %221, %v208
      %v223 = vpop.permute.xlu0 %222
      %226 = vset.pattern.permute.xlu0 0
      %227 = vperm.xlu0 %226, %v209
      %v228 = vpop.permute.xlu0 %227
      %v234 = vunpack.c.l.b16 %v202
      %v235 = vunpack.c.l.b16 %v203
      %v236 = vunpack.c.l.b16 %v204
      %v237 = vunpack.c.l.b16 %v205
      %v238 = vpack.c.b16 %v235, %v234
      %v239 = vpack.c.b16 %v237, %v236
      %v242 = vunpack.c.l.b16 %v200
      %v243 = vunpack.c.h.b16 %v200
      %v244 = vunpack.c.l.b16 %v201
      %v245 = vunpack.c.h.b16 %v201
      %v246 = vpack.c.b16 %v244, %v242
      %v247 = vpack.c.b16 %v245, %v243
      %vm250 = vcmask 130048
      %v252 = vsel %vm250, %v238, 0
      %v255 = vsel %vm250, %v239, 0
      %257 = vmatpush.bf16.msra.mxu0 0
      %258 = vmatpush.bf16.msra.mxu0 0
      %259 = vmatpush.bf16.msra.mxu0 0
      %260 = vmatpush.bf16.msra.mxu0 0
      %261 = vmatpush.bf16.msra.mxu0 0
      %262 = vmatpush.bf16.msra.mxu0 0
      %263 = vmatpush.bf16.msra.mxu0 0
      %264 = vmatpush.bf16.msra.mxu0 %v246
      %265 = vmatmul.bf16.gmra.mxu0 %v252
      %v266 = vpop.f32.mrf.mxu0
      %v267 = vadd.f32 %v213, %v266
      %v268 = vpop.f32.mrf.mxu0
      %v269 = vadd.f32 %v218, %v268
      %270 = vmatmul.bf16.gmra.mxu0 %v255
      %v271 = vpop.f32.mrf.mxu0
      %v272 = vadd.f32 %v223, %v271
      %v273 = vpop.f32.mrf.mxu0
      %v274 = vadd.f32 %v228, %v273
      %275 = vdwg.mxu0
      %276 = vmatpush.bf16.msra.mxu0 0
      %277 = vmatpush.bf16.msra.mxu0 0
      %278 = vmatpush.bf16.msra.mxu0 0
      %279 = vmatpush.bf16.msra.mxu0 0
      %280 = vmatpush.bf16.msra.mxu0 0
      %281 = vmatpush.bf16.msra.mxu0 0
      %282 = vmatpush.bf16.msra.mxu0 0
      %283 = vmatpush.bf16.msra.mxu0 %v247
      %284 = vmatmul.bf16.gmra.mxu0 %v252
      %v285 = vpop.f32.mrf.mxu0
      %v286 = vadd.f32 %v213, %v285
      %v287 = vpop.f32.mrf.mxu0
      %v288 = vadd.f32 %v218, %v287
      %289 = vmatmul.bf16.gmra.mxu0 %v255
      %v290 = vpop.f32.mrf.mxu0
      %v291 = vadd.f32 %v223, %v290
      %v292 = vpop.f32.mrf.mxu0
      %v293 = vadd.f32 %v228, %v292
      %294 = vdwg.mxu0
      %v295 = vpack.c.bf16 %v286, %v267
      %v296 = vpack.c.bf16 %v288, %v269
      %v297 = vpack.c.bf16 %v291, %v272
      %v298 = vpack.c.bf16 %v293, %v274
      %v300 = vunpack.c.l.b16 %v296
      %v301 = vunpack.c.h.b16 %v296
      %v302 = vpack.c.b16 %v300, %v300
      %v303 = vpack.c.b16 %v301, %v301
      %306 = vxpose.binary.xlu0.c.b16.start [1/16] %v303, %v302, 128
      %307 = vxpose.binary.xlu0.c.b16.cont [2/16] 0, 0, 128
      %308 = vxpose.binary.xlu0.c.b16.cont [3/16] 0, 0, 128
      %309 = vxpose.binary.xlu0.c.b16.cont [4/16] 0, 0, 128
      %310 = vxpose.binary.xlu0.c.b16.cont [5/16] 0, 0, 128
      %311 = vxpose.binary.xlu0.c.b16.cont [6/16] 0, 0, 128
      %312 = vxpose.binary.xlu0.c.b16.cont [7/16] 0, 0, 128
      %313 = vxpose.binary.xlu0.c.b16.end [8/16] 0, 0, 128
      %v314 = vpop.trf.xlu0
      %v315 = vpop.trf.xlu0
      %v316 = vpop.trf.xlu0
      %v317 = vpop.trf.xlu0
      %v318 = vpop.trf.xlu0
      %v319 = vpop.trf.xlu0
      %v320 = vpop.trf.xlu0
      %v321 = vpop.trf.xlu0
      %v322 = vpop.trf.xlu0
      %v323 = vpop.trf.xlu0
      %v324 = vpop.trf.xlu0
      %v325 = vpop.trf.xlu0
      %v326 = vpop.trf.xlu0
      %v327 = vpop.trf.xlu0
      %v328 = vpop.trf.xlu0
      %v329 = vpop.trf.xlu0
      %v331 = vunpack.c.l.b16 %v295
      %v332 = vunpack.c.h.b16 %v295
      %v333 = vpack.c.b16 %v331, %v331
      %v334 = vpack.c.b16 %v332, %v332
      %vm335 = vcmask 64512
      %v337 = vsel %vm335, %v314, 0
      %v340 = vsel %vm335, %v316, 0
      %v343 = vsel %vm335, %v318, 0
      %v346 = vsel %vm335, %v320, 0
      %v349 = vsel %vm335, %v322, 0
      %v352 = vsel %vm335, %v324, 0
      %v355 = vsel %vm335, %v326, 0
      %v358 = vsel %vm335, %v328, 0
      %v361 = vsel %vm335, %v315, 0
      %v364 = vsel %vm335, %v317, 0
      %v367 = vsel %vm335, %v319, 0
      %v370 = vsel %vm335, %v321, 0
      %v373 = vsel %vm335, %v323, 0
      %v376 = vsel %vm335, %v325, 0
      %v379 = vsel %vm335, %v327, 0
      %v382 = vsel %vm335, %v329, 0
      %vm384 = vcmask 1043456
      %v386 = vsel %vm384, %v333, 0
      %v389 = vsel %vm384, %v334, 0
      %391 = vmatpush.bf16.msra.mxu0 0
      %392 = vmatpush.bf16.msra.mxu0 0
      %393 = vmatpush.bf16.msra.mxu0 0
      %394 = vmatpush.bf16.msra.mxu0 0
      %395 = vmatpush.bf16.msra.mxu0 0
      %396 = vmatpush.bf16.msra.mxu0 0
      %397 = vmatpush.bf16.msra.mxu0 0
      %398 = vmatpush.bf16.msra.mxu0 %v386
      %399 = vmatmul.bf16.gmra.mxu0 %v337
      %v400 = vpop.f32.mrf.mxu0
      %v401 = vadd.f32 0.0, %v400
      %v402 = vpop.f32.mrf.mxu0
      %v403 = vadd.f32 0.0, %v402
      %404 = vmatmul.bf16.gmra.mxu0 %v340
      %v405 = vpop.f32.mrf.mxu0
      %v406 = vadd.f32 0.0, %v405
      %v407 = vpop.f32.mrf.mxu0
      %v408 = vadd.f32 0.0, %v407
      %409 = vmatmul.bf16.gmra.mxu0 %v343
      %v410 = vpop.f32.mrf.mxu0
      %v411 = vadd.f32 0.0, %v410
      %v412 = vpop.f32.mrf.mxu0
      %v413 = vadd.f32 0.0, %v412
      %414 = vmatmul.bf16.gmra.mxu0 %v346
      %v415 = vpop.f32.mrf.mxu0
      %v416 = vadd.f32 0.0, %v415
      %v417 = vpop.f32.mrf.mxu0
      %v418 = vadd.f32 0.0, %v417
      %419 = vmatmul.bf16.gmra.mxu0 %v349
      %v420 = vpop.f32.mrf.mxu0
      %v421 = vadd.f32 0.0, %v420
      %v422 = vpop.f32.mrf.mxu0
      %v423 = vadd.f32 0.0, %v422
      %424 = vmatmul.bf16.gmra.mxu0 %v352
      %v425 = vpop.f32.mrf.mxu0
      %v426 = vadd.f32 0.0, %v425
      %v427 = vpop.f32.mrf.mxu0
      %v428 = vadd.f32 0.0, %v427
      %429 = vmatmul.bf16.gmra.mxu0 %v355
      %v430 = vpop.f32.mrf.mxu0
      %v431 = vadd.f32 0.0, %v430
      %v432 = vpop.f32.mrf.mxu0
      %v433 = vadd.f32 0.0, %v432
      %434 = vmatmul.bf16.gmra.mxu0 %v358
      %v435 = vpop.f32.mrf.mxu0
      %v436 = vadd.f32 0.0, %v435
      %v437 = vpop.f32.mrf.mxu0
      %v438 = vadd.f32 0.0, %v437
      %439 = vmatmul.bf16.gmra.mxu0 %v361
      %v440 = vpop.f32.mrf.mxu0
      %v441 = vadd.f32 0.0, %v440
      %v442 = vpop.f32.mrf.mxu0
      %v443 = vadd.f32 0.0, %v442
      %444 = vmatmul.bf16.gmra.mxu0 %v364
      %v445 = vpop.f32.mrf.mxu0
      %v446 = vadd.f32 0.0, %v445
      %v447 = vpop.f32.mrf.mxu0
      %v448 = vadd.f32 0.0, %v447
      %449 = vmatmul.bf16.gmra.mxu0 %v367
      %v450 = vpop.f32.mrf.mxu0
      %v451 = vadd.f32 0.0, %v450
      %v452 = vpop.f32.mrf.mxu0
      %v453 = vadd.f32 0.0, %v452
      %454 = vmatmul.bf16.gmra.mxu0 %v370
      %v455 = vpop.f32.mrf.mxu0
      %v456 = vadd.f32 0.0, %v455
      %v457 = vpop.f32.mrf.mxu0
      %v458 = vadd.f32 0.0, %v457
      %459 = vmatmul.bf16.gmra.mxu0 %v373
      %v460 = vpop.f32.mrf.mxu0
      %v461 = vadd.f32 0.0, %v460
      %v462 = vpop.f32.mrf.mxu0
      %v463 = vadd.f32 0.0, %v462
      %464 = vmatmul.bf16.gmra.mxu0 %v376
      %v465 = vpop.f32.mrf.mxu0
      %v466 = vadd.f32 0.0, %v465
      %v467 = vpop.f32.mrf.mxu0
      %v468 = vadd.f32 0.0, %v467
      %469 = vmatmul.bf16.gmra.mxu0 %v379
      %v470 = vpop.f32.mrf.mxu0
      %v471 = vadd.f32 0.0, %v470
      %v472 = vpop.f32.mrf.mxu0
      %v473 = vadd.f32 0.0, %v472
      %474 = vmatmul.bf16.gmra.mxu0 %v382
      %v475 = vpop.f32.mrf.mxu0
      %v476 = vadd.f32 0.0, %v475
      %v477 = vpop.f32.mrf.mxu0
      %v478 = vadd.f32 0.0, %v477
      %479 = vdwg.mxu0
      %480 = vmatpush.bf16.msra.mxu0 0
      %481 = vmatpush.bf16.msra.mxu0 0
      %482 = vmatpush.bf16.msra.mxu0 0
      %483 = vmatpush.bf16.msra.mxu0 0
      %484 = vmatpush.bf16.msra.mxu0 0
      %485 = vmatpush.bf16.msra.mxu0 0
      %486 = vmatpush.bf16.msra.mxu0 0
      %487 = vmatpush.bf16.msra.mxu0 %v389
      %488 = vmatmul.bf16.gmra.mxu0 %v337
      %v489 = vpop.f32.mrf.mxu0
      %v490 = vadd.f32 0.0, %v489
      %v491 = vpop.f32.mrf.mxu0
      %v492 = vadd.f32 0.0, %v491
      %493 = vmatmul.bf16.gmra.mxu0 %v340
      %v494 = vpop.f32.mrf.mxu0
      %v495 = vadd.f32 0.0, %v494
      %v496 = vpop.f32.mrf.mxu0
      %v497 = vadd.f32 0.0, %v496
      %498 = vmatmul.bf16.gmra.mxu0 %v343
      %v499 = vpop.f32.mrf.mxu0
      %v500 = vadd.f32 0.0, %v499
      %v501 = vpop.f32.mrf.mxu0
      %v502 = vadd.f32 0.0, %v501
      %503 = vmatmul.bf16.gmra.mxu0 %v346
      %v504 = vpop.f32.mrf.mxu0
      %v505 = vadd.f32 0.0, %v504
      %v506 = vpop.f32.mrf.mxu0
      %v507 = vadd.f32 0.0, %v506
      %508 = vmatmul.bf16.gmra.mxu0 %v349
      %v509 = vpop.f32.mrf.mxu0
      %v510 = vadd.f32 0.0, %v509
      %v511 = vpop.f32.mrf.mxu0
      %v512 = vadd.f32 0.0, %v511
      %513 = vmatmul.bf16.gmra.mxu0 %v352
      %v514 = vpop.f32.mrf.mxu0
      %v515 = vadd.f32 0.0, %v514
      %v516 = vpop.f32.mrf.mxu0
      %v517 = vadd.f32 0.0, %v516
      %518 = vmatmul.bf16.gmra.mxu0 %v355
      %v519 = vpop.f32.mrf.mxu0
      %v520 = vadd.f32 0.0, %v519
      %v521 = vpop.f32.mrf.mxu0
      %v522 = vadd.f32 0.0, %v521
      %523 = vmatmul.bf16.gmra.mxu0 %v358
      %v524 = vpop.f32.mrf.mxu0
      %v525 = vadd.f32 0.0, %v524
      %v526 = vpop.f32.mrf.mxu0
      %v527 = vadd.f32 0.0, %v526
      %528 = vmatmul.bf16.gmra.mxu0 %v361
      %v529 = vpop.f32.mrf.mxu0
      %v530 = vadd.f32 0.0, %v529
      %v531 = vpop.f32.mrf.mxu0
      %v532 = vadd.f32 0.0, %v531
      %533 = vmatmul.bf16.gmra.mxu0 %v364
      %v534 = vpop.f32.mrf.mxu0
      %v535 = vadd.f32 0.0, %v534
      %v536 = vpop.f32.mrf.mxu0
      %v537 = vadd.f32 0.0, %v536
      %538 = vmatmul.bf16.gmra.mxu0 %v367
      %v539 = vpop.f32.mrf.mxu0
      %v540 = vadd.f32 0.0, %v539
      %v541 = vpop.f32.mrf.mxu0
      %v542 = vadd.f32 0.0, %v541
      %543 = vmatmul.bf16.gmra.mxu0 %v370
      %v544 = vpop.f32.mrf.mxu0
      %v545 = vadd.f32 0.0, %v544
      %v546 = vpop.f32.mrf.mxu0
      %v547 = vadd.f32 0.0, %v546
      %548 = vmatmul.bf16.gmra.mxu0 %v373
      %v549 = vpop.f32.mrf.mxu0
      %v550 = vadd.f32 0.0, %v549
      %v551 = vpop.f32.mrf.mxu0
      %v552 = vadd.f32 0.0, %v551
      %553 = vmatmul.bf16.gmra.mxu0 %v376
      %v554 = vpop.f32.mrf.mxu0
      %v555 = vadd.f32 0.0, %v554
      %v556 = vpop.f32.mrf.mxu0
      %v557 = vadd.f32 0.0, %v556
      %558 = vmatmul.bf16.gmra.mxu0 %v379
      %v559 = vpop.f32.mrf.mxu0
      %v560 = vadd.f32 0.0, %v559
      %v561 = vpop.f32.mrf.mxu0
      %v562 = vadd.f32 0.0, %v561
      %563 = vmatmul.bf16.gmra.mxu0 %v382
      %v564 = vpop.f32.mrf.mxu0
      %v565 = vadd.f32 0.0, %v564
      %v566 = vpop.f32.mrf.mxu0
      %v567 = vadd.f32 0.0, %v566
      %568 = vdwg.mxu0
      %v569 = vmax.f32 %v401, %v406
      %v570 = vmax.f32 %v403, %v408
      %v571 = vmax.f32 %v569, %v411
      %v572 = vmax.f32 %v570, %v413
      %v573 = vmax.f32 %v571, %v416
      %v574 = vmax.f32 %v572, %v418
      %v575 = vmax.f32 %v573, %v421
      %v576 = vmax.f32 %v574, %v423
      %v577 = vmax.f32 %v575, %v426
      %v578 = vmax.f32 %v576, %v428
      %v579 = vmax.f32 %v577, %v431
      %v580 = vmax.f32 %v578, %v433
      %v581 = vmax.f32 %v579, %v436
      %v582 = vmax.f32 %v580, %v438
      %v583 = vmax.f32 %v581, %v441
      %v584 = vmax.f32 %v582, %v443
      %v585 = vmax.f32 %v583, %v446
      %v586 = vmax.f32 %v584, %v448
      %v587 = vmax.f32 %v585, %v451
      %v588 = vmax.f32 %v586, %v453
      %v589 = vmax.f32 %v587, %v456
      %v590 = vmax.f32 %v588, %v458
      %v591 = vmax.f32 %v589, %v461
      %v592 = vmax.f32 %v590, %v463
      %v593 = vmax.f32 %v591, %v466
      %v594 = vmax.f32 %v592, %v468
      %v595 = vmax.f32 %v593, %v471
      %v596 = vmax.f32 %v594, %v473
      %v597 = vmax.f32 %v595, %v476
      %v598 = vmax.f32 %v596, %v478
      %v599 = vmax.f32 %v597, %v598
      %v600 = vrot.slane %v599, 4
      %v601 = vmax.f32 %v599, %v600
      %v602 = vrot.slane %v601, 2
      %v603 = vmax.f32 %v601, %v602
      %v604 = vrot.slane %v603, 1
      %v605 = vmax.f32 %v603, %v604
      %v606 = vmax.f32 %v490, %v495
      %v607 = vmax.f32 %v492, %v497
      %v608 = vmax.f32 %v606, %v500
      %v609 = vmax.f32 %v607, %v502
      %v610 = vmax.f32 %v608, %v505
      %v611 = vmax.f32 %v609, %v507
      %v612 = vmax.f32 %v610, %v510
      %v613 = vmax.f32 %v611, %v512
      %v614 = vmax.f32 %v612, %v515
      %v615 = vmax.f32 %v613, %v517
      %v616 = vmax.f32 %v614, %v520
      %v617 = vmax.f32 %v615, %v522
      %v618 = vmax.f32 %v616, %v525
      %v619 = vmax.f32 %v617, %v527
      %v620 = vmax.f32 %v618, %v530
      %v621 = vmax.f32 %v619, %v532
      %v622 = vmax.f32 %v620, %v535
      %v623 = vmax.f32 %v621, %v537
      %v624 = vmax.f32 %v622, %v540
      %v625 = vmax.f32 %v623, %v542
      %v626 = vmax.f32 %v624, %v545
      %v627 = vmax.f32 %v625, %v547
      %v628 = vmax.f32 %v626, %v550
      %v629 = vmax.f32 %v627, %v552
      %v630 = vmax.f32 %v628, %v555
      %v631 = vmax.f32 %v629, %v557
      %v632 = vmax.f32 %v630, %v560
      %v633 = vmax.f32 %v631, %v562
      %v634 = vmax.f32 %v632, %v565
      %v635 = vmax.f32 %v633, %v567
      %v636 = vmax.f32 %v634, %v635
      %v637 = vrot.slane %v636, 4
      %v638 = vmax.f32 %v636, %v637
      %v639 = vrot.slane %v638, 2
      %v640 = vmax.f32 %v638, %v639
      %v641 = vrot.slane %v640, 1
      %v642 = vmax.f32 %v640, %v641
      %v643 = vsub.f32 %v401, %v605
      %v644 = vsub.f32 %v490, %v642
      %v645 = vsub.f32 %v403, %v605
      %v646 = vsub.f32 %v492, %v642
      %v647 = vsub.f32 %v406, %v605
      %v648 = vsub.f32 %v495, %v642
      %v649 = vsub.f32 %v408, %v605
      %v650 = vsub.f32 %v497, %v642
      %v651 = vsub.f32 %v411, %v605
      %v652 = vsub.f32 %v500, %v642
      %v653 = vsub.f32 %v413, %v605
      %v654 = vsub.f32 %v502, %v642
      %v655 = vsub.f32 %v416, %v605
      %v656 = vsub.f32 %v505, %v642
      %v657 = vsub.f32 %v418, %v605
      %v658 = vsub.f32 %v507, %v642
      %v659 = vsub.f32 %v421, %v605
      %v660 = vsub.f32 %v510, %v642
      %v661 = vsub.f32 %v423, %v605
      %v662 = vsub.f32 %v512, %v642
      %v663 = vsub.f32 %v426, %v605
      %v664 = vsub.f32 %v515, %v642
      %v665 = vsub.f32 %v428, %v605
      %v666 = vsub.f32 %v517, %v642
      %v667 = vsub.f32 %v431, %v605
      %v668 = vsub.f32 %v520, %v642
      %v669 = vsub.f32 %v433, %v605
      %v670 = vsub.f32 %v522, %v642
      %v671 = vsub.f32 %v436, %v605
      %v672 = vsub.f32 %v525, %v642
      %v673 = vsub.f32 %v438, %v605
      %v674 = vsub.f32 %v527, %v642
      %v675 = vsub.f32 %v441, %v605
      %v676 = vsub.f32 %v530, %v642
      %v677 = vsub.f32 %v443, %v605
      %v678 = vsub.f32 %v532, %v642
      %v679 = vsub.f32 %v446, %v605
      %v680 = vsub.f32 %v535, %v642
      %v681 = vsub.f32 %v448, %v605
      %v682 = vsub.f32 %v537, %v642
      %v683 = vsub.f32 %v451, %v605
      %v684 = vsub.f32 %v540, %v642
      %v685 = vsub.f32 %v453, %v605
      %v686 = vsub.f32 %v542, %v642
      %v687 = vsub.f32 %v456, %v605
      %v688 = vsub.f32 %v545, %v642
      %v689 = vsub.f32 %v458, %v605
      %v690 = vsub.f32 %v547, %v642
      %v691 = vsub.f32 %v461, %v605
      %v692 = vsub.f32 %v550, %v642
      %v693 = vsub.f32 %v463, %v605
      %v694 = vsub.f32 %v552, %v642
      %v695 = vsub.f32 %v466, %v605
      %v696 = vsub.f32 %v555, %v642
      %v697 = vsub.f32 %v468, %v605
      %v698 = vsub.f32 %v557, %v642
      %v699 = vsub.f32 %v471, %v605
      %v700 = vsub.f32 %v560, %v642
      %v701 = vsub.f32 %v473, %v605
      %v702 = vsub.f32 %v562, %v642
      %v703 = vsub.f32 %v476, %v605
      %v704 = vsub.f32 %v565, %v642
      %v705 = vsub.f32 %v478, %v605
      %v706 = vsub.f32 %v567, %v642
      %v707 = vmul.f32 %v643, 1.442695
      %v708 = vpow.pop %v707
      %v709 = vmul.f32 %v644, 1.442695
      %v710 = vpow.pop %v709
      %v711 = vmul.f32 %v645, 1.442695
      %v712 = vpow.pop %v711
      %v713 = vmul.f32 %v646, 1.442695
      %v714 = vpow.pop %v713
      %v715 = vmul.f32 %v647, 1.442695
      %v716 = vpow.pop %v715
      %v717 = vmul.f32 %v648, 1.442695
      %v718 = vpow.pop %v717
      %v719 = vmul.f32 %v649, 1.442695
      %v720 = vpow.pop %v719
      %v721 = vmul.f32 %v650, 1.442695
      %v722 = vpow.pop %v721
      %v723 = vmul.f32 %v651, 1.442695
      %v724 = vpow.pop %v723
      %v725 = vmul.f32 %v652, 1.442695
      %v726 = vpow.pop %v725
      %v727 = vmul.f32 %v653, 1.442695
      %v728 = vpow.pop %v727
      %v729 = vmul.f32 %v654, 1.442695
      %v730 = vpow.pop %v729
      %v731 = vmul.f32 %v655, 1.442695
      %v732 = vpow.pop %v731
      %v733 = vmul.f32 %v656, 1.442695
      %v734 = vpow.pop %v733
      %v735 = vmul.f32 %v657, 1.442695
      %v736 = vpow.pop %v735
      %v737 = vmul.f32 %v658, 1.442695
      %v738 = vpow.pop %v737
      %v739 = vmul.f32 %v659, 1.442695
      %v740 = vpow.pop %v739
      %v741 = vmul.f32 %v660, 1.442695
      %v742 = vpow.pop %v741
      %v743 = vmul.f32 %v661, 1.442695
      %v744 = vpow.pop %v743
      %v745 = vmul.f32 %v662, 1.442695
      %v746 = vpow.pop %v745
      %v747 = vmul.f32 %v663, 1.442695
      %v748 = vpow.pop %v747
      %v749 = vmul.f32 %v664, 1.442695
      %v750 = vpow.pop %v749
      %v751 = vmul.f32 %v665, 1.442695
      %v752 = vpow.pop %v751
      %v753 = vmul.f32 %v666, 1.442695
      %v754 = vpow.pop %v753
      %v755 = vmul.f32 %v667, 1.442695
      %v756 = vpow.pop %v755
      %v757 = vmul.f32 %v668, 1.442695
      %v758 = vpow.pop %v757
      %v759 = vmul.f32 %v669, 1.442695
      %v760 = vpow.pop %v759
      %v761 = vmul.f32 %v670, 1.442695
      %v762 = vpow.pop %v761
      %v763 = vmul.f32 %v671, 1.442695
      %v764 = vpow.pop %v763
      %v765 = vmul.f32 %v672, 1.442695
      %v766 = vpow.pop %v765
      %v767 = vmul.f32 %v673, 1.442695
      %v768 = vpow.pop %v767
      %v769 = vmul.f32 %v674, 1.442695
      %v770 = vpow.pop %v769
      %v771 = vmul.f32 %v675, 1.442695
      %v772 = vpow.pop %v771
      %v773 = vmul.f32 %v676, 1.442695
      %v774 = vpow.pop %v773
      %v775 = vmul.f32 %v677, 1.442695
      %v776 = vpow.pop %v775
      %v777 = vmul.f32 %v678, 1.442695
      %v778 = vpow.pop %v777
      %v779 = vmul.f32 %v679, 1.442695
      %v780 = vpow.pop %v779
      %v781 = vmul.f32 %v680, 1.442695
      %v782 = vpow.pop %v781
      %v783 = vmul.f32 %v681, 1.442695
      %v784 = vpow.pop %v783
      %v785 = vmul.f32 %v682, 1.442695
      %v786 = vpow.pop %v785
      %v787 = vmul.f32 %v683, 1.442695
      %v788 = vpow.pop %v787
      %v789 = vmul.f32 %v684, 1.442695
      %v790 = vpow.pop %v789
      %v791 = vmul.f32 %v685, 1.442695
      %v792 = vpow.pop %v791
      %v793 = vmul.f32 %v686, 1.442695
      %v794 = vpow.pop %v793
      %v795 = vmul.f32 %v687, 1.442695
      %v796 = vpow.pop %v795
      %v797 = vmul.f32 %v688, 1.442695
      %v798 = vpow.pop %v797
      %v799 = vmul.f32 %v689, 1.442695
      %v800 = vpow.pop %v799
      %v801 = vmul.f32 %v690, 1.442695
      %v802 = vpow.pop %v801
      %v803 = vmul.f32 %v691, 1.442695
      %v804 = vpow.pop %v803
      %v805 = vmul.f32 %v692, 1.442695
      %v806 = vpow.pop %v805
      %v807 = vmul.f32 %v693, 1.442695
      %v808 = vpow.pop %v807
      %v809 = vmul.f32 %v694, 1.442695
      %v810 = vpow.pop %v809
      %v811 = vmul.f32 %v695, 1.442695
      %v812 = vpow.pop %v811
      %v813 = vmul.f32 %v696, 1.442695
      %v814 = vpow.pop %v813
      %v815 = vmul.f32 %v697, 1.442695
      %v816 = vpow.pop %v815
      %v817 = vmul.f32 %v698, 1.442695
      %v818 = vpow.pop %v817
      %v819 = vmul.f32 %v699, 1.442695
      %v820 = vpow.pop %v819
      %v821 = vmul.f32 %v700, 1.442695
      %v822 = vpow.pop %v821
      %v823 = vmul.f32 %v701, 1.442695
      %v824 = vpow.pop %v823
      %v825 = vmul.f32 %v702, 1.442695
      %v826 = vpow.pop %v825
      %v827 = vmul.f32 %v703, 1.442695
      %v828 = vpow.pop %v827
      %v829 = vmul.f32 %v704, 1.442695
      %v830 = vpow.pop %v829
      %v831 = vmul.f32 %v705, 1.442695
      %v832 = vpow.pop %v831
      %v833 = vmul.f32 %v706, 1.442695
      %v834 = vpow.pop %v833
      %v835 = vadd.f32 %v708, %v712
      %v836 = vadd.f32 %v835, %v716
      %v837 = vadd.f32 %v836, %v720
      %v838 = vadd.f32 %v837, %v724
      %v839 = vadd.f32 %v838, %v728
      %v840 = vadd.f32 %v839, %v732
      %v841 = vadd.f32 %v840, %v736
      %v842 = vadd.f32 %v841, %v740
      %v843 = vadd.f32 %v842, %v744
      %v844 = vadd.f32 %v843, %v748
      %v845 = vadd.f32 %v844, %v752
      %v846 = vadd.f32 %v845, %v756
      %v847 = vadd.f32 %v846, %v760
      %v848 = vadd.f32 %v847, %v764
      %v849 = vadd.f32 %v848, %v768
      %v850 = vadd.f32 %v849, %v772
      %v851 = vadd.f32 %v850, %v776
      %v852 = vadd.f32 %v851, %v780
      %v853 = vadd.f32 %v852, %v784
      %v854 = vadd.f32 %v853, %v788
      %v855 = vadd.f32 %v854, %v792
      %v856 = vadd.f32 %v855, %v796
      %v857 = vadd.f32 %v856, %v800
      %v858 = vadd.f32 %v857, %v804
      %v859 = vadd.f32 %v858, %v808
      %v860 = vadd.f32 %v859, %v812
      %v861 = vadd.f32 %v860, %v816
      %v862 = vadd.f32 %v861, %v820
      %v863 = vadd.f32 %v862, %v824
      %v864 = vadd.f32 %v863, %v828
      %v865 = vadd.f32 %v864, %v832
      %v866 = vrot.slane %v865, 4
      %v867 = vadd.f32 %v865, %v866
      %v868 = vrot.slane %v867, 2
      %v869 = vadd.f32 %v867, %v868
      %v870 = vrot.slane %v869, 1
      %v871 = vadd.f32 %v869, %v870
      %v872 = vadd.f32 %v710, %v714
      %v873 = vadd.f32 %v872, %v718
      %v874 = vadd.f32 %v873, %v722
      %v875 = vadd.f32 %v874, %v726
      %v876 = vadd.f32 %v875, %v730
      %v877 = vadd.f32 %v876, %v734
      %v878 = vadd.f32 %v877, %v738
      %v879 = vadd.f32 %v878, %v742
      %v880 = vadd.f32 %v879, %v746
      %v881 = vadd.f32 %v880, %v750
      %v882 = vadd.f32 %v881, %v754
      %v883 = vadd.f32 %v882, %v758
      %v884 = vadd.f32 %v883, %v762
      %v885 = vadd.f32 %v884, %v766
      %v886 = vadd.f32 %v885, %v770
      %v887 = vadd.f32 %v886, %v774
      %v888 = vadd.f32 %v887, %v778
      %v889 = vadd.f32 %v888, %v782
      %v890 = vadd.f32 %v889, %v786
      %v891 = vadd.f32 %v890, %v790
      %v892 = vadd.f32 %v891, %v794
      %v893 = vadd.f32 %v892, %v798
      %v894 = vadd.f32 %v893, %v802
      %v895 = vadd.f32 %v894, %v806
      %v896 = vadd.f32 %v895, %v810
      %v897 = vadd.f32 %v896, %v814
      %v898 = vadd.f32 %v897, %v818
      %v899 = vadd.f32 %v898, %v822
      %v900 = vadd.f32 %v899, %v826
      %v901 = vadd.f32 %v900, %v830
      %v902 = vadd.f32 %v901, %v834
      %v903 = vrot.slane %v902, 4
      %v904 = vadd.f32 %v902, %v903
      %v905 = vrot.slane %v904, 2
      %v906 = vadd.f32 %v904, %v905
      %v907 = vrot.slane %v906, 1
      %v908 = vadd.f32 %v906, %v907
      %v909 = vpack.c.bf16 %v712, %v708
      %v910 = vpack.c.bf16 %v714, %v710
      %v911 = vpack.c.bf16 %v720, %v716
      %v912 = vpack.c.bf16 %v722, %v718
      %v913 = vpack.c.bf16 %v728, %v724
      %v914 = vpack.c.bf16 %v730, %v726
      %v915 = vpack.c.bf16 %v736, %v732
      %v916 = vpack.c.bf16 %v738, %v734
      %v917 = vpack.c.bf16 %v744, %v740
      %v918 = vpack.c.bf16 %v746, %v742
      %v919 = vpack.c.bf16 %v752, %v748
      %v920 = vpack.c.bf16 %v754, %v750
      %v921 = vpack.c.bf16 %v760, %v756
      %v922 = vpack.c.bf16 %v762, %v758
      %v923 = vpack.c.bf16 %v768, %v764
      %v924 = vpack.c.bf16 %v770, %v766
      %v925 = vpack.c.bf16 %v776, %v772
      %v926 = vpack.c.bf16 %v778, %v774
      %v927 = vpack.c.bf16 %v784, %v780
      %v928 = vpack.c.bf16 %v786, %v782
      %v929 = vpack.c.bf16 %v792, %v788
      %v930 = vpack.c.bf16 %v794, %v790
      %v931 = vpack.c.bf16 %v800, %v796
      %v932 = vpack.c.bf16 %v802, %v798
      %v933 = vpack.c.bf16 %v808, %v804
      %v934 = vpack.c.bf16 %v810, %v806
      %v935 = vpack.c.bf16 %v816, %v812
      %v936 = vpack.c.bf16 %v818, %v814
      %v937 = vpack.c.bf16 %v824, %v820
      %v938 = vpack.c.bf16 %v826, %v822
      %v939 = vpack.c.bf16 %v832, %v828
      %v940 = vpack.c.bf16 %v834, %v830
      %v943 = vunpack.c.l.b16 %v297
      %v944 = vunpack.c.h.b16 %v297
      %v945 = vunpack.c.l.b16 %v298
      %v946 = vunpack.c.h.b16 %v298
      %v947 = vpack.c.b16 %v945, %v943
      %v948 = vpack.c.b16 %v946, %v944
      %951 = vmatpush.bf16.msra.mxu0 %v923
      %952 = vmatpush.bf16.msra.mxu0 %v921
      %953 = vmatpush.bf16.msra.mxu0 %v919
      %954 = vmatpush.bf16.msra.mxu0 %v917
      %955 = vmatpush.bf16.msra.mxu0 %v915
      %956 = vmatpush.bf16.msra.mxu0 %v913
      %957 = vmatpush.bf16.msra.mxu0 %v911
      %958 = vmatpush.bf16.msra.mxu0 %v909
      %959 = vmatmul.bf16.gmra.mxu0 %v947
      %v960 = vpop.f32.mrf.mxu0
      %v961 = vadd.f32 0.0, %v960
      %v962 = vpop.f32.mrf.mxu0
      %v963 = vadd.f32 0.0, %v962
      %964 = vdwg.mxu0
      %965 = vmatpush.bf16.msra.mxu0 %v939
      %966 = vmatpush.bf16.msra.mxu0 %v937
      %967 = vmatpush.bf16.msra.mxu0 %v935
      %968 = vmatpush.bf16.msra.mxu0 %v933
      %969 = vmatpush.bf16.msra.mxu0 %v931
      %970 = vmatpush.bf16.msra.mxu0 %v929
      %971 = vmatpush.bf16.msra.mxu0 %v927
      %972 = vmatpush.bf16.msra.mxu0 %v925
      %973 = vmatmul.bf16.gmra.mxu0 %v948
      %v974 = vpop.f32.mrf.mxu0
      %v975 = vadd.f32 %v961, %v974
      %v976 = vpop.f32.mrf.mxu0
      %v977 = vadd.f32 %v963, %v976
      %978 = vdwg.mxu0
      %979 = vmatpush.bf16.msra.mxu0 %v924
      %980 = vmatpush.bf16.msra.mxu0 %v922
      %981 = vmatpush.bf16.msra.mxu0 %v920
      %982 = vmatpush.bf16.msra.mxu0 %v918
      %983 = vmatpush.bf16.msra.mxu0 %v916
      %984 = vmatpush.bf16.msra.mxu0 %v914
      %985 = vmatpush.bf16.msra.mxu0 %v912
      %986 = vmatpush.bf16.msra.mxu0 %v910
      %987 = vmatmul.bf16.gmra.mxu0 %v947
      %v988 = vpop.f32.mrf.mxu0
      %v989 = vadd.f32 0.0, %v988
      %v990 = vpop.f32.mrf.mxu0
      %v991 = vadd.f32 0.0, %v990
      %992 = vdwg.mxu0
      %993 = vmatpush.bf16.msra.mxu0 %v940
      %994 = vmatpush.bf16.msra.mxu0 %v938
      %995 = vmatpush.bf16.msra.mxu0 %v936
      %996 = vmatpush.bf16.msra.mxu0 %v934
      %997 = vmatpush.bf16.msra.mxu0 %v932
      %998 = vmatpush.bf16.msra.mxu0 %v930
      %999 = vmatpush.bf16.msra.mxu0 %v928
      %1000 = vmatpush.bf16.msra.mxu0 %v926
      %1001 = vmatmul.bf16.gmra.mxu0 %v948
      %v1002 = vpop.f32.mrf.mxu0
      %v1003 = vadd.f32 %v989, %v1002
      %v1004 = vpop.f32.mrf.mxu0
      %v1005 = vadd.f32 %v991, %v1004
      %1006 = vdwg.mxu0
      %v1007 = vrcp.pop %v871
      %v1008 = vrcp.pop %v908
      %v1009 = vmul.f32 %v975, %v1007
      %v1010 = vmul.f32 %v1003, %v1008
      %v1011 = vmul.f32 %v977, %v1007
      %v1012 = vmul.f32 %v1005, %v1008
      %s1013 = sld [smem:[#allocation2]]
      %v1014 = vstv %s1013
      %v1015 = vmul.f32 %v1014, %v1009
      %v1016 = vmul.f32 %v1014, %v1010
      %v1017 = vmul.f32 %v1014, %v1011
      %v1018 = vmul.f32 %v1014, %v1012
      %v1019 = vunpack.c.l.bf16 %v200
      %v1020 = vunpack.c.h.bf16 %v200
      %v1021 = vunpack.c.l.bf16 %v201
      %v1022 = vunpack.c.h.bf16 %v201
      %v1023 = vadd.f32 %v1015, %v1019
      %v1024 = vadd.f32 %v1016, %v1020
      %v1025 = vadd.f32 %v1017, %v1021
      %v1026 = vadd.f32 %v1018, %v1022
      %v1027 = vpack.c.bf16 %v1024, %v1023
      %v1028 = vpack.c.bf16 %v1026, %v1025
      %1029 = vst [vmem:[%s198] sm:$0xff] %v1027
      %1030 = vst [vmem:[%s198 + $0x8] sm:$0xff] %v1028
      %p1031 = scmp.lt.s32.totalorder %s16, 1
      %s1032 = scalar_select %p1031, %s16, 1
      %s1033 = smul.addr %s1032, 4
      %s1034 = smul.addr %s1033, 4
      %s1035 = scalar_lea.vmem %s4, %s1034
      // Predicated region
      $region37: #{danet_head_forward.7} parent=35 // pred_check
        %p1036 = pneg %p123
      $region38: #{danet_head_forward.7} parent=35 // pred_check_branch
        %1038 = sbr.rel (%p1036) target = $region40
      $region39: #{danet_head_forward.7} parent=35 // pred_region
        _
      $region40: #{danet_head_forward.7} parent=35 // pred_fallthru
        _
    $region36: #{danet_head_forward.7} parent=5 // pred_fallthru
      _
    %p1039 = scmp.le.s32.totalorder 2, %s11
    // Predicated region
    $region41: #{danet_head_forward.7} parent=5 // pred_check
      %p1040 = pneg %p1039
    $region42: #{danet_head_forward.7} parent=5 // pred_check_branch
      %1042 = sbr.rel (%p1040) target = $region44
    $region43: #{danet_head_forward.7} parent=5 // pred_region
      %s1043 = ssub.s32 %s11, 2
      // Predicated region
      $region45: #{danet_head_forward.7} parent=43 // pred_check
        %p1044 = pneg %p129
      $region46: #{danet_head_forward.7} parent=43 // pred_check_branch
        %1046 = sbr.rel (%p1044) target = $region48
      $region47: #{danet_head_forward.7} parent=43 // pred_region
        %p1047 = scmp.lt.s32.totalorder %s17, 1
        %s1048 = scalar_select %p1047, %s17, 1
        %s1049 = smul.addr %s1048, 4
        %s1050 = smul.addr %s1049, 4
        %s1051 = scalar_lea.vmem %s4, %s1050
      $region48: #{danet_head_forward.7} parent=43 // pred_fallthru
        _
    $region44: #{danet_head_forward.7} parent=5 // pred_fallthru
      _
  $region6: #{danet_head_forward.7} parent=0 // loop_footer
    %s15 = sadd.s32 1, %s11
  $region7: #{danet_head_forward.7} parent=0 // loop_footer_branch
    %10 = sbr.rel target = $region3
  $region8: #{danet_head_forward.7} parent=0 // loop_exit
    _

// kernel: danet_head_forward.6
$region0: #{danet_head_forward.6}
  #allocation0 [shape = 'u32[]', space=smem, size = 0x4, offset = 0x4, fixed_abs, tag = 'smem constant byte address 0x4 - core index']
  #allocation1 [shape = 'u32[72,128]{1,0:T(1,128)}', space=vmem, size = 0x9000, scoped, tag = 'internal scratch']
  %s0 = inlined_call_operand.vmem [shape: bf16[2,64,256], index: 0, kind: input, shape index: {}]
  %s1 = inlined_call_operand.vmem [shape: bf16[32,576], index: 1, kind: input, shape index: {}]
  %s2 = inlined_call_operand.vmem [shape: f32[3,256], index: 2, kind: input, shape index: {}]
  %s3 = inlined_call_operand.vmem [shape: f32[32,1], index: 3, kind: input, shape index: {}]
  %s4 = inlined_call_operand.vmem [shape: f32[32,1], index: 4, kind: input, shape index: {}]
  %s5 = inlined_call_operand.vmem [shape: bf16[2,16,256], index: 5, kind: output, shape index: {0}]
  %s6 = inlined_call_operand.vmem [shape: bf16[2,16,256], index: 6, kind: output, shape index: {1}]
  %7 = xla_tuple %s5, %s6
  %s8 = sld [smem:[#allocation0]]
  $region61: #{danet_head_forward.6} parent=0
    _
  %s10 = ssub.s32 1, %s8
  %s11 = scalar_select 0, %s10, %s8
  loop: start=0, step=1, limit=4
  $region2: #{danet_head_forward.6} parent=0 // loop_pre_header
    _
  $region3: #{danet_head_forward.6} parent=0 // loop_header
    %s13 = sphi 0, %s17
    %p14 = scmp.ge.s32.totalorder %s13, 4
    %s23 = sphi 0, %s25
    %s26 = sphi 0, %s23
    %s27 = sphi 0, %s26
    %s43 = sphi 0, %s27
    %s47 = sphi 0, %s47
    %s49 = sphi 0, %s47
    %s50 = sphi 0, %s49
    %s64 = sphi 0, %s50
    %s68 = sphi 0, %s68
    %s70 = sphi 0, %s68
    %s71 = sphi 0, %s70
    %s85 = sphi 0, %s71
    %s89 = sphi 0, %s89
    %s91 = sphi 0, %s89
    %s92 = sphi 0, %s91
    %s106 = sphi 0, %s92
    %s110 = sphi 0, %s110
    %s112 = sphi 0, %s110
    %s113 = sphi 0, %s112
    %s127 = sphi 0, %s113
    %s133 = sphi 0, %s135
    %s136 = sphi 0, %s133
    %s137 = sphi 0, %s136
    %s153 = sphi 0, %s137
    %s159 = sphi 0, %s161
    %s162 = sphi 0, %s159
    %s163 = sphi 0, %s162
    %s179 = sphi 0, %s163
  $region4: #{danet_head_forward.6} parent=0 // loop_header_branch
    %16 = sbr.rel (%p14) target = $region8
  $region5: #{danet_head_forward.6} parent=0 // loop_body
    %s18 = ssub.s32 %s13, 1
    %s19 = ssub.s32 %s13, 2
    %s20 = sadd.s32 %s13, 1
    %s21 = ssub.s32 %s13, %s20
    %p22 = scmp.eq.s32.totalorder %s21, 0
    %s24 = sadd.s32 %s23, 1
    %s25 = scalar_select %p22, %s23, %s24
    %p28 = pneg %p22
    %p29 = scmp.eq.s32.totalorder %s13, 1
    %p30 = por %p28, %p29
    %p31 = scmp.ne.s32.totalorder %s23, %s26
    %p32 = scmp.eq.s32.totalorder %s13, 0
    %p33 = por %p31, %p32
    %p34 = scmp.ne.s32.totalorder %s23, %s26
    %p35 = scmp.eq.s32.totalorder %s18, 1
    %p36 = por %p34, %p35
    %p37 = scmp.ne.s32.totalorder %s26, %s27
    %p38 = scmp.eq.s32.totalorder %s18, 0
    %p39 = por %p37, %p38
    %p40 = scmp.ne.s32.totalorder %s26, %s27
    %p41 = scmp.eq.s32.totalorder %s19, 1
    %p42 = por %p40, %p41
    %p44 = scmp.ne.s32.totalorder %s27, %s43
    %p45 = scmp.eq.s32.totalorder %s19, 0
    %p46 = por %p44, %p45
    %s48 = sadd.s32 %s47, 1
    %p51 = scmp.eq.s32.totalorder %s13, 1
    %p52 = scmp.ne.s32.totalorder %s47, %s49
    %p53 = scmp.eq.s32.totalorder %s13, 0
    %p54 = por %p52, %p53
    %p55 = scmp.ne.s32.totalorder %s47, %s49
    %p56 = scmp.eq.s32.totalorder %s18, 1
    %p57 = por %p55, %p56
    %p58 = scmp.ne.s32.totalorder %s49, %s50
    %p59 = scmp.eq.s32.totalorder %s18, 0
    %p60 = por %p58, %p59
    %p61 = scmp.ne.s32.totalorder %s49, %s50
    %p62 = scmp.eq.s32.totalorder %s19, 1
    %p63 = por %p61, %p62
    %p65 = scmp.ne.s32.totalorder %s50, %s64
    %p66 = scmp.eq.s32.totalorder %s19, 0
    %p67 = por %p65, %p66
    %s69 = sadd.s32 %s68, 1
    %p72 = scmp.eq.s32.totalorder %s13, 1
    %p73 = scmp.ne.s32.totalorder %s68, %s70
    %p74 = scmp.eq.s32.totalorder %s13, 0
    %p75 = por %p73, %p74
    %p76 = scmp.ne.s32.totalorder %s68, %s70
    %p77 = scmp.eq.s32.totalorder %s18, 1
    %p78 = por %p76, %p77
    %p79 = scmp.ne.s32.totalorder %s70, %s71
    %p80 = scmp.eq.s32.totalorder %s18, 0
    %p81 = por %p79, %p80
    %p82 = scmp.ne.s32.totalorder %s70, %s71
    %p83 = scmp.eq.s32.totalorder %s19, 1
    %p84 = por %p82, %p83
    %p86 = scmp.ne.s32.totalorder %s71, %s85
    %p87 = scmp.eq.s32.totalorder %s19, 0
    %p88 = por %p86, %p87
    %s90 = sadd.s32 %s89, 1
    %p93 = scmp.eq.s32.totalorder %s13, 1
    %p94 = scmp.ne.s32.totalorder %s89, %s91
    %p95 = scmp.eq.s32.totalorder %s13, 0
    %p96 = por %p94, %p95
    %p97 = scmp.ne.s32.totalorder %s89, %s91
    %p98 = scmp.eq.s32.totalorder %s18, 1
    %p99 = por %p97, %p98
    %p100 = scmp.ne.s32.totalorder %s91, %s92
    %p101 = scmp.eq.s32.totalorder %s18, 0
    %p102 = por %p100, %p101
    %p103 = scmp.ne.s32.totalorder %s91, %s92
    %p104 = scmp.eq.s32.totalorder %s19, 1
    %p105 = por %p103, %p104
    %p107 = scmp.ne.s32.totalorder %s92, %s106
    %p108 = scmp.eq.s32.totalorder %s19, 0
    %p109 = por %p107, %p108
    %s111 = sadd.s32 %s110, 1
    %p114 = scmp.eq.s32.totalorder %s13, 1
    %p115 = scmp.ne.s32.totalorder %s110, %s112
    %p116 = scmp.eq.s32.totalorder %s13, 0
    %p117 = por %p115, %p116
    %p118 = scmp.ne.s32.totalorder %s110, %s112
    %p119 = scmp.eq.s32.totalorder %s18, 1
    %p120 = por %p118, %p119
    %p121 = scmp.ne.s32.totalorder %s112, %s113
    %p122 = scmp.eq.s32.totalorder %s18, 0
    %p123 = por %p121, %p122
    %p124 = scmp.ne.s32.totalorder %s112, %s113
    %p125 = scmp.eq.s32.totalorder %s19, 1
    %p126 = por %p124, %p125
    %p128 = scmp.ne.s32.totalorder %s113, %s127
    %p129 = scmp.eq.s32.totalorder %s19, 0
    %p130 = por %p128, %p129
    %s131 = ssub.s32 %s13, %s20
    %p132 = scmp.eq.s32.totalorder %s131, 0
    %s134 = sadd.s32 %s133, 1
    %s135 = scalar_select %p132, %s133, %s134
    %p138 = pneg %p132
    %p139 = scmp.eq.s32.totalorder %s13, 1
    %p140 = por %p138, %p139
    %p141 = scmp.ne.s32.totalorder %s133, %s136
    %p142 = scmp.eq.s32.totalorder %s13, 0
    %p143 = por %p141, %p142
    %p144 = scmp.ne.s32.totalorder %s133, %s136
    %p145 = scmp.eq.s32.totalorder %s18, 1
    %p146 = por %p144, %p145
    %p147 = scmp.ne.s32.totalorder %s136, %s137
    %p148 = scmp.eq.s32.totalorder %s18, 0
    %p149 = por %p147, %p148
    %p150 = scmp.ne.s32.totalorder %s136, %s137
    %p151 = scmp.eq.s32.totalorder %s19, 1
    %p152 = por %p150, %p151
    %p154 = scmp.ne.s32.totalorder %s137, %s153
    %p155 = scmp.eq.s32.totalorder %s19, 0
    %p156 = por %p154, %p155
    %s157 = ssub.s32 %s13, %s20
    %p158 = scmp.eq.s32.totalorder %s157, 0
    %s160 = sadd.s32 %s159, 1
    %s161 = scalar_select %p158, %s159, %s160
    %p164 = pneg %p158
    %p165 = scmp.eq.s32.totalorder %s13, 1
    %p166 = por %p164, %p165
    %p167 = scmp.ne.s32.totalorder %s159, %s162
    %p168 = scmp.eq.s32.totalorder %s13, 0
    %p169 = por %p167, %p168
    %p170 = scmp.ne.s32.totalorder %s159, %s162
    %p171 = scmp.eq.s32.totalorder %s18, 1
    %p172 = por %p170, %p171
    %p173 = scmp.ne.s32.totalorder %s162, %s163
    %p174 = scmp.eq.s32.totalorder %s18, 0
    %p175 = por %p173, %p174
    %p176 = scmp.ne.s32.totalorder %s162, %s163
    %p177 = scmp.eq.s32.totalorder %s19, 1
    %p178 = por %p176, %p177
    %p180 = scmp.ne.s32.totalorder %s163, %s179
    %p181 = scmp.eq.s32.totalorder %s19, 0
    %p182 = por %p180, %p181
    %p183 = scmp.le.s32.totalorder 1, %s13
    %p184 = scmp.lt.s32.totalorder %s13, 3
    %p185 = pnand %p183, %p184
    %p186 = pneg %p185
    // Predicated region
    $region9: #{danet_head_forward.6} parent=5 // pred_check
      _
    $region10: #{danet_head_forward.6} parent=5 // pred_check_branch
      %188 = sbr.rel (%p185) target = $region12
    $region11: #{danet_head_forward.6} parent=5 // pred_region
      %s189 = ssub.s32 %s13, 1
      // Predicated region
      $region13: #{danet_head_forward.6} parent=11 // pred_check
        %p190 = pneg %p60
      $region14: #{danet_head_forward.6} parent=11 // pred_check_branch
        %192 = sbr.rel (%p190) target = $region16
      $region15: #{danet_head_forward.6} parent=11 // pred_region
        _
      $region16: #{danet_head_forward.6} parent=11 // pred_fallthru
        _
      // Predicated region
      $region17: #{danet_head_forward.6} parent=11 // pred_check
        %p193 = pneg %p81
      $region18: #{danet_head_forward.6} parent=11 // pred_check_branch
        %195 = sbr.rel (%p193) target = $region20
      $region19: #{danet_head_forward.6} parent=11 // pred_region
        _
      $region20: #{danet_head_forward.6} parent=11 // pred_fallthru
        _
      // Predicated region
      $region21: #{danet_head_forward.6} parent=11 // pred_check
        %p196 = pneg %p102
      $region22: #{danet_head_forward.6} parent=11 // pred_check_branch
        %198 = sbr.rel (%p196) target = $region24
      $region23: #{danet_head_forward.6} parent=11 // pred_region
        _
      $region24: #{danet_head_forward.6} parent=11 // pred_fallthru
        _
      // Predicated region
      $region25: #{danet_head_forward.6} parent=11 // pred_check
        %p199 = pneg %p123
      $region26: #{danet_head_forward.6} parent=11 // pred_check_branch
        %201 = sbr.rel (%p199) target = $region28
      $region27: #{danet_head_forward.6} parent=11 // pred_region
        _
      $region28: #{danet_head_forward.6} parent=11 // pred_fallthru
        _
    $region12: #{danet_head_forward.6} parent=5 // pred_fallthru
      _
    %p202 = scmp.lt.s32.totalorder %s13, 2
    // Predicated region
    $region29: #{danet_head_forward.6} parent=5 // pred_check
      %p203 = pneg %p202
    $region30: #{danet_head_forward.6} parent=5 // pred_check_branch
      %205 = sbr.rel (%p203) target = $region32
    $region31: #{danet_head_forward.6} parent=5 // pred_region
      // Predicated region
      $region33: #{danet_head_forward.6} parent=31 // pred_check
        %p206 = pneg %p33
      $region34: #{danet_head_forward.6} parent=31 // pred_check_branch
        %208 = sbr.rel (%p206) target = $region36
      $region35: #{danet_head_forward.6} parent=31 // pred_region
        %p209 = scmp.lt.s32.totalorder %s13, 1
        %s210 = scalar_select %p209, %s13, 1
        %s211 = smul.addr %s210, 16
        %s212 = smul.addr %s211, 4
        %s213 = scalar_lea.vmem %s0, %s212
      $region36: #{danet_head_forward.6} parent=31 // pred_fallthru
        _
    $region32: #{danet_head_forward.6} parent=5 // pred_fallthru
      _
    %p214 = scmp.le.s32.totalorder 1, %s13
    %p215 = scmp.lt.s32.totalorder %s13, 3
    %p216 = pnand %p214, %p215
    %p217 = pneg %p216
    // Predicated region
    $region37: #{danet_head_forward.6} parent=5 // pred_check
      _
    $region38: #{danet_head_forward.6} parent=5 // pred_check_branch
      %219 = sbr.rel (%p216) target = $region40
    $region39: #{danet_head_forward.6} parent=5 // pred_region
      %s220 = ssub.s32 %s13, 1
      %p221 = scmp.lt.s32.totalorder %s18, 1
      %s222 = scalar_select %p221, %s18, 1
      %s223 = smul.addr %s222, 16
      %s224 = smul.addr %s223, 4
      %s225 = scalar_lea.vmem %s0, %s224
      %p226 = pneg %p39
      %p227 = pneg %p36
      %p228 = pneg %p60
      %p229 = pneg %p57
      %p230 = pneg %p81
      %p231 = pneg %p78
      %p232 = pneg %p102
      %p233 = pneg %p99
      %p234 = pneg %p123
      %p235 = pneg %p120
      %p236 = pneg %p149
      %p237 = pneg %p146
      %p238 = scmp.lt.s32.totalorder %s18, 1
      %s239 = scalar_select %p238, %s18, 1
      %s240 = smul.addr %s239, 4
      %s241 = smul.addr %s240, 4
      %s242 = scalar_lea.vmem %s5, %s241
      %p243 = pneg %p175
      %p244 = pneg %p172
      %p245 = scmp.lt.s32.totalorder %s18, 1
      %s246 = scalar_select %p245, %s18, 1
      %s247 = smul.addr %s246, 4
      %s248 = smul.addr %s247, 4
      %s249 = scalar_lea.vmem %s6, %s248
      %p250 = scmp.lt.s32.totalorder %s18, 1
      %s251 = scalar_select %p250, %s18, 1
      %s252 = smul.addr %s251, 16
      %s253 = smul.addr %s252, 4
      %s254 = scalar_lea.vmem %s0, %s253
      %p255 = scmp.lt.s32.totalorder %s18, 1
      %s256 = scalar_select %p255, %s18, 1
      %s257 = smul.addr %s256, 4
      %s258 = smul.addr %s257, 4
      %s259 = scalar_lea.vmem %s5, %s258
      %p260 = scmp.lt.s32.totalorder %s18, 1
      %s261 = scalar_select %p260, %s18, 1
      %s262 = smul.addr %s261, 4
      %s263 = smul.addr %s262, 4
      %s264 = scalar_lea.vmem %s6, %s263
      %v266 = vld [vmem:[%s254] sm:$0xff]
      %v267 = vld [vmem:[%s254 + $0x8] sm:$0xff]
      %v268 = vld [vmem:[%s254 + $0x10] sm:$0xff]
      %v269 = vld [vmem:[%s254 + $0x18] sm:$0xff]
      %v270 = vld [vmem:[%s254 + $0x20] sm:$0xff]
      %v271 = vld [vmem:[%s254 + $0x28] sm:$0xff]
      %v272 = vld [vmem:[%s254 + $0x30] sm:$0xff]
      %v273 = vld [vmem:[%s254 + $0x38] sm:$0xff]
      %v274 = vld [vmem:[%s2] ss:$4 sm:$0x3]
      %v276 = vperm.slane %v274, 0
      %v277 = vperm.slane %v274, 1
      %v280 = vpack.c.bf16 %v277, %v276
      %s281 = scalar_lea.vmem %s2, 2
      %v282 = vld [vmem:[%s281] ss:$4 sm:$0x3]
      %v284 = vperm.slane %v282, 0
      %v285 = vperm.slane %v282, 1
      %v288 = vpack.c.bf16 %v285, %v284
      %v297 = vunpack.c.l.b16 %v266
      %v298 = vunpack.c.h.b16 %v266
      %v299 = vunpack.c.l.b16 %v267
      %v300 = vunpack.c.h.b16 %v267
      %v301 = vunpack.c.l.b16 %v268
      %v302 = vunpack.c.h.b16 %v268
      %v303 = vunpack.c.l.b16 %v269
      %v304 = vunpack.c.h.b16 %v269
      %v305 = vunpack.c.l.b16 %v270
      %v306 = vunpack.c.h.b16 %v270
      %v307 = vunpack.c.l.b16 %v271
      %v308 = vunpack.c.h.b16 %v271
      %v309 = vunpack.c.l.b16 %v272
      %v310 = vunpack.c.h.b16 %v272
      %v311 = vunpack.c.l.b16 %v273
      %v312 = vunpack.c.h.b16 %v273
      %v313 = vpack.c.b16 %v299, %v297
      %v314 = vpack.c.b16 %v300, %v298
      %v315 = vpack.c.b16 %v303, %v301
      %v316 = vpack.c.b16 %v304, %v302
      %v317 = vpack.c.b16 %v307, %v305
      %v318 = vpack.c.b16 %v308, %v306
      %v319 = vpack.c.b16 %v311, %v309
      %v320 = vpack.c.b16 %v312, %v310
      %321 = vrot.lane.b32.xlu0 %v313, 17
      %v322 = vpop.permute.xlu0 %321
      %323 = vrot.lane.b32.xlu0 %v314, 17
      %v324 = vpop.permute.xlu0 %323
      %325 = vrot.lane.b32.xlu0 %v315, 17
      %v326 = vpop.permute.xlu0 %325
      %327 = vrot.lane.b32.xlu0 %v316, 17
      %v328 = vpop.permute.xlu0 %327
      %329 = vrot.lane.b32.xlu0 %v317, 17
      %v330 = vpop.permute.xlu0 %329
      %331 = vrot.lane.b32.xlu0 %v318, 17
      %v332 = vpop.permute.xlu0 %331
      %333 = vrot.lane.b32.xlu0 %v319, 17
      %v334 = vpop.permute.xlu0 %333
      %335 = vrot.lane.b32.xlu0 %v320, 17
      %v336 = vpop.permute.xlu0 %335
      %vm337 = vcmask 138240
      %v338 = vsel %vm337, %v322, %v324
      %v339 = vsel %vm337, %v326, %v328
      %v340 = vsel %vm337, %v330, %v332
      %v341 = vsel %vm337, %v334, %v336
      %vm346 = vcmask 138240
      %v349 = vsel %vm346, 0, %v322
      %v352 = vsel %vm346, 0, %v326
      %v355 = vsel %vm346, 0, %v330
      %v358 = vsel %vm346, 0, %v334
      %v361 = vsel %vm346, %v324, 0
      %v364 = vsel %vm346, %v328, 0
      %v367 = vsel %vm346, %v332, 0
      %v370 = vsel %vm346, %v336, 0
      %v373 = vunpack.c.l.b16 %v280
      %v374 = vunpack.c.h.b16 %v280
      %v375 = vpack.c.b16 %v373, %v373
      %v376 = vpack.c.b16 %v374, %v374
      %v378 = vpack.i.b16 %v375, %v375
      %v380 = vperm.slane %v378, 0
      %v382 = vpack.i.b16 %v376, %v376
      %v384 = vperm.slane %v382, 0
      %v385 = vunpack.c.l.bf16 %v349
      %v386 = vunpack.c.l.bf16 %v338
      %v387 = vunpack.c.h.bf16 %v349
      %v388 = vunpack.c.h.bf16 %v338
      %v389 = vunpack.c.l.bf16 %v352
      %v390 = vunpack.c.l.bf16 %v339
      %v391 = vunpack.c.h.bf16 %v352
      %v392 = vunpack.c.h.bf16 %v339
      %v393 = vunpack.c.l.bf16 %v355
      %v394 = vunpack.c.l.bf16 %v340
      %v395 = vunpack.c.h.bf16 %v355
      %v396 = vunpack.c.h.bf16 %v340
      %v397 = vunpack.c.l.bf16 %v358
      %v398 = vunpack.c.l.bf16 %v341
      %v399 = vunpack.c.h.bf16 %v358
      %v400 = vunpack.c.h.bf16 %v341
      %v401 = vunpack.c.l.bf16 %v380
      %v402 = vunpack.c.l.bf16 %v384
      %v403 = vmul.f32 %v385, %v401
      %v404 = vmul.f32 %v386, %v402
      %v405 = vmul.f32 %v387, %v401
      %v406 = vmul.f32 %v388, %v402
      %v407 = vmul.f32 %v389, %v401
      %v408 = vmul.f32 %v390, %v402
      %v409 = vmul.f32 %v391, %v401
      %v410 = vmul.f32 %v392, %v402
      %v411 = vmul.f32 %v393, %v401
      %v412 = vmul.f32 %v394, %v402
      %v413 = vmul.f32 %v395, %v401
      %v414 = vmul.f32 %v396, %v402
      %v415 = vmul.f32 %v397, %v401
      %v416 = vmul.f32 %v398, %v402
      %v417 = vmul.f32 %v399, %v401
      %v418 = vmul.f32 %v400, %v402
      %v419 = vpack.c.bf16 %v404, %v403
      %v420 = vpack.c.bf16 %v406, %v405
      %v421 = vpack.c.bf16 %v408, %v407
      %v422 = vpack.c.bf16 %v410, %v409
      %v423 = vpack.c.bf16 %v412, %v411
      %v424 = vpack.c.bf16 %v414, %v413
      %v425 = vpack.c.bf16 %v416, %v415
      %v426 = vpack.c.bf16 %v418, %v417
      %v428 = vunpack.c.l.b16 %v288
      %v429 = vunpack.c.h.b16 %v288
      %v430 = vpack.c.b16 %v428, %v428
      %v431 = vpack.c.b16 %v429, %v429
      %v433 = vpack.i.b16 %v430, %v430
      %v435 = vperm.slane %v433, 0
      %v437 = vpack.i.b16 %v431, %v431
      %v439 = vperm.slane %v437, 0
      %v440 = vunpack.c.l.bf16 %v361
      %v441 = vunpack.c.h.bf16 %v361
      %v442 = vunpack.c.l.bf16 %v364
      %v443 = vunpack.c.h.bf16 %v364
      %v444 = vunpack.c.l.bf16 %v367
      %v445 = vunpack.c.h.bf16 %v367
      %v446 = vunpack.c.l.bf16 %v370
      %v447 = vunpack.c.h.bf16 %v370
      %v448 = vunpack.c.l.bf16 %v435
      %v449 = vunpack.c.l.bf16 %v439
      %452 = vrot.lane.b32.xlu0 %v448, 2
      %v453 = vpop.permute.xlu0 %452
      %454 = vrot.lane.b32.xlu0 %v449, 2
      %v455 = vpop.permute.xlu0 %454
      %vm456 = vcmask 15360
      %v457 = vsel %vm456, %v453, %v455
      %v461 = vmul.f32 %v385, %v453
      %v462 = vmul.f32 %v386, %v457
      %v463 = vmul.f32 %v440, %v455
      %v464 = vmul.f32 %v387, %v453
      %v465 = vmul.f32 %v388, %v457
      %v466 = vmul.f32 %v441, %v455
      %v467 = vmul.f32 %v389, %v453
      %v468 = vmul.f32 %v390, %v457
      %v469 = vmul.f32 %v442, %v455
      %v470 = vmul.f32 %v391, %v453
      %v471 = vmul.f32 %v392, %v457
      %v472 = vmul.f32 %v443, %v455
      %v473 = vmul.f32 %v393, %v453
      %v474 = vmul.f32 %v394, %v457
      %v475 = vmul.f32 %v444, %v455
      %v476 = vmul.f32 %v395, %v453
      %v477 = vmul.f32 %v396, %v457
      %v478 = vmul.f32 %v445, %v455
      %v479 = vmul.f32 %v397, %v453
      %v480 = vmul.f32 %v398, %v457
      %v481 = vmul.f32 %v446, %v455
      %v482 = vmul.f32 %v399, %v453
      %v483 = vmul.f32 %v400, %v457
      %v484 = vmul.f32 %v447, %v455
      %v485 = vpack.c.bf16 %v462, %v461
      %v486 = vpack.c.bf16 %v463, %v463
      %v487 = vpack.c.bf16 %v465, %v464
      %v488 = vpack.c.bf16 %v466, %v466
      %v489 = vpack.c.bf16 %v468, %v467
      %v490 = vpack.c.bf16 %v469, %v469
      %v491 = vpack.c.bf16 %v471, %v470
      %v492 = vpack.c.bf16 %v472, %v472
      %v493 = vpack.c.bf16 %v474, %v473
      %v494 = vpack.c.bf16 %v475, %v475
      %v495 = vpack.c.bf16 %v477, %v476
      %v496 = vpack.c.bf16 %v478, %v478
      %v497 = vpack.c.bf16 %v480, %v479
      %v498 = vpack.c.bf16 %v481, %v481
      %v499 = vpack.c.bf16 %v483, %v482
      %v500 = vpack.c.bf16 %v484, %v484
      %503 = vrot.lane.b32.xlu0 %v401, 16
      %v504 = vpop.permute.xlu0 %503
      %505 = vrot.lane.b32.xlu0 %v402, 16
      %v506 = vpop.permute.xlu0 %505
      %vm507 = vcmask 130048
      %v508 = vsel %vm507, %v504, %v506
      %v512 = vmul.f32 %v385, %v504
      %v513 = vmul.f32 %v386, %v508
      %v514 = vmul.f32 %v440, %v506
      %v515 = vmul.f32 %v387, %v504
      %v516 = vmul.f32 %v388, %v508
      %v517 = vmul.f32 %v441, %v506
      %v518 = vmul.f32 %v389, %v504
      %v519 = vmul.f32 %v390, %v508
      %v520 = vmul.f32 %v442, %v506
      %v521 = vmul.f32 %v391, %v504
      %v522 = vmul.f32 %v392, %v508
      %v523 = vmul.f32 %v443, %v506
      %v524 = vmul.f32 %v393, %v504
      %v525 = vmul.f32 %v394, %v508
      %v526 = vmul.f32 %v444, %v506
      %v527 = vmul.f32 %v395, %v504
      %v528 = vmul.f32 %v396, %v508
      %v529 = vmul.f32 %v445, %v506
      %v530 = vmul.f32 %v397, %v504
      %v531 = vmul.f32 %v398, %v508
      %v532 = vmul.f32 %v446, %v506
      %v533 = vmul.f32 %v399, %v504
      %v534 = vmul.f32 %v400, %v508
      %v535 = vmul.f32 %v447, %v506
      %v536 = vpack.c.bf16 %v513, %v512
      %v537 = vpack.c.bf16 %v514, %v514
      %v538 = vpack.c.bf16 %v516, %v515
      %v539 = vpack.c.bf16 %v517, %v517
      %v540 = vpack.c.bf16 %v519, %v518
      %v541 = vpack.c.bf16 %v520, %v520
      %v542 = vpack.c.bf16 %v522, %v521
      %v543 = vpack.c.bf16 %v523, %v523
      %v544 = vpack.c.bf16 %v525, %v524
      %v545 = vpack.c.bf16 %v526, %v526
      %v546 = vpack.c.bf16 %v528, %v527
      %v547 = vpack.c.bf16 %v529, %v529
      %v548 = vpack.c.bf16 %v531, %v530
      %v549 = vpack.c.bf16 %v532, %v532
      %v550 = vpack.c.bf16 %v534, %v533
      %v551 = vpack.c.bf16 %v535, %v535
      %552 = vrot.lane.b32.xlu0 %v448, 18
      %v553 = vpop.permute.xlu0 %552
      %554 = vrot.lane.b32.xlu0 %v449, 18
      %v555 = vpop.permute.xlu0 %554
      %vm556 = vcmask 146432
      %v557 = vsel %vm556, %v553, %v555
      %v561 = vmul.f32 %v385, %v553
      %v562 = vmul.f32 %v386, %v557
      %v563 = vmul.f32 %v440, %v555
      %v564 = vmul.f32 %v387, %v553
      %v565 = vmul.f32 %v388, %v557
      %v566 = vmul.f32 %v441, %v555
      %v567 = vmul.f32 %v389, %v553
      %v568 = vmul.f32 %v390, %v557
      %v569 = vmul.f32 %v442, %v555
      %v570 = vmul.f32 %v391, %v553
      %v571 = vmul.f32 %v392, %v557
      %v572 = vmul.f32 %v443, %v555
      %v573 = vmul.f32 %v393, %v553
      %v574 = vmul.f32 %v394, %v557
      %v575 = vmul.f32 %v444, %v555
      %v576 = vmul.f32 %v395, %v553
      %v577 = vmul.f32 %v396, %v557
      %v578 = vmul.f32 %v445, %v555
      %v579 = vmul.f32 %v397, %v553
      %v580 = vmul.f32 %v398, %v557
      %v581 = vmul.f32 %v446, %v555
      %v582 = vmul.f32 %v399, %v553
      %v583 = vmul.f32 %v400, %v557
      %v584 = vmul.f32 %v447, %v555
      %v585 = vpack.c.bf16 %v562, %v561
      %v586 = vpack.c.bf16 %v563, %v563
      %v587 = vpack.c.bf16 %v565, %v564
      %v588 = vpack.c.bf16 %v566, %v566
      %v589 = vpack.c.bf16 %v568, %v567
      %v590 = vpack.c.bf16 %v569, %v569
      %v591 = vpack.c.bf16 %v571, %v570
      %v592 = vpack.c.bf16 %v572, %v572
      %v593 = vpack.c.bf16 %v574, %v573
      %v594 = vpack.c.bf16 %v575, %v575
      %v595 = vpack.c.bf16 %v577, %v576
      %v596 = vpack.c.bf16 %v578, %v578
      %v597 = vpack.c.bf16 %v580, %v579
      %v598 = vpack.c.bf16 %v581, %v581
      %v599 = vpack.c.bf16 %v583, %v582
      %v600 = vpack.c.bf16 %v584, %v584
      %601 = vrot.lane.b32.xlu0 %v401, 32
      %v602 = vpop.permute.xlu0 %601
      %603 = vrot.lane.b32.xlu0 %v402, 32
      %v604 = vpop.permute.xlu0 %603
      %vm605 = vcmask 261120
      %v606 = vsel %vm605, %v602, %v604
      %v610 = vmul.f32 %v385, %v602
      %v611 = vmul.f32 %v386, %v606
      %v612 = vmul.f32 %v440, %v604
      %v613 = vmul.f32 %v387, %v602
      %v614 = vmul.f32 %v388, %v606
      %v615 = vmul.f32 %v441, %v604
      %v616 = vmul.f32 %v389, %v602
      %v617 = vmul.f32 %v390, %v606
      %v618 = vmul.f32 %v442, %v604
      %v619 = vmul.f32 %v391, %v602
      %v620 = vmul.f32 %v392, %v606
      %v621 = vmul.f32 %v443, %v604
      %v622 = vmul.f32 %v393, %v602
      %v623 = vmul.f32 %v394, %v606
      %v624 = vmul.f32 %v444, %v604
      %v625 = vmul.f32 %v395, %v602
      %v626 = vmul.f32 %v396, %v606
      %v627 = vmul.f32 %v445, %v604
      %v628 = vmul.f32 %v397, %v602
      %v629 = vmul.f32 %v398, %v606
      %v630 = vmul.f32 %v446, %v604
      %v631 = vmul.f32 %v399, %v602
      %v632 = vmul.f32 %v400, %v606
      %v633 = vmul.f32 %v447, %v604
      %v634 = vpack.c.bf16 %v611, %v610
      %v635 = vpack.c.bf16 %v612, %v612
      %v636 = vpack.c.bf16 %v614, %v613
      %v637 = vpack.c.bf16 %v615, %v615
      %v638 = vpack.c.bf16 %v617, %v616
      %v639 = vpack.c.bf16 %v618, %v618
      %v640 = vpack.c.bf16 %v620, %v619
      %v641 = vpack.c.bf16 %v621, %v621
      %v642 = vpack.c.bf16 %v623, %v622
      %v643 = vpack.c.bf16 %v624, %v624
      %v644 = vpack.c.bf16 %v626, %v625
      %v645 = vpack.c.bf16 %v627, %v627
      %v646 = vpack.c.bf16 %v629, %v628
      %v647 = vpack.c.bf16 %v630, %v630
      %v648 = vpack.c.bf16 %v632, %v631
      %v649 = vpack.c.bf16 %v633, %v633
      %650 = vrot.lane.b32.xlu0 %v448, 34
      %v651 = vpop.permute.xlu0 %650
      %652 = vrot.lane.b32.xlu0 %v449, 34
      %v653 = vpop.permute.xlu0 %652
      %vm654 = vcmask 277504
      %v655 = vsel %vm654, %v651, %v653
      %v659 = vmul.f32 %v385, %v651
      %v660 = vmul.f32 %v386, %v655
      %v661 = vmul.f32 %v440, %v653
      %v662 = vmul.f32 %v387, %v651
      %v663 = vmul.f32 %v388, %v655
      %v664 = vmul.f32 %v441, %v653
      %v665 = vmul.f32 %v389, %v651
      %v666 = vmul.f32 %v390, %v655
      %v667 = vmul.f32 %v442, %v653
      %v668 = vmul.f32 %v391, %v651
      %v669 = vmul.f32 %v392, %v655
      %v670 = vmul.f32 %v443, %v653
      %v671 = vmul.f32 %v393, %v651
      %v672 = vmul.f32 %v394, %v655
      %v673 = vmul.f32 %v444, %v653
      %v674 = vmul.f32 %v395, %v651
      %v675 = vmul.f32 %v396, %v655
      %v676 = vmul.f32 %v445, %v653
      %v677 = vmul.f32 %v397, %v651
      %v678 = vmul.f32 %v398, %v655
      %v679 = vmul.f32 %v446, %v653
      %v680 = vmul.f32 %v399, %v651
      %v681 = vmul.f32 %v400, %v655
      %v682 = vmul.f32 %v447, %v653
      %v683 = vpack.c.bf16 %v660, %v659
      %v684 = vpack.c.bf16 %v661, %v661
      %v685 = vpack.c.bf16 %v663, %v662
      %v686 = vpack.c.bf16 %v664, %v664
      %v687 = vpack.c.bf16 %v666, %v665
      %v688 = vpack.c.bf16 %v667, %v667
      %v689 = vpack.c.bf16 %v669, %v668
      %v690 = vpack.c.bf16 %v670, %v670
      %v691 = vpack.c.bf16 %v672, %v671
      %v692 = vpack.c.bf16 %v673, %v673
      %v693 = vpack.c.bf16 %v675, %v674
      %v694 = vpack.c.bf16 %v676, %v676
      %v695 = vpack.c.bf16 %v678, %v677
      %v696 = vpack.c.bf16 %v679, %v679
      %v697 = vpack.c.bf16 %v681, %v680
      %v698 = vpack.c.bf16 %v682, %v682
      %v707 = vunpack.c.l.b16 %v419
      %v708 = vunpack.c.h.b16 %v419
      %v709 = vunpack.c.l.b16 %v420
      %v710 = vunpack.c.h.b16 %v420
      %v711 = vunpack.c.l.b16 %v421
      %v712 = vunpack.c.h.b16 %v421
      %v713 = vunpack.c.l.b16 %v422
      %v714 = vunpack.c.h.b16 %v422
      %v715 = vunpack.c.l.b16 %v423
      %v716 = vunpack.c.h.b16 %v423
      %v717 = vunpack.c.l.b16 %v424
      %v718 = vunpack.c.h.b16 %v424
      %v719 = vunpack.c.l.b16 %v425
      %v720 = vunpack.c.h.b16 %v425
      %v721 = vunpack.c.l.b16 %v426
      %v722 = vunpack.c.h.b16 %v426
      %v723 = vpack.c.b16 %v709, %v707
      %v724 = vpack.c.b16 %v710, %v708
      %v725 = vpack.c.b16 %v713, %v711
      %v726 = vpack.c.b16 %v714, %v712
      %v727 = vpack.c.b16 %v717, %v715
      %v728 = vpack.c.b16 %v718, %v716
      %v729 = vpack.c.b16 %v721, %v719
      %v730 = vpack.c.b16 %v722, %v720
      %747 = vrot.lane.b32.xlu0 %v349, 127
      %v748 = vpop.permute.xlu0 %747
      %749 = vrot.lane.b32.xlu0 %v338, 127
      %v750 = vpop.permute.xlu0 %749
      %751 = vrot.lane.b32.xlu0 %v361, 127
      %v752 = vpop.permute.xlu0 %751
      %753 = vrot.lane.b32.xlu0 %v352, 127
      %v754 = vpop.permute.xlu0 %753
      %755 = vrot.lane.b32.xlu0 %v339, 127
      %v756 = vpop.permute.xlu0 %755
      %757 = vrot.lane.b32.xlu0 %v364, 127
      %v758 = vpop.permute.xlu0 %757
      %759 = vrot.lane.b32.xlu0 %v355, 127
      %v760 = vpop.permute.xlu0 %759
      %761 = vrot.lane.b32.xlu0 %v340, 127
      %v762 = vpop.permute.xlu0 %761
      %763 = vrot.lane.b32.xlu0 %v367, 127
      %v764 = vpop.permute.xlu0 %763
      %765 = vrot.lane.b32.xlu0 %v358, 127
      %v766 = vpop.permute.xlu0 %765
      %767 = vrot.lane.b32.xlu0 %v341, 127
      %v768 = vpop.permute.xlu0 %767
      %769 = vrot.lane.b32.xlu0 %v370, 127
      %v770 = vpop.permute.xlu0 %769
      %vm771 = vcmask 1039360
      %v772 = vsel %vm771, %v748, %v750
      %v773 = vsel %vm771, %v750, %v752
      %v774 = vsel %vm771, %v754, %v756
      %v775 = vsel %vm771, %v756, %v758
      %v776 = vsel %vm771, %v760, %v762
      %v777 = vsel %vm771, %v762, %v764
      %v778 = vsel %vm771, %v766, %v768
      %v779 = vsel %vm771, %v768, %v770
      %v804 = vunpack.c.l.b16 %v485
      %v805 = vunpack.c.h.b16 %v485
      %v806 = vunpack.c.l.b16 %v486
      %v807 = vunpack.c.l.b16 %v487
      %v808 = vunpack.c.h.b16 %v487
      %v809 = vunpack.c.l.b16 %v488
      %v810 = vunpack.c.l.b16 %v489
      %v811 = vunpack.c.h.b16 %v489
      %v812 = vunpack.c.l.b16 %v490
      %v813 = vunpack.c.l.b16 %v491
      %v814 = vunpack.c.h.b16 %v491
      %v815 = vunpack.c.l.b16 %v492
      %v816 = vunpack.c.l.b16 %v493
      %v817 = vunpack.c.h.b16 %v493
      %v818 = vunpack.c.l.b16 %v494
      %v819 = vunpack.c.l.b16 %v495
      %v820 = vunpack.c.h.b16 %v495
      %v821 = vunpack.c.l.b16 %v496
      %v822 = vunpack.c.l.b16 %v497
      %v823 = vunpack.c.h.b16 %v497
      %v824 = vunpack.c.l.b16 %v498
      %v825 = vunpack.c.l.b16 %v499
      %v826 = vunpack.c.h.b16 %v499
      %v827 = vunpack.c.l.b16 %v500
      %v828 = vpack.c.b16 %v807, %v804
      %v829 = vpack.c.b16 %v808, %v805
      %v830 = vpack.c.b16 %v809, %v806
      %v831 = vpack.c.b16 %v813, %v810
      %v832 = vpack.c.b16 %v814, %v811
      %v833 = vpack.c.b16 %v815, %v812
      %v834 = vpack.c.b16 %v819, %v816
      %v835 = vpack.c.b16 %v820, %v817
      %v836 = vpack.c.b16 %v821, %v818
      %v837 = vpack.c.b16 %v825, %v822
      %v838 = vpack.c.b16 %v826, %v823
      %v839 = vpack.c.b16 %v827, %v824
      %840 = vrot.lane.b32.xlu0 %v828, 126
      %v841 = vpop.permute.xlu0 %840
      %842 = vrot.lane.b32.xlu0 %v829, 126
      %v843 = vpop.permute.xlu0 %842
      %844 = vrot.lane.b32.xlu0 %v830, 126
      %v845 = vpop.permute.xlu0 %844
      %846 = vrot.lane.b32.xlu0 %v831, 126
      %v847 = vpop.permute.xlu0 %846
      %848 = vrot.lane.b32.xlu0 %v832, 126
      %v849 = vpop.permute.xlu0 %848
      %850 = vrot.lane.b32.xlu0 %v833, 126
      %v851 = vpop.permute.xlu0 %850
      %852 = vrot.lane.b32.xlu0 %v834, 126
      %v853 = vpop.permute.xlu0 %852
      %854 = vrot.lane.b32.xlu0 %v835, 126
      %v855 = vpop.permute.xlu0 %854
      %856 = vrot.lane.b32.xlu0 %v836, 126
      %v857 = vpop.permute.xlu0 %856
      %858 = vrot.lane.b32.xlu0 %v837, 126
      %v859 = vpop.permute.xlu0 %858
      %860 = vrot.lane.b32.xlu0 %v838, 126
      %v861 = vpop.permute.xlu0 %860
      %862 = vrot.lane.b32.xlu0 %v839, 126
      %v863 = vpop.permute.xlu0 %862
      %vm864 = vcmask 1031168
      %v865 = vsel %vm864, %v841, %v843
      %v866 = vsel %vm864, %v843, %v845
      %v867 = vsel %vm864, %v847, %v849
      %v868 = vsel %vm864, %v849, %v851
      %v869 = vsel %vm864, %v853, %v855
      %v870 = vsel %vm864, %v855, %v857
      %v871 = vsel %vm864, %v859, %v861
      %v872 = vsel %vm864, %v861, %v863
      %v897 = vunpack.c.l.b16 %v536
      %v898 = vunpack.c.h.b16 %v536
      %v899 = vunpack.c.l.b16 %v537
      %v900 = vunpack.c.l.b16 %v538
      %v901 = vunpack.c.h.b16 %v538
      %v902 = vunpack.c.l.b16 %v539
      %v903 = vunpack.c.l.b16 %v540
      %v904 = vunpack.c.h.b16 %v540
      %v905 = vunpack.c.l.b16 %v541
      %v906 = vunpack.c.l.b16 %v542
      %v907 = vunpack.c.h.b16 %v542
      %v908 = vunpack.c.l.b16 %v543
      %v909 = vunpack.c.l.b16 %v544
      %v910 = vunpack.c.h.b16 %v544
      %v911 = vunpack.c.l.b16 %v545
      %v912 = vunpack.c.l.b16 %v546
      %v913 = vunpack.c.h.b16 %v546
      %v914 = vunpack.c.l.b16 %v547
      %v915 = vunpack.c.l.b16 %v548
      %v916 = vunpack.c.h.b16 %v548
      %v917 = vunpack.c.l.b16 %v549
      %v918 = vunpack.c.l.b16 %v550
      %v919 = vunpack.c.h.b16 %v550
      %v920 = vunpack.c.l.b16 %v551
      %v921 = vpack.c.b16 %v900, %v897
      %v922 = vpack.c.b16 %v901, %v898
      %v923 = vpack.c.b16 %v902, %v899
      %v924 = vpack.c.b16 %v906, %v903
      %v925 = vpack.c.b16 %v907, %v904
      %v926 = vpack.c.b16 %v908, %v905
      %v927 = vpack.c.b16 %v912, %v909
      %v928 = vpack.c.b16 %v913, %v910
      %v929 = vpack.c.b16 %v914, %v911
      %v930 = vpack.c.b16 %v918, %v915
      %v931 = vpack.c.b16 %v919, %v916
      %v932 = vpack.c.b16 %v920, %v917
      %933 = vrot.lane.b32.xlu0 %v921, 112
      %v934 = vpop.permute.xlu0 %933
      %935 = vrot.lane.b32.xlu0 %v922, 112
      %v936 = vpop.permute.xlu0 %935
      %937 = vrot.lane.b32.xlu0 %v923, 112
      %v938 = vpop.permute.xlu0 %937
      %939 = vrot.lane.b32.xlu0 %v924, 112
      %v940 = vpop.permute.xlu0 %939
      %941 = vrot.lane.b32.xlu0 %v925, 112
      %v942 = vpop.permute.xlu0 %941
      %943 = vrot.lane.b32.xlu0 %v926, 112
      %v944 = vpop.permute.xlu0 %943
      %945 = vrot.lane.b32.xlu0 %v927, 112
      %v946 = vpop.permute.xlu0 %945
      %947 = vrot.lane.b32.xlu0 %v928, 112
      %v948 = vpop.permute.xlu0 %947
      %949 = vrot.lane.b32.xlu0 %v929, 112
      %v950 = vpop.permute.xlu0 %949
      %951 = vrot.lane.b32.xlu0 %v930, 112
      %v952 = vpop.permute.xlu0 %951
      %953 = vrot.lane.b32.xlu0 %v931, 112
      %v954 = vpop.permute.xlu0 %953
      %955 = vrot.lane.b32.xlu0 %v932, 112
      %v956 = vpop.permute.xlu0 %955
      %vm957 = vcmask 916480
      %v958 = vsel %vm957, %v934, %v936
      %v959 = vsel %vm957, %v936, %v938
      %v960 = vsel %vm957, %v940, %v942
      %v961 = vsel %vm957, %v942, %v944
      %v962 = vsel %vm957, %v946, %v948
      %v963 = vsel %vm957, %v948, %v950
      %v964 = vsel %vm957, %v952, %v954
      %v965 = vsel %vm957, %v954, %v956
      %974 = vrot.lane.b32.xlu0 %v349, 111
      %v975 = vpop.permute.xlu0 %974
      %976 = vrot.lane.b32.xlu0 %v338, 111
      %v977 = vpop.permute.xlu0 %976
      %978 = vrot.lane.b32.xlu0 %v361, 111
      %v979 = vpop.permute.xlu0 %978
      %980 = vrot.lane.b32.xlu0 %v352, 111
      %v981 = vpop.permute.xlu0 %980
      %982 = vrot.lane.b32.xlu0 %v339, 111
      %v983 = vpop.permute.xlu0 %982
      %984 = vrot.lane.b32.xlu0 %v364, 111
      %v985 = vpop.permute.xlu0 %984
      %986 = vrot.lane.b32.xlu0 %v355, 111
      %v987 = vpop.permute.xlu0 %986
      %988 = vrot.lane.b32.xlu0 %v340, 111
      %v989 = vpop.permute.xlu0 %988
      %990 = vrot.lane.b32.xlu0 %v367, 111
      %v991 = vpop.permute.xlu0 %990
      %992 = vrot.lane.b32.xlu0 %v358, 111
      %v993 = vpop.permute.xlu0 %992
      %994 = vrot.lane.b32.xlu0 %v341, 111
      %v995 = vpop.permute.xlu0 %994
      %996 = vrot.lane.b32.xlu0 %v370, 111
      %v997 = vpop.permute.xlu0 %996
      %vm998 = vcmask 908288
      %v999 = vsel %vm998, %v975, %v977
      %v1000 = vsel %vm998, %v977, %v979
      %v1001 = vsel %vm998, %v981, %v983
      %v1002 = vsel %vm998, %v983, %v985
      %v1003 = vsel %vm998, %v987, %v989
      %v1004 = vsel %vm998, %v989, %v991
      %v1005 = vsel %vm998, %v993, %v995
      %v1006 = vsel %vm998, %v995, %v997
      %v1031 = vunpack.c.l.b16 %v585
      %v1032 = vunpack.c.h.b16 %v585
      %v1033 = vunpack.c.l.b16 %v586
      %v1034 = vunpack.c.l.b16 %v587
      %v1035 = vunpack.c.h.b16 %v587
      %v1036 = vunpack.c.l.b16 %v588
      %v1037 = vunpack.c.l.b16 %v589
      %v1038 = vunpack.c.h.b16 %v589
      %v1039 = vunpack.c.l.b16 %v590
      %v1040 = vunpack.c.l.b16 %v591
      %v1041 = vunpack.c.h.b16 %v591
      %v1042 = vunpack.c.l.b16 %v592
      %v1043 = vunpack.c.l.b16 %v593
      %v1044 = vunpack.c.h.b16 %v593
      %v1045 = vunpack.c.l.b16 %v594
      %v1046 = vunpack.c.l.b16 %v595
      %v1047 = vunpack.c.h.b16 %v595
      %v1048 = vunpack.c.l.b16 %v596
      %v1049 = vunpack.c.l.b16 %v597
      %v1050 = vunpack.c.h.b16 %v597
      %v1051 = vunpack.c.l.b16 %v598
      %v1052 = vunpack.c.l.b16 %v599
      %v1053 = vunpack.c.h.b16 %v599
      %v1054 = vunpack.c.l.b16 %v600
      %v1055 = vpack.c.b16 %v1034, %v1031
      %v1056 = vpack.c.b16 %v1035, %v1032
      %v1057 = vpack.c.b16 %v1036, %v1033
      %v1058 = vpack.c.b16 %v1040, %v1037
      %v1059 = vpack.c.b16 %v1041, %v1038
      %v1060 = vpack.c.b16 %v1042, %v1039
      %v1061 = vpack.c.b16 %v1046, %v1043
      %v1062 = vpack.c.b16 %v1047, %v1044
      %v1063 = vpack.c.b16 %v1048, %v1045
      %v1064 = vpack.c.b16 %v1052, %v1049
      %v1065 = vpack.c.b16 %v1053, %v1050
      %v1066 = vpack.c.b16 %v1054, %v1051
      %1067 = vrot.lane.b32.xlu0 %v1055, 110
      %v1068 = vpop.permute.xlu0 %1067
      %1069 = vrot.lane.b32.xlu0 %v1056, 110
      %v1070 = vpop.permute.xlu0 %1069
      %1071 = vrot.lane.b32.xlu0 %v1057, 110
      %v1072 = vpop.permute.xlu0 %1071
      %1073 = vrot.lane.b32.xlu0 %v1058, 110
      %v1074 = vpop.permute.xlu0 %1073
      %1075 = vrot.lane.b32.xlu0 %v1059, 110
      %v1076 = vpop.permute.xlu0 %1075
      %1077 = vrot.lane.b32.xlu0 %v1060, 110
      %v1078 = vpop.permute.xlu0 %1077
      %1079 = vrot.lane.b32.xlu0 %v1061, 110
      %v1080 = vpop.permute.xlu0 %1079
      %1081 = vrot.lane.b32.xlu0 %v1062, 110
      %v1082 = vpop.permute.xlu0 %1081
      %1083 = vrot.lane.b32.xlu0 %v1063, 110
      %v1084 = vpop.permute.xlu0 %1083
      %1085 = vrot.lane.b32.xlu0 %v1064, 110
      %v1086 = vpop.permute.xlu0 %1085
      %1087 = vrot.lane.b32.xlu0 %v1065, 110
      %v1088 = vpop.permute.xlu0 %1087
      %1089 = vrot.lane.b32.xlu0 %v1066, 110
      %v1090 = vpop.permute.xlu0 %1089
      %vm1091 = vcmask 900096
      %v1092 = vsel %vm1091, %v1068, %v1070
      %v1093 = vsel %vm1091, %v1070, %v1072
      %v1094 = vsel %vm1091, %v1074, %v1076
      %v1095 = vsel %vm1091, %v1076, %v1078
      %v1096 = vsel %vm1091, %v1080, %v1082
      %v1097 = vsel %vm1091, %v1082, %v1084
      %v1098 = vsel %vm1091, %v1086, %v1088
      %v1099 = vsel %vm1091, %v1088, %v1090
      %v1124 = vunpack.c.l.b16 %v634
      %v1125 = vunpack.c.h.b16 %v634
      %v1126 = vunpack.c.l.b16 %v635
      %v1127 = vunpack.c.l.b16 %v636
      %v1128 = vunpack.c.h.b16 %v636
      %v1129 = vunpack.c.l.b16 %v637
      %v1130 = vunpack.c.l.b16 %v638
      %v1131 = vunpack.c.h.b16 %v638
      %v1132 = vunpack.c.l.b16 %v639
      %v1133 = vunpack.c.l.b16 %v640
      %v1134 = vunpack.c.h.b16 %v640
      %v1135 = vunpack.c.l.b16 %v641
      %v1136 = vunpack.c.l.b16 %v642
      %v1137 = vunpack.c.h.b16 %v642
      %v1138 = vunpack.c.l.b16 %v643
      %v1139 = vunpack.c.l.b16 %v644
      %v1140 = vunpack.c.h.b16 %v644
      %v1141 = vunpack.c.l.b16 %v645
      %v1142 = vunpack.c.l.b16 %v646
      %v1143 = vunpack.c.h.b16 %v646
      %v1144 = vunpack.c.l.b16 %v647
      %v1145 = vunpack.c.l.b16 %v648
      %v1146 = vunpack.c.h.b16 %v648
      %v1147 = vunpack.c.l.b16 %v649
      %v1148 = vpack.c.b16 %v1127, %v1124
      %v1149 = vpack.c.b16 %v1128, %v1125
      %v1150 = vpack.c.b16 %v1129, %v1126
      %v1151 = vpack.c.b16 %v1133, %v1130
      %v1152 = vpack.c.b16 %v1134, %v1131
      %v1153 = vpack.c.b16 %v1135, %v1132
      %v1154 = vpack.c.b16 %v1139, %v1136
      %v1155 = vpack.c.b16 %v1140, %v1137
      %v1156 = vpack.c.b16 %v1141, %v1138
      %v1157 = vpack.c.b16 %v1145, %v1142
      %v1158 = vpack.c.b16 %v1146, %v1143
      %v1159 = vpack.c.b16 %v1147, %v1144
      %1160 = vrot.lane.b32.xlu0 %v1148, 96
      %v1161 = vpop.permute.xlu0 %1160
      %1162 = vrot.lane.b32.xlu0 %v1149, 96
      %v1163 = vpop.permute.xlu0 %1162
      %1164 = vrot.lane.b32.xlu0 %v1150, 96
      %v1165 = vpop.permute.xlu0 %1164
      %1166 = vrot.lane.b32.xlu0 %v1151, 96
      %v1167 = vpop.permute.xlu0 %1166
      %1168 = vrot.lane.b32.xlu0 %v1152, 96
      %v1169 = vpop.permute.xlu0 %1168
      %1170 = vrot.lane.b32.xlu0 %v1153, 96
      %v1171 = vpop.permute.xlu0 %1170
      %1172 = vrot.lane.b32.xlu0 %v1154, 96
      %v1173 = vpop.permute.xlu0 %1172
      %1174 = vrot.lane.b32.xlu0 %v1155, 96
      %v1175 = vpop.permute.xlu0 %1174
      %1176 = vrot.lane.b32.xlu0 %v1156, 96
      %v1177 = vpop.permute.xlu0 %1176
      %1178 = vrot.lane.b32.xlu0 %v1157, 96
      %v1179 = vpop.permute.xlu0 %1178
      %1180 = vrot.lane.b32.xlu0 %v1158, 96
      %v1181 = vpop.permute.xlu0 %1180
      %1182 = vrot.lane.b32.xlu0 %v1159, 96
      %v1183 = vpop.permute.xlu0 %1182
      %vm1184 = vcmask 785408
      %v1185 = vsel %vm1184, %v1161, %v1163
      %v1186 = vsel %vm1184, %v1163, %v1165
      %v1187 = vsel %vm1184, %v1167, %v1169
      %v1188 = vsel %vm1184, %v1169, %v1171
      %v1189 = vsel %vm1184, %v1173, %v1175
      %v1190 = vsel %vm1184, %v1175, %v1177
      %v1191 = vsel %vm1184, %v1179, %v1181
      %v1192 = vsel %vm1184, %v1181, %v1183
      %1201 = vrot.lane.b32.xlu0 %v349, 95
      %v1202 = vpop.permute.xlu0 %1201
      %1203 = vrot.lane.b32.xlu0 %v338, 95
      %v1204 = vpop.permute.xlu0 %1203
      %1205 = vrot.lane.b32.xlu0 %v361, 95
      %v1206 = vpop.permute.xlu0 %1205
      %1207 = vrot.lane.b32.xlu0 %v352, 95
      %v1208 = vpop.permute.xlu0 %1207
      %1209 = vrot.lane.b32.xlu0 %v339, 95
      %v1210 = vpop.permute.xlu0 %1209
      %1211 = vrot.lane.b32.xlu0 %v364, 95
      %v1212 = vpop.permute.xlu0 %1211
      %1213 = vrot.lane.b32.xlu0 %v355, 95
      %v1214 = vpop.permute.xlu0 %1213
      %1215 = vrot.lane.b32.xlu0 %v340, 95
      %v1216 = vpop.permute.xlu0 %1215
      %1217 = vrot.lane.b32.xlu0 %v367, 95
      %v1218 = vpop.permute.xlu0 %1217
      %1219 = vrot.lane.b32.xlu0 %v358, 95
      %v1220 = vpop.permute.xlu0 %1219
      %1221 = vrot.lane.b32.xlu0 %v341, 95
      %v1222 = vpop.permute.xlu0 %1221
      %1223 = vrot.lane.b32.xlu0 %v370, 95
      %v1224 = vpop.permute.xlu0 %1223
      %vm1225 = vcmask 777216
      %v1226 = vsel %vm1225, %v1202, %v1204
      %v1227 = vsel %vm1225, %v1204, %v1206
      %v1228 = vsel %vm1225, %v1208, %v1210
      %v1229 = vsel %vm1225, %v1210, %v1212
      %v1230 = vsel %vm1225, %v1214, %v1216
      %v1231 = vsel %vm1225, %v1216, %v1218
      %v1232 = vsel %vm1225, %v1220, %v1222
      %v1233 = vsel %vm1225, %v1222, %v1224
      %v1258 = vunpack.c.l.b16 %v683
      %v1259 = vunpack.c.h.b16 %v683
      %v1260 = vunpack.c.l.b16 %v684
      %v1261 = vunpack.c.l.b16 %v685
      %v1262 = vunpack.c.h.b16 %v685
      %v1263 = vunpack.c.l.b16 %v686
      %v1264 = vunpack.c.l.b16 %v687
      %v1265 = vunpack.c.h.b16 %v687
      %v1266 = vunpack.c.l.b16 %v688
      %v1267 = vunpack.c.l.b16 %v689
      %v1268 = vunpack.c.h.b16 %v689
      %v1269 = vunpack.c.l.b16 %v690
      %v1270 = vunpack.c.l.b16 %v691
      %v1271 = vunpack.c.h.b16 %v691
      %v1272 = vunpack.c.l.b16 %v692
      %v1273 = vunpack.c.l.b16 %v693
      %v1274 = vunpack.c.h.b16 %v693
      %v1275 = vunpack.c.l.b16 %v694
      %v1276 = vunpack.c.l.b16 %v695
      %v1277 = vunpack.c.h.b16 %v695
      %v1278 = vunpack.c.l.b16 %v696
      %v1279 = vunpack.c.l.b16 %v697
      %v1280 = vunpack.c.h.b16 %v697
      %v1281 = vunpack.c.l.b16 %v698
      %v1282 = vpack.c.b16 %v1261, %v1258
      %v1283 = vpack.c.b16 %v1262, %v1259
      %v1284 = vpack.c.b16 %v1263, %v1260
      %v1285 = vpack.c.b16 %v1267, %v1264
      %v1286 = vpack.c.b16 %v1268, %v1265
      %v1287 = vpack.c.b16 %v1269, %v1266
      %v1288 = vpack.c.b16 %v1273, %v1270
      %v1289 = vpack.c.b16 %v1274, %v1271
      %v1290 = vpack.c.b16 %v1275, %v1272
      %v1291 = vpack.c.b16 %v1279, %v1276
      %v1292 = vpack.c.b16 %v1280, %v1277
      %v1293 = vpack.c.b16 %v1281, %v1278
      %1294 = vrot.lane.b32.xlu0 %v1282, 94
      %v1295 = vpop.permute.xlu0 %1294
      %1296 = vrot.lane.b32.xlu0 %v1283, 94
      %v1297 = vpop.permute.xlu0 %1296
      %1298 = vrot.lane.b32.xlu0 %v1284, 94
      %v1299 = vpop.permute.xlu0 %1298
      %1300 = vrot.lane.b32.xlu0 %v1285, 94
      %v1301 = vpop.permute.xlu0 %1300
      %1302 = vrot.lane.b32.xlu0 %v1286, 94
      %v1303 = vpop.permute.xlu0 %1302
      %1304 = vrot.lane.b32.xlu0 %v1287, 94
      %v1305 = vpop.permute.xlu0 %1304
      %1306 = vrot.lane.b32.xlu0 %v1288, 94
      %v1307 = vpop.permute.xlu0 %1306
      %1308 = vrot.lane.b32.xlu0 %v1289, 94
      %v1309 = vpop.permute.xlu0 %1308
      %1310 = vrot.lane.b32.xlu0 %v1290, 94
      %v1311 = vpop.permute.xlu0 %1310
      %1312 = vrot.lane.b32.xlu0 %v1291, 94
      %v1313 = vpop.permute.xlu0 %1312
      %1314 = vrot.lane.b32.xlu0 %v1292, 94
      %v1315 = vpop.permute.xlu0 %1314
      %1316 = vrot.lane.b32.xlu0 %v1293, 94
      %v1317 = vpop.permute.xlu0 %1316
      %vm1318 = vcmask 769024
      %v1319 = vsel %vm1318, %v1295, %v1297
      %v1320 = vsel %vm1318, %v1297, %v1299
      %v1321 = vsel %vm1318, %v1301, %v1303
      %v1322 = vsel %vm1318, %v1303, %v1305
      %v1323 = vsel %vm1318, %v1307, %v1309
      %v1324 = vsel %vm1318, %v1309, %v1311
      %v1325 = vsel %vm1318, %v1313, %v1315
      %v1326 = vsel %vm1318, %v1315, %v1317
      %v1335 = vld [vmem:[%s1] sm:$0xff]
      %v1336 = vld [vmem:[%s1 + $0x8] sm:$0xff]
      %v1337 = vld [vmem:[%s1 + $0x10] sm:$0xf]
      %v1338 = vld [vmem:[%s1 + $0x14] sm:$0xff]
      %v1339 = vld [vmem:[%s1 + $0x1c] sm:$0xff]
      %v1340 = vld [vmem:[%s1 + $0x24] sm:$0xf]
      %v1341 = vld [vmem:[%s1 + $0x28] sm:$0xff]
      %v1342 = vld [vmem:[%s1 + $0x30] sm:$0xff]
      %v1343 = vld [vmem:[%s1 + $0x38] sm:$0xf]
      %v1344 = vld [vmem:[%s1 + $0x3c] sm:$0xff]
      %v1345 = vld [vmem:[%s1 + $0x44] sm:$0xff]
      %v1346 = vld [vmem:[%s1 + $0x4c] sm:$0xf]
      %v1359 = vunpack.c.l.b16 %v1335
      %v1360 = vunpack.c.h.b16 %v1335
      %v1361 = vunpack.c.l.b16 %v1336
      %v1362 = vunpack.c.h.b16 %v1336
      %v1363 = vunpack.c.l.b16 %v1337
      %v1364 = vunpack.c.l.b16 %v1338
      %v1365 = vunpack.c.h.b16 %v1338
      %v1366 = vunpack.c.l.b16 %v1339
      %v1367 = vunpack.c.h.b16 %v1339
      %v1368 = vunpack.c.l.b16 %v1340
      %v1369 = vunpack.c.l.b16 %v1341
      %v1370 = vunpack.c.h.b16 %v1341
      %v1371 = vunpack.c.l.b16 %v1342
      %v1372 = vunpack.c.h.b16 %v1342
      %v1373 = vunpack.c.l.b16 %v1343
      %v1374 = vunpack.c.l.b16 %v1344
      %v1375 = vunpack.c.h.b16 %v1344
      %v1376 = vunpack.c.l.b16 %v1345
      %v1377 = vunpack.c.h.b16 %v1345
      %v1378 = vunpack.c.l.b16 %v1346
      %v1379 = vpack.c.b16 %v1364, %v1359
      %v1380 = vpack.c.b16 %v1365, %v1360
      %v1381 = vpack.c.b16 %v1366, %v1361
      %v1382 = vpack.c.b16 %v1367, %v1362
      %v1383 = vpack.c.b16 %v1368, %v1363
      %v1384 = vpack.c.b16 %v1374, %v1369
      %v1385 = vpack.c.b16 %v1375, %v1370
      %v1386 = vpack.c.b16 %v1376, %v1371
      %v1387 = vpack.c.b16 %v1377, %v1372
      %v1388 = vpack.c.b16 %v1378, %v1373
      %vm1397 = vcmask 523264
      %v1399 = vsel %vm1397, %v1383, 0
      %v1402 = vsel %vm1397, %v1388, 0
      %1404 = vmatpush.bf16.msra.mxu0 %v778
      %1405 = vmatpush.bf16.msra.mxu0 %v776
      %1406 = vmatpush.bf16.msra.mxu0 %v774
      %1407 = vmatpush.bf16.msra.mxu0 %v772
      %1408 = vmatpush.bf16.msra.mxu0 %v729
      %1409 = vmatpush.bf16.msra.mxu0 %v727
      %1410 = vmatpush.bf16.msra.mxu0 %v725
      %1411 = vmatpush.bf16.msra.mxu0 %v723
      %1412 = vmatmul.bf16.gmra.mxu0 %v1379
      %v1413 = vpop.f32.mrf.mxu0
      %v1414 = vadd.f32 0.0, %v1413
      %v1415 = vpop.f32.mrf.mxu0
      %v1416 = vadd.f32 0.0, %v1415
      %1417 = vmatmul.bf16.gmra.mxu0 %v1384
      %v1418 = vpop.f32.mrf.mxu0
      %v1419 = vadd.f32 0.0, %v1418
      %v1420 = vpop.f32.mrf.mxu0
      %v1421 = vadd.f32 0.0, %v1420
      %1422 = vdwg.mxu0
      %1423 = vmatpush.bf16.msra.mxu0 %v964
      %1424 = vmatpush.bf16.msra.mxu0 %v962
      %1425 = vmatpush.bf16.msra.mxu0 %v960
      %1426 = vmatpush.bf16.msra.mxu0 %v958
      %1427 = vmatpush.bf16.msra.mxu0 %v871
      %1428 = vmatpush.bf16.msra.mxu0 %v869
      %1429 = vmatpush.bf16.msra.mxu0 %v867
      %1430 = vmatpush.bf16.msra.mxu0 %v865
      %1431 = vmatmul.bf16.gmra.mxu0 %v1380
      %v1432 = vpop.f32.mrf.mxu0
      %v1433 = vadd.f32 %v1414, %v1432
      %v1434 = vpop.f32.mrf.mxu0
      %v1435 = vadd.f32 %v1416, %v1434
      %1436 = vmatmul.bf16.gmra.mxu0 %v1385
      %v1437 = vpop.f32.mrf.mxu0
      %v1438 = vadd.f32 %v1419, %v1437
      %v1439 = vpop.f32.mrf.mxu0
      %v1440 = vadd.f32 %v1421, %v1439
      %1441 = vdwg.mxu0
      %1442 = vmatpush.bf16.msra.mxu0 %v1098
      %1443 = vmatpush.bf16.msra.mxu0 %v1096
      %1444 = vmatpush.bf16.msra.mxu0 %v1094
      %1445 = vmatpush.bf16.msra.mxu0 %v1092
      %1446 = vmatpush.bf16.msra.mxu0 %v1005
      %1447 = vmatpush.bf16.msra.mxu0 %v1003
      %1448 = vmatpush.bf16.msra.mxu0 %v1001
      %1449 = vmatpush.bf16.msra.mxu0 %v999
      %1450 = vmatmul.bf16.gmra.mxu0 %v1381
      %v1451 = vpop.f32.mrf.mxu0
      %v1452 = vadd.f32 %v1433, %v1451
      %v1453 = vpop.f32.mrf.mxu0
      %v1454 = vadd.f32 %v1435, %v1453
      %1455 = vmatmul.bf16.gmra.mxu0 %v1386
      %v1456 = vpop.f32.mrf.mxu0
      %v1457 = vadd.f32 %v1438, %v1456
      %v1458 = vpop.f32.mrf.mxu0
      %v1459 = vadd.f32 %v1440, %v1458
      %1460 = vdwg.mxu0
      %1461 = vmatpush.bf16.msra.mxu0 %v1232
      %1462 = vmatpush.bf16.msra.mxu0 %v1230
      %1463 = vmatpush.bf16.msra.mxu0 %v1228
      %1464 = vmatpush.bf16.msra.mxu0 %v1226
      %1465 = vmatpush.bf16.msra.mxu0 %v1191
      %1466 = vmatpush.bf16.msra.mxu0 %v1189
      %1467 = vmatpush.bf16.msra.mxu0 %v1187
      %1468 = vmatpush.bf16.msra.mxu0 %v1185
      %1469 = vmatmul.bf16.gmra.mxu0 %v1382
      %v1470 = vpop.f32.mrf.mxu0
      %v1471 = vadd.f32 %v1452, %v1470
      %v1472 = vpop.f32.mrf.mxu0
      %v1473 = vadd.f32 %v1454, %v1472
      %1474 = vmatmul.bf16.gmra.mxu0 %v1387
      %v1475 = vpop.f32.mrf.mxu0
      %v1476 = vadd.f32 %v1457, %v1475
      %v1477 = vpop.f32.mrf.mxu0
      %v1478 = vadd.f32 %v1459, %v1477
      %1479 = vdwg.mxu0
      %1480 = vmatpush.bf16.msra.mxu0 0
      %1481 = vmatpush.bf16.msra.mxu0 0
      %1482 = vmatpush.bf16.msra.mxu0 0
      %1483 = vmatpush.bf16.msra.mxu0 0
      %1484 = vmatpush.bf16.msra.mxu0 %v1325
      %1485 = vmatpush.bf16.msra.mxu0 %v1323
      %1486 = vmatpush.bf16.msra.mxu0 %v1321
      %1487 = vmatpush.bf16.msra.mxu0 %v1319
      %1488 = vmatmul.bf16.gmra.mxu0 %v1399
      %v1489 = vpop.f32.mrf.mxu0
      %v1490 = vadd.f32 %v1471, %v1489
      %v1491 = vpop.f32.mrf.mxu0
      %v1492 = vadd.f32 %v1473, %v1491
      %1493 = vmatmul.bf16.gmra.mxu0 %v1402
      %v1494 = vpop.f32.mrf.mxu0
      %v1495 = vadd.f32 %v1476, %v1494
      %v1496 = vpop.f32.mrf.mxu0
      %v1497 = vadd.f32 %v1478, %v1496
      %1498 = vdwg.mxu0
      %1499 = vmatpush.bf16.msra.mxu0 %v779
      %1500 = vmatpush.bf16.msra.mxu0 %v777
      %1501 = vmatpush.bf16.msra.mxu0 %v775
      %1502 = vmatpush.bf16.msra.mxu0 %v773
      %1503 = vmatpush.bf16.msra.mxu0 %v730
      %1504 = vmatpush.bf16.msra.mxu0 %v728
      %1505 = vmatpush.bf16.msra.mxu0 %v726
      %1506 = vmatpush.bf16.msra.mxu0 %v724
      %1507 = vmatmul.bf16.gmra.mxu0 %v1379
      %v1508 = vpop.f32.mrf.mxu0
      %v1509 = vadd.f32 0.0, %v1508
      %v1510 = vpop.f32.mrf.mxu0
      %v1511 = vadd.f32 0.0, %v1510
      %1512 = vmatmul.bf16.gmra.mxu0 %v1384
      %v1513 = vpop.f32.mrf.mxu0
      %v1514 = vadd.f32 0.0, %v1513
      %v1515 = vpop.f32.mrf.mxu0
      %v1516 = vadd.f32 0.0, %v1515
      %1517 = vdwg.mxu0
      %1518 = vmatpush.bf16.msra.mxu0 %v965
      %1519 = vmatpush.bf16.msra.mxu0 %v963
      %1520 = vmatpush.bf16.msra.mxu0 %v961
      %1521 = vmatpush.bf16.msra.mxu0 %v959
      %1522 = vmatpush.bf16.msra.mxu0 %v872
      %1523 = vmatpush.bf16.msra.mxu0 %v870
      %1524 = vmatpush.bf16.msra.mxu0 %v868
      %1525 = vmatpush.bf16.msra.mxu0 %v866
      %1526 = vmatmul.bf16.gmra.mxu0 %v1380
      %v1527 = vpop.f32.mrf.mxu0
      %v1528 = vadd.f32 %v1509, %v1527
      %v1529 = vpop.f32.mrf.mxu0
      %v1530 = vadd.f32 %v1511, %v1529
      %1531 = vmatmul.bf16.gmra.mxu0 %v1385
      %v1532 = vpop.f32.mrf.mxu0
      %v1533 = vadd.f32 %v1514, %v1532
      %v1534 = vpop.f32.mrf.mxu0
      %v1535 = vadd.f32 %v1516, %v1534
      %1536 = vdwg.mxu0
      %1537 = vmatpush.bf16.msra.mxu0 %v1099
      %1538 = vmatpush.bf16.msra.mxu0 %v1097
      %1539 = vmatpush.bf16.msra.mxu0 %v1095
      %1540 = vmatpush.bf16.msra.mxu0 %v1093
      %1541 = vmatpush.bf16.msra.mxu0 %v1006
      %1542 = vmatpush.bf16.msra.mxu0 %v1004
      %1543 = vmatpush.bf16.msra.mxu0 %v1002
      %1544 = vmatpush.bf16.msra.mxu0 %v1000
      %1545 = vmatmul.bf16.gmra.mxu0 %v1381
      %v1546 = vpop.f32.mrf.mxu0
      %v1547 = vadd.f32 %v1528, %v1546
      %v1548 = vpop.f32.mrf.mxu0
      %v1549 = vadd.f32 %v1530, %v1548
      %1550 = vmatmul.bf16.gmra.mxu0 %v1386
      %v1551 = vpop.f32.mrf.mxu0
      %v1552 = vadd.f32 %v1533, %v1551
      %v1553 = vpop.f32.mrf.mxu0
      %v1554 = vadd.f32 %v1535, %v1553
      %1555 = vdwg.mxu0
      %1556 = vmatpush.bf16.msra.mxu0 %v1233
      %1557 = vmatpush.bf16.msra.mxu0 %v1231
      %1558 = vmatpush.bf16.msra.mxu0 %v1229
      %1559 = vmatpush.bf16.msra.mxu0 %v1227
      %1560 = vmatpush.bf16.msra.mxu0 %v1192
      %1561 = vmatpush.bf16.msra.mxu0 %v1190
      %1562 = vmatpush.bf16.msra.mxu0 %v1188
      %1563 = vmatpush.bf16.msra.mxu0 %v1186
      %1564 = vmatmul.bf16.gmra.mxu0 %v1382
      %v1565 = vpop.f32.mrf.mxu0
      %v1566 = vadd.f32 %v1547, %v1565
      %v1567 = vpop.f32.mrf.mxu0
      %v1568 = vadd.f32 %v1549, %v1567
      %1569 = vmatmul.bf16.gmra.mxu0 %v1387
      %v1570 = vpop.f32.mrf.mxu0
      %v1571 = vadd.f32 %v1552, %v1570
      %v1572 = vpop.f32.mrf.mxu0
      %v1573 = vadd.f32 %v1554, %v1572
      %1574 = vdwg.mxu0
      %1575 = vmatpush.bf16.msra.mxu0 0
      %1576 = vmatpush.bf16.msra.mxu0 0
      %1577 = vmatpush.bf16.msra.mxu0 0
      %1578 = vmatpush.bf16.msra.mxu0 0
      %1579 = vmatpush.bf16.msra.mxu0 %v1326
      %1580 = vmatpush.bf16.msra.mxu0 %v1324
      %1581 = vmatpush.bf16.msra.mxu0 %v1322
      %1582 = vmatpush.bf16.msra.mxu0 %v1320
      %1583 = vmatmul.bf16.gmra.mxu0 %v1399
      %v1584 = vpop.f32.mrf.mxu0
      %v1585 = vadd.f32 %v1566, %v1584
      %v1586 = vpop.f32.mrf.mxu0
      %v1587 = vadd.f32 %v1568, %v1586
      %1588 = vmatmul.bf16.gmra.mxu0 %v1402
      %v1589 = vpop.f32.mrf.mxu0
      %v1590 = vadd.f32 %v1571, %v1589
      %v1591 = vpop.f32.mrf.mxu0
      %v1592 = vadd.f32 %v1573, %v1591
      %1593 = vdwg.mxu0
      %v1594 = vld [vmem:[%s3] sm:$0xff]
      %v1595 = vld [vmem:[%s3 + $0x8] sm:$0xff]
      %v1596 = vld [vmem:[%s3 + $0x10] sm:$0xff]
      %v1597 = vld [vmem:[%s3 + $0x18] sm:$0xff]
      %1599 = vset.pattern.permute.xlu0 0
      %1600 = vperm.xlu0 %1599, %v1594
      %v1601 = vpop.permute.xlu0 %1600
      %1604 = vset.pattern.permute.xlu0 0
      %1605 = vperm.xlu0 %1604, %v1595
      %v1606 = vpop.permute.xlu0 %1605
      %1609 = vset.pattern.permute.xlu0 0
      %1610 = vperm.xlu0 %1609, %v1596
      %v1611 = vpop.permute.xlu0 %1610
      %1614 = vset.pattern.permute.xlu0 0
      %1615 = vperm.xlu0 %1614, %v1597
      %v1616 = vpop.permute.xlu0 %1615
      %v1618 = vmul.f32 %v1490, %v1601
      %v1619 = vmul.f32 %v1585, %v1601
      %v1620 = vmul.f32 %v1492, %v1606
      %v1621 = vmul.f32 %v1587, %v1606
      %v1622 = vmul.f32 %v1495, %v1611
      %v1623 = vmul.f32 %v1590, %v1611
      %v1624 = vmul.f32 %v1497, %v1616
      %v1625 = vmul.f32 %v1592, %v1616
      %v1626 = vld [vmem:[%s4] sm:$0xff]
      %v1627 = vld [vmem:[%s4 + $0x8] sm:$0xff]
      %v1628 = vld [vmem:[%s4 + $0x10] sm:$0xff]
      %v1629 = vld [vmem:[%s4 + $0x18] sm:$0xff]
      %1631 = vset.pattern.permute.xlu0 0
      %1632 = vperm.xlu0 %1631, %v1626
      %v1633 = vpop.permute.xlu0 %1632
      %1636 = vset.pattern.permute.xlu0 0
      %1637 = vperm.xlu0 %1636, %v1627
      %v1638 = vpop.permute.xlu0 %1637
      %1641 = vset.pattern.permute.xlu0 0
      %1642 = vperm.xlu0 %1641, %v1628
      %v1643 = vpop.permute.xlu0 %1642
      %1646 = vset.pattern.permute.xlu0 0
      %1647 = vperm.xlu0 %1646, %v1629
      %v1648 = vpop.permute.xlu0 %1647
      %v1650 = vadd.f32 %v1618, %v1633
      %v1651 = vadd.f32 %v1619, %v1633
      %v1652 = vadd.f32 %v1620, %v1638
      %v1653 = vadd.f32 %v1621, %v1638
      %v1654 = vadd.f32 %v1622, %v1643
      %v1655 = vadd.f32 %v1623, %v1643
      %v1656 = vadd.f32 %v1624, %v1648
      %v1657 = vadd.f32 %v1625, %v1648
      %v1658 = vmax.f32 %v1650, 0.0
      %v1659 = vmax.f32 %v1651, 0.0
      %v1660 = vmax.f32 %v1652, 0.0
      %v1661 = vmax.f32 %v1653, 0.0
      %v1662 = vmax.f32 %v1654, 0.0
      %v1663 = vmax.f32 %v1655, 0.0
      %v1664 = vmax.f32 %v1656, 0.0
      %v1665 = vmax.f32 %v1657, 0.0
      %v1666 = vpack.c.bf16 %v1659, %v1658
      %v1667 = vpack.c.bf16 %v1661, %v1660
      %1668 = vst [vmem:[%s259] sm:$0xff] %v1666
      %1669 = vst [vmem:[%s259 + $0x8] sm:$0xff] %v1667
      %v1670 = vpack.c.bf16 %v1663, %v1662
      %v1671 = vpack.c.bf16 %v1665, %v1664
      %1672 = vst [vmem:[%s264] sm:$0xff] %v1670
      %1673 = vst [vmem:[%s264 + $0x8] sm:$0xff] %v1671
      %p1674 = scmp.lt.s32.totalorder %s18, 1
      %s1675 = scalar_select %p1674, %s18, 1
      %s1676 = smul.addr %s1675, 4
      %s1677 = smul.addr %s1676, 4
      %s1678 = scalar_lea.vmem %s5, %s1677
      %p1679 = scmp.lt.s32.totalorder %s18, 1
      %s1680 = scalar_select %p1679, %s18, 1
      %s1681 = smul.addr %s1680, 4
      %s1682 = smul.addr %s1681, 4
      %s1683 = scalar_lea.vmem %s6, %s1682
      // Predicated region
      $region41: #{danet_head_forward.6} parent=39 // pred_check
        %p1684 = pneg %p146
      $region42: #{danet_head_forward.6} parent=39 // pred_check_branch
        %1686 = sbr.rel (%p1684) target = $region44
      $region43: #{danet_head_forward.6} parent=39 // pred_region
        _
      $region44: #{danet_head_forward.6} parent=39 // pred_fallthru
        _
      // Predicated region
      $region45: #{danet_head_forward.6} parent=39 // pred_check
        %p1687 = pneg %p172
      $region46: #{danet_head_forward.6} parent=39 // pred_check_branch
        %1689 = sbr.rel (%p1687) target = $region48
      $region47: #{danet_head_forward.6} parent=39 // pred_region
        _
      $region48: #{danet_head_forward.6} parent=39 // pred_fallthru
        _
    $region40: #{danet_head_forward.6} parent=5 // pred_fallthru
      _
    %p1690 = scmp.le.s32.totalorder 2, %s13
    // Predicated region
    $region49: #{danet_head_forward.6} parent=5 // pred_check
      %p1691 = pneg %p1690
    $region50: #{danet_head_forward.6} parent=5 // pred_check_branch
      %1693 = sbr.rel (%p1691) target = $region52
    $region51: #{danet_head_forward.6} parent=5 // pred_region
      %s1694 = ssub.s32 %s13, 2
      // Predicated region
      $region53: #{danet_head_forward.6} parent=51 // pred_check
        %p1695 = pneg %p152
      $region54: #{danet_head_forward.6} parent=51 // pred_check_branch
        %1697 = sbr.rel (%p1695) target = $region56
      $region55: #{danet_head_forward.6} parent=51 // pred_region
        %p1698 = scmp.lt.s32.totalorder %s19, 1
        %s1699 = scalar_select %p1698, %s19, 1
        %s1700 = smul.addr %s1699, 4
        %s1701 = smul.addr %s1700, 4
        %s1702 = scalar_lea.vmem %s5, %s1701
      $region56: #{danet_head_forward.6} parent=51 // pred_fallthru
        _
      // Predicated region
      $region57: #{danet_head_forward.6} parent=51 // pred_check
        %p1703 = pneg %p178
      $region58: #{danet_head_forward.6} parent=51 // pred_check_branch
        %1705 = sbr.rel (%p1703) target = $region60
      $region59: #{danet_head_forward.6} parent=51 // pred_region
        %p1706 = scmp.lt.s32.totalorder %s19, 1
        %s1707 = scalar_select %p1706, %s19, 1
        %s1708 = smul.addr %s1707, 4
        %s1709 = smul.addr %s1708, 4
        %s1710 = scalar_lea.vmem %s6, %s1709
      $region60: #{danet_head_forward.6} parent=51 // pred_fallthru
        _
    $region52: #{danet_head_forward.6} parent=5 // pred_fallthru
      _
  $region6: #{danet_head_forward.6} parent=0 // loop_footer
    %s17 = sadd.s32 1, %s13
  $region7: #{danet_head_forward.6} parent=0 // loop_footer_branch
    %12 = sbr.rel target = $region3
  $region8: #{danet_head_forward.6} parent=0 // loop_exit
    _

// kernel: danet_head_forward.11
$region0: #{danet_head_forward.11}
  #allocation0 [shape = 'u32[]', space=smem, size = 0x4, offset = 0x4, fixed_abs, tag = 'smem constant byte address 0x4 - core index']
  #allocation1 [shape = 'u32[72,128]{1,0:T(1,128)}', space=vmem, size = 0x9000, scoped, tag = 'internal scratch']
  %s0 = inlined_call_operand.vmem [shape: bf16[2,16,256], index: 0, kind: input, shape index: {}]
  %s1 = inlined_call_operand.vmem [shape: bf16[2,16,256], index: 1, kind: input, shape index: {}]
  %s2 = inlined_call_operand.vmem [shape: bf16[32,16], index: 2, kind: input, shape index: {}]
  %s3 = inlined_call_operand.vmem [shape: bf16[32,16], index: 3, kind: input, shape index: {}]
  %s4 = inlined_call_operand.vmem [shape: f32[16,1], index: 4, kind: input, shape index: {}]
  %s5 = inlined_call_operand.vmem [shape: f32[16,1], index: 5, kind: input, shape index: {}]
  %s6 = inlined_call_operand.vmem [shape: f32[16,1], index: 6, kind: input, shape index: {}]
  %s7 = inlined_call_operand.vmem [shape: f32[2,16,256], index: 7, kind: output, shape index: {0}]
  %s8 = inlined_call_operand.vmem [shape: f32[2,16,256], index: 8, kind: output, shape index: {1}]
  %s9 = inlined_call_operand.vmem [shape: f32[2,16,256], index: 9, kind: output, shape index: {2}]
  %10 = xla_tuple %s7, %s8, %s9
  %s11 = sld [smem:[#allocation0]]
  $region77: #{danet_head_forward.11} parent=0
    _
  %s13 = ssub.s32 1, %s11
  %s14 = scalar_select 0, %s13, %s11
  loop: start=0, step=1, limit=4
  $region2: #{danet_head_forward.11} parent=0 // loop_pre_header
    _
  $region3: #{danet_head_forward.11} parent=0 // loop_header
    %s16 = sphi 0, %s20
    %p17 = scmp.ge.s32.totalorder %s16, 4
    %s26 = sphi 0, %s28
    %s29 = sphi 0, %s26
    %s30 = sphi 0, %s29
    %s46 = sphi 0, %s30
    %s52 = sphi 0, %s54
    %s55 = sphi 0, %s52
    %s56 = sphi 0, %s55
    %s72 = sphi 0, %s56
    %s76 = sphi 0, %s76
    %s78 = sphi 0, %s76
    %s79 = sphi 0, %s78
    %s93 = sphi 0, %s79
    %s97 = sphi 0, %s97
    %s99 = sphi 0, %s97
    %s100 = sphi 0, %s99
    %s114 = sphi 0, %s100
    %s118 = sphi 0, %s118
    %s120 = sphi 0, %s118
    %s121 = sphi 0, %s120
    %s135 = sphi 0, %s121
    %s139 = sphi 0, %s139
    %s141 = sphi 0, %s139
    %s142 = sphi 0, %s141
    %s156 = sphi 0, %s142
    %s160 = sphi 0, %s160
    %s162 = sphi 0, %s160
    %s163 = sphi 0, %s162
    %s177 = sphi 0, %s163
    %s183 = sphi 0, %s185
    %s186 = sphi 0, %s183
    %s187 = sphi 0, %s186
    %s203 = sphi 0, %s187
    %s209 = sphi 0, %s211
    %s212 = sphi 0, %s209
    %s213 = sphi 0, %s212
    %s229 = sphi 0, %s213
    %s235 = sphi 0, %s237
    %s238 = sphi 0, %s235
    %s239 = sphi 0, %s238
    %s255 = sphi 0, %s239
  $region4: #{danet_head_forward.11} parent=0 // loop_header_branch
    %19 = sbr.rel (%p17) target = $region8
  $region5: #{danet_head_forward.11} parent=0 // loop_body
    %s21 = ssub.s32 %s16, 1
    %s22 = ssub.s32 %s16, 2
    %s23 = sadd.s32 %s16, 1
    %s24 = ssub.s32 %s16, %s23
    %p25 = scmp.eq.s32.totalorder %s24, 0
    %s27 = sadd.s32 %s26, 1
    %s28 = scalar_select %p25, %s26, %s27
    %p31 = pneg %p25
    %p32 = scmp.eq.s32.totalorder %s16, 1
    %p33 = por %p31, %p32
    %p34 = scmp.ne.s32.totalorder %s26, %s29
    %p35 = scmp.eq.s32.totalorder %s16, 0
    %p36 = por %p34, %p35
    %p37 = scmp.ne.s32.totalorder %s26, %s29
    %p38 = scmp.eq.s32.totalorder %s21, 1
    %p39 = por %p37, %p38
    %p40 = scmp.ne.s32.totalorder %s29, %s30
    %p41 = scmp.eq.s32.totalorder %s21, 0
    %p42 = por %p40, %p41
    %p43 = scmp.ne.s32.totalorder %s29, %s30
    %p44 = scmp.eq.s32.totalorder %s22, 1
    %p45 = por %p43, %p44
    %p47 = scmp.ne.s32.totalorder %s30, %s46
    %p48 = scmp.eq.s32.totalorder %s22, 0
    %p49 = por %p47, %p48
    %s50 = ssub.s32 %s16, %s23
    %p51 = scmp.eq.s32.totalorder %s50, 0
    %s53 = sadd.s32 %s52, 1
    %s54 = scalar_select %p51, %s52, %s53
    %p57 = pneg %p51
    %p58 = scmp.eq.s32.totalorder %s16, 1
    %p59 = por %p57, %p58
    %p60 = scmp.ne.s32.totalorder %s52, %s55
    %p61 = scmp.eq.s32.totalorder %s16, 0
    %p62 = por %p60, %p61
    %p63 = scmp.ne.s32.totalorder %s52, %s55
    %p64 = scmp.eq.s32.totalorder %s21, 1
    %p65 = por %p63, %p64
    %p66 = scmp.ne.s32.totalorder %s55, %s56
    %p67 = scmp.eq.s32.totalorder %s21, 0
    %p68 = por %p66, %p67
    %p69 = scmp.ne.s32.totalorder %s55, %s56
    %p70 = scmp.eq.s32.totalorder %s22, 1
    %p71 = por %p69, %p70
    %p73 = scmp.ne.s32.totalorder %s56, %s72
    %p74 = scmp.eq.s32.totalorder %s22, 0
    %p75 = por %p73, %p74
    %s77 = sadd.s32 %s76, 1
    %p80 = scmp.eq.s32.totalorder %s16, 1
    %p81 = scmp.ne.s32.totalorder %s76, %s78
    %p82 = scmp.eq.s32.totalorder %s16, 0
    %p83 = por %p81, %p82
    %p84 = scmp.ne.s32.totalorder %s76, %s78
    %p85 = scmp.eq.s32.totalorder %s21, 1
    %p86 = por %p84, %p85
    %p87 = scmp.ne.s32.totalorder %s78, %s79
    %p88 = scmp.eq.s32.totalorder %s21, 0
    %p89 = por %p87, %p88
    %p90 = scmp.ne.s32.totalorder %s78, %s79
    %p91 = scmp.eq.s32.totalorder %s22, 1
    %p92 = por %p90, %p91
    %p94 = scmp.ne.s32.totalorder %s79, %s93
    %p95 = scmp.eq.s32.totalorder %s22, 0
    %p96 = por %p94, %p95
    %s98 = sadd.s32 %s97, 1
    %p101 = scmp.eq.s32.totalorder %s16, 1
    %p102 = scmp.ne.s32.totalorder %s97, %s99
    %p103 = scmp.eq.s32.totalorder %s16, 0
    %p104 = por %p102, %p103
    %p105 = scmp.ne.s32.totalorder %s97, %s99
    %p106 = scmp.eq.s32.totalorder %s21, 1
    %p107 = por %p105, %p106
    %p108 = scmp.ne.s32.totalorder %s99, %s100
    %p109 = scmp.eq.s32.totalorder %s21, 0
    %p110 = por %p108, %p109
    %p111 = scmp.ne.s32.totalorder %s99, %s100
    %p112 = scmp.eq.s32.totalorder %s22, 1
    %p113 = por %p111, %p112
    %p115 = scmp.ne.s32.totalorder %s100, %s114
    %p116 = scmp.eq.s32.totalorder %s22, 0
    %p117 = por %p115, %p116
    %s119 = sadd.s32 %s118, 1
    %p122 = scmp.eq.s32.totalorder %s16, 1
    %p123 = scmp.ne.s32.totalorder %s118, %s120
    %p124 = scmp.eq.s32.totalorder %s16, 0
    %p125 = por %p123, %p124
    %p126 = scmp.ne.s32.totalorder %s118, %s120
    %p127 = scmp.eq.s32.totalorder %s21, 1
    %p128 = por %p126, %p127
    %p129 = scmp.ne.s32.totalorder %s120, %s121
    %p130 = scmp.eq.s32.totalorder %s21, 0
    %p131 = por %p129, %p130
    %p132 = scmp.ne.s32.totalorder %s120, %s121
    %p133 = scmp.eq.s32.totalorder %s22, 1
    %p134 = por %p132, %p133
    %p136 = scmp.ne.s32.totalorder %s121, %s135
    %p137 = scmp.eq.s32.totalorder %s22, 0
    %p138 = por %p136, %p137
    %s140 = sadd.s32 %s139, 1
    %p143 = scmp.eq.s32.totalorder %s16, 1
    %p144 = scmp.ne.s32.totalorder %s139, %s141
    %p145 = scmp.eq.s32.totalorder %s16, 0
    %p146 = por %p144, %p145
    %p147 = scmp.ne.s32.totalorder %s139, %s141
    %p148 = scmp.eq.s32.totalorder %s21, 1
    %p149 = por %p147, %p148
    %p150 = scmp.ne.s32.totalorder %s141, %s142
    %p151 = scmp.eq.s32.totalorder %s21, 0
    %p152 = por %p150, %p151
    %p153 = scmp.ne.s32.totalorder %s141, %s142
    %p154 = scmp.eq.s32.totalorder %s22, 1
    %p155 = por %p153, %p154
    %p157 = scmp.ne.s32.totalorder %s142, %s156
    %p158 = scmp.eq.s32.totalorder %s22, 0
    %p159 = por %p157, %p158
    %s161 = sadd.s32 %s160, 1
    %p164 = scmp.eq.s32.totalorder %s16, 1
    %p165 = scmp.ne.s32.totalorder %s160, %s162
    %p166 = scmp.eq.s32.totalorder %s16, 0
    %p167 = por %p165, %p166
    %p168 = scmp.ne.s32.totalorder %s160, %s162
    %p169 = scmp.eq.s32.totalorder %s21, 1
    %p170 = por %p168, %p169
    %p171 = scmp.ne.s32.totalorder %s162, %s163
    %p172 = scmp.eq.s32.totalorder %s21, 0
    %p173 = por %p171, %p172
    %p174 = scmp.ne.s32.totalorder %s162, %s163
    %p175 = scmp.eq.s32.totalorder %s22, 1
    %p176 = por %p174, %p175
    %p178 = scmp.ne.s32.totalorder %s163, %s177
    %p179 = scmp.eq.s32.totalorder %s22, 0
    %p180 = por %p178, %p179
    %s181 = ssub.s32 %s16, %s23
    %p182 = scmp.eq.s32.totalorder %s181, 0
    %s184 = sadd.s32 %s183, 1
    %s185 = scalar_select %p182, %s183, %s184
    %p188 = pneg %p182
    %p189 = scmp.eq.s32.totalorder %s16, 1
    %p190 = por %p188, %p189
    %p191 = scmp.ne.s32.totalorder %s183, %s186
    %p192 = scmp.eq.s32.totalorder %s16, 0
    %p193 = por %p191, %p192
    %p194 = scmp.ne.s32.totalorder %s183, %s186
    %p195 = scmp.eq.s32.totalorder %s21, 1
    %p196 = por %p194, %p195
    %p197 = scmp.ne.s32.totalorder %s186, %s187
    %p198 = scmp.eq.s32.totalorder %s21, 0
    %p199 = por %p197, %p198
    %p200 = scmp.ne.s32.totalorder %s186, %s187
    %p201 = scmp.eq.s32.totalorder %s22, 1
    %p202 = por %p200, %p201
    %p204 = scmp.ne.s32.totalorder %s187, %s203
    %p205 = scmp.eq.s32.totalorder %s22, 0
    %p206 = por %p204, %p205
    %s207 = ssub.s32 %s16, %s23
    %p208 = scmp.eq.s32.totalorder %s207, 0
    %s210 = sadd.s32 %s209, 1
    %s211 = scalar_select %p208, %s209, %s210
    %p214 = pneg %p208
    %p215 = scmp.eq.s32.totalorder %s16, 1
    %p216 = por %p214, %p215
    %p217 = scmp.ne.s32.totalorder %s209, %s212
    %p218 = scmp.eq.s32.totalorder %s16, 0
    %p219 = por %p217, %p218
    %p220 = scmp.ne.s32.totalorder %s209, %s212
    %p221 = scmp.eq.s32.totalorder %s21, 1
    %p222 = por %p220, %p221
    %p223 = scmp.ne.s32.totalorder %s212, %s213
    %p224 = scmp.eq.s32.totalorder %s21, 0
    %p225 = por %p223, %p224
    %p226 = scmp.ne.s32.totalorder %s212, %s213
    %p227 = scmp.eq.s32.totalorder %s22, 1
    %p228 = por %p226, %p227
    %p230 = scmp.ne.s32.totalorder %s213, %s229
    %p231 = scmp.eq.s32.totalorder %s22, 0
    %p232 = por %p230, %p231
    %s233 = ssub.s32 %s16, %s23
    %p234 = scmp.eq.s32.totalorder %s233, 0
    %s236 = sadd.s32 %s235, 1
    %s237 = scalar_select %p234, %s235, %s236
    %p240 = pneg %p234
    %p241 = scmp.eq.s32.totalorder %s16, 1
    %p242 = por %p240, %p241
    %p243 = scmp.ne.s32.totalorder %s235, %s238
    %p244 = scmp.eq.s32.totalorder %s16, 0
    %p245 = por %p243, %p244
    %p246 = scmp.ne.s32.totalorder %s235, %s238
    %p247 = scmp.eq.s32.totalorder %s21, 1
    %p248 = por %p246, %p247
    %p249 = scmp.ne.s32.totalorder %s238, %s239
    %p250 = scmp.eq.s32.totalorder %s21, 0
    %p251 = por %p249, %p250
    %p252 = scmp.ne.s32.totalorder %s238, %s239
    %p253 = scmp.eq.s32.totalorder %s22, 1
    %p254 = por %p252, %p253
    %p256 = scmp.ne.s32.totalorder %s239, %s255
    %p257 = scmp.eq.s32.totalorder %s22, 0
    %p258 = por %p256, %p257
    %p259 = scmp.le.s32.totalorder 1, %s16
    %p260 = scmp.lt.s32.totalorder %s16, 3
    %p261 = pnand %p259, %p260
    %p262 = pneg %p261
    // Predicated region
    $region9: #{danet_head_forward.11} parent=5 // pred_check
      _
    $region10: #{danet_head_forward.11} parent=5 // pred_check_branch
      %264 = sbr.rel (%p261) target = $region12
    $region11: #{danet_head_forward.11} parent=5 // pred_region
      %s265 = ssub.s32 %s16, 1
      // Predicated region
      $region13: #{danet_head_forward.11} parent=11 // pred_check
        %p266 = pneg %p89
      $region14: #{danet_head_forward.11} parent=11 // pred_check_branch
        %268 = sbr.rel (%p266) target = $region16
      $region15: #{danet_head_forward.11} parent=11 // pred_region
        _
      $region16: #{danet_head_forward.11} parent=11 // pred_fallthru
        _
      // Predicated region
      $region17: #{danet_head_forward.11} parent=11 // pred_check
        %p269 = pneg %p110
      $region18: #{danet_head_forward.11} parent=11 // pred_check_branch
        %271 = sbr.rel (%p269) target = $region20
      $region19: #{danet_head_forward.11} parent=11 // pred_region
        _
      $region20: #{danet_head_forward.11} parent=11 // pred_fallthru
        _
      // Predicated region
      $region21: #{danet_head_forward.11} parent=11 // pred_check
        %p272 = pneg %p131
      $region22: #{danet_head_forward.11} parent=11 // pred_check_branch
        %274 = sbr.rel (%p272) target = $region24
      $region23: #{danet_head_forward.11} parent=11 // pred_region
        _
      $region24: #{danet_head_forward.11} parent=11 // pred_fallthru
        _
      // Predicated region
      $region25: #{danet_head_forward.11} parent=11 // pred_check
        %p275 = pneg %p152
      $region26: #{danet_head_forward.11} parent=11 // pred_check_branch
        %277 = sbr.rel (%p275) target = $region28
      $region27: #{danet_head_forward.11} parent=11 // pred_region
        _
      $region28: #{danet_head_forward.11} parent=11 // pred_fallthru
        _
      // Predicated region
      $region29: #{danet_head_forward.11} parent=11 // pred_check
        %p278 = pneg %p173
      $region30: #{danet_head_forward.11} parent=11 // pred_check_branch
        %280 = sbr.rel (%p278) target = $region32
      $region31: #{danet_head_forward.11} parent=11 // pred_region
        _
      $region32: #{danet_head_forward.11} parent=11 // pred_fallthru
        _
    $region12: #{danet_head_forward.11} parent=5 // pred_fallthru
      _
    %p281 = scmp.lt.s32.totalorder %s16, 2
    // Predicated region
    $region33: #{danet_head_forward.11} parent=5 // pred_check
      %p282 = pneg %p281
    $region34: #{danet_head_forward.11} parent=5 // pred_check_branch
      %284 = sbr.rel (%p282) target = $region36
    $region35: #{danet_head_forward.11} parent=5 // pred_region
      // Predicated region
      $region37: #{danet_head_forward.11} parent=35 // pred_check
        %p285 = pneg %p36
      $region38: #{danet_head_forward.11} parent=35 // pred_check_branch
        %287 = sbr.rel (%p285) target = $region40
      $region39: #{danet_head_forward.11} parent=35 // pred_region
        %p288 = scmp.lt.s32.totalorder %s16, 1
        %s289 = scalar_select %p288, %s16, 1
        %s290 = smul.addr %s289, 4
        %s291 = smul.addr %s290, 4
        %s292 = scalar_lea.vmem %s0, %s291
      $region40: #{danet_head_forward.11} parent=35 // pred_fallthru
        _
      // Predicated region
      $region41: #{danet_head_forward.11} parent=35 // pred_check
        %p293 = pneg %p62
      $region42: #{danet_head_forward.11} parent=35 // pred_check_branch
        %295 = sbr.rel (%p293) target = $region44
      $region43: #{danet_head_forward.11} parent=35 // pred_region
        %p296 = scmp.lt.s32.totalorder %s16, 1
        %s297 = scalar_select %p296, %s16, 1
        %s298 = smul.addr %s297, 4
        %s299 = smul.addr %s298, 4
        %s300 = scalar_lea.vmem %s1, %s299
      $region44: #{danet_head_forward.11} parent=35 // pred_fallthru
        _
    $region36: #{danet_head_forward.11} parent=5 // pred_fallthru
      _
    %p301 = scmp.le.s32.totalorder 1, %s16
    %p302 = scmp.lt.s32.totalorder %s16, 3
    %p303 = pnand %p301, %p302
    %p304 = pneg %p303
    // Predicated region
    $region45: #{danet_head_forward.11} parent=5 // pred_check
      _
    $region46: #{danet_head_forward.11} parent=5 // pred_check_branch
      %306 = sbr.rel (%p303) target = $region48
    $region47: #{danet_head_forward.11} parent=5 // pred_region
      %s307 = ssub.s32 %s16, 1
      %p308 = scmp.lt.s32.totalorder %s21, 1
      %s309 = scalar_select %p308, %s21, 1
      %s310 = smul.addr %s309, 4
      %s311 = smul.addr %s310, 4
      %s312 = scalar_lea.vmem %s0, %s311
      %p313 = pneg %p42
      %p314 = pneg %p39
      %p315 = scmp.lt.s32.totalorder %s21, 1
      %s316 = scalar_select %p315, %s21, 1
      %s317 = smul.addr %s316, 4
      %s318 = smul.addr %s317, 4
      %s319 = scalar_lea.vmem %s1, %s318
      %p320 = pneg %p68
      %p321 = pneg %p65
      %p322 = pneg %p89
      %p323 = pneg %p86
      %p324 = pneg %p110
      %p325 = pneg %p107
      %p326 = pneg %p131
      %p327 = pneg %p128
      %p328 = pneg %p152
      %p329 = pneg %p149
      %p330 = pneg %p173
      %p331 = pneg %p170
      %p332 = pneg %p199
      %p333 = pneg %p196
      %p334 = scmp.lt.s32.totalorder %s21, 1
      %s335 = scalar_select %p334, %s21, 1
      %s336 = smul.addr %s335, 4
      %s337 = smul.addr %s336, 8
      %s338 = scalar_lea.vmem %s7, %s337
      %p339 = pneg %p225
      %p340 = pneg %p222
      %p341 = scmp.lt.s32.totalorder %s21, 1
      %s342 = scalar_select %p341, %s21, 1
      %s343 = smul.addr %s342, 4
      %s344 = smul.addr %s343, 8
      %s345 = scalar_lea.vmem %s8, %s344
      %p346 = pneg %p251
      %p347 = pneg %p248
      %p348 = scmp.lt.s32.totalorder %s21, 1
      %s349 = scalar_select %p348, %s21, 1
      %s350 = smul.addr %s349, 4
      %s351 = smul.addr %s350, 8
      %s352 = scalar_lea.vmem %s9, %s351
      %p353 = scmp.lt.s32.totalorder %s21, 1
      %s354 = scalar_select %p353, %s21, 1
      %s355 = smul.addr %s354, 4
      %s356 = smul.addr %s355, 4
      %s357 = scalar_lea.vmem %s0, %s356
      %p358 = scmp.lt.s32.totalorder %s21, 1
      %s359 = scalar_select %p358, %s21, 1
      %s360 = smul.addr %s359, 4
      %s361 = smul.addr %s360, 4
      %s362 = scalar_lea.vmem %s1, %s361
      %p363 = scmp.lt.s32.totalorder %s21, 1
      %s364 = scalar_select %p363, %s21, 1
      %s365 = smul.addr %s364, 4
      %s366 = smul.addr %s365, 8
      %s367 = scalar_lea.vmem %s7, %s366
      %p368 = scmp.lt.s32.totalorder %s21, 1
      %s369 = scalar_select %p368, %s21, 1
      %s370 = smul.addr %s369, 4
      %s371 = smul.addr %s370, 8
      %s372 = scalar_lea.vmem %s8, %s371
      %p373 = scmp.lt.s32.totalorder %s21, 1
      %s374 = scalar_select %p373, %s21, 1
      %s375 = smul.addr %s374, 4
      %s376 = smul.addr %s375, 8
      %s377 = scalar_lea.vmem %s9, %s376
      %v379 = vld [vmem:[%s357] sm:$0xff]
      %v380 = vld [vmem:[%s357 + $0x8] sm:$0xff]
      %v381 = vld [vmem:[%s362] sm:$0xff]
      %v382 = vld [vmem:[%s362 + $0x8] sm:$0xff]
      %v383 = vld [vmem:[%s2] sm:$0xf]
      %v384 = vld [vmem:[%s2 + $0x4] sm:$0xf]
      %v385 = vld [vmem:[%s2 + $0x8] sm:$0xf]
      %v386 = vld [vmem:[%s2 + $0xc] sm:$0xf]
      %v391 = vunpack.c.l.b16 %v383
      %v392 = vunpack.c.l.b16 %v384
      %v393 = vunpack.c.l.b16 %v385
      %v394 = vunpack.c.l.b16 %v386
      %v395 = vpack.c.b16 %v392, %v391
      %v396 = vpack.c.b16 %v394, %v393
      %v399 = vunpack.c.l.b16 %v379
      %v400 = vunpack.c.h.b16 %v379
      %v401 = vunpack.c.l.b16 %v380
      %v402 = vunpack.c.h.b16 %v380
      %v403 = vpack.c.b16 %v401, %v399
      %v404 = vpack.c.b16 %v402, %v400
      %vm407 = vcmask 130048
      %v409 = vsel %vm407, %v395, 0
      %v412 = vsel %vm407, %v396, 0
      %414 = vmatpush.bf16.msra.mxu0 0
      %415 = vmatpush.bf16.msra.mxu0 0
      %416 = vmatpush.bf16.msra.mxu0 0
      %417 = vmatpush.bf16.msra.mxu0 0
      %418 = vmatpush.bf16.msra.mxu0 0
      %419 = vmatpush.bf16.msra.mxu0 0
      %420 = vmatpush.bf16.msra.mxu0 0
      %421 = vmatpush.bf16.msra.mxu0 %v403
      %422 = vmatmul.bf16.gmra.mxu0 %v409
      %v423 = vpop.f32.mrf.mxu0
      %v424 = vadd.f32 0.0, %v423
      %v425 = vpop.f32.mrf.mxu0
      %v426 = vadd.f32 0.0, %v425
      %427 = vmatmul.bf16.gmra.mxu0 %v412
      %v428 = vpop.f32.mrf.mxu0
      %v429 = vadd.f32 0.0, %v428
      %v430 = vpop.f32.mrf.mxu0
      %v431 = vadd.f32 0.0, %v430
      %432 = vdwg.mxu0
      %433 = vmatpush.bf16.msra.mxu0 0
      %434 = vmatpush.bf16.msra.mxu0 0
      %435 = vmatpush.bf16.msra.mxu0 0
      %436 = vmatpush.bf16.msra.mxu0 0
      %437 = vmatpush.bf16.msra.mxu0 0
      %438 = vmatpush.bf16.msra.mxu0 0
      %439 = vmatpush.bf16.msra.mxu0 0
      %440 = vmatpush.bf16.msra.mxu0 %v404
      %441 = vmatmul.bf16.gmra.mxu0 %v409
      %v442 = vpop.f32.mrf.mxu0
      %v443 = vadd.f32 0.0, %v442
      %v444 = vpop.f32.mrf.mxu0
      %v445 = vadd.f32 0.0, %v444
      %446 = vmatmul.bf16.gmra.mxu0 %v412
      %v447 = vpop.f32.mrf.mxu0
      %v448 = vadd.f32 0.0, %v447
      %v449 = vpop.f32.mrf.mxu0
      %v450 = vadd.f32 0.0, %v449
      %451 = vdwg.mxu0
      %v452 = vld [vmem:[%s3] sm:$0xf]
      %v453 = vld [vmem:[%s3 + $0x4] sm:$0xf]
      %v454 = vld [vmem:[%s3 + $0x8] sm:$0xf]
      %v455 = vld [vmem:[%s3 + $0xc] sm:$0xf]
      %v460 = vunpack.c.l.b16 %v452
      %v461 = vunpack.c.l.b16 %v453
      %v462 = vunpack.c.l.b16 %v454
      %v463 = vunpack.c.l.b16 %v455
      %v464 = vpack.c.b16 %v461, %v460
      %v465 = vpack.c.b16 %v463, %v462
      %v468 = vunpack.c.l.b16 %v381
      %v469 = vunpack.c.h.b16 %v381
      %v470 = vunpack.c.l.b16 %v382
      %v471 = vunpack.c.h.b16 %v382
      %v472 = vpack.c.b16 %v470, %v468
      %v473 = vpack.c.b16 %v471, %v469
      %v477 = vsel %vm407, %v464, 0
      %v480 = vsel %vm407, %v465, 0
      %482 = vmatpush.bf16.msra.mxu0 0
      %483 = vmatpush.bf16.msra.mxu0 0
      %484 = vmatpush.bf16.msra.mxu0 0
      %485 = vmatpush.bf16.msra.mxu0 0
      %486 = vmatpush.bf16.msra.mxu0 0
      %487 = vmatpush.bf16.msra.mxu0 0
      %488 = vmatpush.bf16.msra.mxu0 0
      %489 = vmatpush.bf16.msra.mxu0 %v472
      %490 = vmatmul.bf16.gmra.mxu0 %v477
      %v491 = vpop.f32.mrf.mxu0
      %v492 = vadd.f32 0.0, %v491
      %v493 = vpop.f32.mrf.mxu0
      %v494 = vadd.f32 0.0, %v493
      %495 = vmatmul.bf16.gmra.mxu0 %v480
      %v496 = vpop.f32.mrf.mxu0
      %v497 = vadd.f32 0.0, %v496
      %v498 = vpop.f32.mrf.mxu0
      %v499 = vadd.f32 0.0, %v498
      %500 = vdwg.mxu0
      %501 = vmatpush.bf16.msra.mxu0 0
      %502 = vmatpush.bf16.msra.mxu0 0
      %503 = vmatpush.bf16.msra.mxu0 0
      %504 = vmatpush.bf16.msra.mxu0 0
      %505 = vmatpush.bf16.msra.mxu0 0
      %506 = vmatpush.bf16.msra.mxu0 0
      %507 = vmatpush.bf16.msra.mxu0 0
      %508 = vmatpush.bf16.msra.mxu0 %v473
      %509 = vmatmul.bf16.gmra.mxu0 %v477
      %v510 = vpop.f32.mrf.mxu0
      %v511 = vadd.f32 0.0, %v510
      %v512 = vpop.f32.mrf.mxu0
      %v513 = vadd.f32 0.0, %v512
      %514 = vmatmul.bf16.gmra.mxu0 %v480
      %v515 = vpop.f32.mrf.mxu0
      %v516 = vadd.f32 0.0, %v515
      %v517 = vpop.f32.mrf.mxu0
      %v518 = vadd.f32 0.0, %v517
      %519 = vdwg.mxu0
      %v520 = vld [vmem:[%s4] sm:$0xff]
      %v521 = vld [vmem:[%s4 + $0x8] sm:$0xff]
      %523 = vset.pattern.permute.xlu0 0
      %524 = vperm.xlu0 %523, %v520
      %v525 = vpop.permute.xlu0 %524
      %528 = vset.pattern.permute.xlu0 0
      %529 = vperm.xlu0 %528, %v521
      %v530 = vpop.permute.xlu0 %529
      %v532 = vadd.f32 %v424, %v525
      %v533 = vadd.f32 %v443, %v525
      %v534 = vadd.f32 %v426, %v530
      %v535 = vadd.f32 %v445, %v530
      %536 = vst [vmem:[%s367] sm:$0xff] %v532
      %537 = vst [vmem:[%s367 + $0x8] sm:$0xff] %v533
      %538 = vst [vmem:[%s367 + $0x10] sm:$0xff] %v534
      %539 = vst [vmem:[%s367 + $0x18] sm:$0xff] %v535
      %v540 = vld [vmem:[%s5] sm:$0xff]
      %v541 = vld [vmem:[%s5 + $0x8] sm:$0xff]
      %543 = vset.pattern.permute.xlu0 0
      %544 = vperm.xlu0 %543, %v540
      %v545 = vpop.permute.xlu0 %544
      %548 = vset.pattern.permute.xlu0 0
      %549 = vperm.xlu0 %548, %v541
      %v550 = vpop.permute.xlu0 %549
      %v552 = vadd.f32 %v492, %v545
      %v553 = vadd.f32 %v511, %v545
      %v554 = vadd.f32 %v494, %v550
      %v555 = vadd.f32 %v513, %v550
      %556 = vst [vmem:[%s372] sm:$0xff] %v552
      %557 = vst [vmem:[%s372 + $0x8] sm:$0xff] %v553
      %558 = vst [vmem:[%s372 + $0x10] sm:$0xff] %v554
      %559 = vst [vmem:[%s372 + $0x18] sm:$0xff] %v555
      %v560 = vadd.f32 %v429, %v497
      %v561 = vadd.f32 %v448, %v516
      %v562 = vadd.f32 %v431, %v499
      %v563 = vadd.f32 %v450, %v518
      %v564 = vld [vmem:[%s6] sm:$0xff]
      %v565 = vld [vmem:[%s6 + $0x8] sm:$0xff]
      %567 = vset.pattern.permute.xlu0 0
      %568 = vperm.xlu0 %567, %v564
      %v569 = vpop.permute.xlu0 %568
      %572 = vset.pattern.permute.xlu0 0
      %573 = vperm.xlu0 %572, %v565
      %v574 = vpop.permute.xlu0 %573
      %v576 = vadd.f32 %v560, %v569
      %v577 = vadd.f32 %v561, %v569
      %v578 = vadd.f32 %v562, %v574
      %v579 = vadd.f32 %v563, %v574
      %580 = vst [vmem:[%s377] sm:$0xff] %v576
      %581 = vst [vmem:[%s377 + $0x8] sm:$0xff] %v577
      %582 = vst [vmem:[%s377 + $0x10] sm:$0xff] %v578
      %583 = vst [vmem:[%s377 + $0x18] sm:$0xff] %v579
      %p584 = scmp.lt.s32.totalorder %s21, 1
      %s585 = scalar_select %p584, %s21, 1
      %s586 = smul.addr %s585, 4
      %s587 = smul.addr %s586, 8
      %s588 = scalar_lea.vmem %s7, %s587
      %p589 = scmp.lt.s32.totalorder %s21, 1
      %s590 = scalar_select %p589, %s21, 1
      %s591 = smul.addr %s590, 4
      %s592 = smul.addr %s591, 8
      %s593 = scalar_lea.vmem %s8, %s592
      %p594 = scmp.lt.s32.totalorder %s21, 1
      %s595 = scalar_select %p594, %s21, 1
      %s596 = smul.addr %s595, 4
      %s597 = smul.addr %s596, 8
      %s598 = scalar_lea.vmem %s9, %s597
      // Predicated region
      $region49: #{danet_head_forward.11} parent=47 // pred_check
        %p599 = pneg %p196
      $region50: #{danet_head_forward.11} parent=47 // pred_check_branch
        %601 = sbr.rel (%p599) target = $region52
      $region51: #{danet_head_forward.11} parent=47 // pred_region
        _
      $region52: #{danet_head_forward.11} parent=47 // pred_fallthru
        _
      // Predicated region
      $region53: #{danet_head_forward.11} parent=47 // pred_check
        %p602 = pneg %p222
      $region54: #{danet_head_forward.11} parent=47 // pred_check_branch
        %604 = sbr.rel (%p602) target = $region56
      $region55: #{danet_head_forward.11} parent=47 // pred_region
        _
      $region56: #{danet_head_forward.11} parent=47 // pred_fallthru
        _
      // Predicated region
      $region57: #{danet_head_forward.11} parent=47 // pred_check
        %p605 = pneg %p248
      $region58: #{danet_head_forward.11} parent=47 // pred_check_branch
        %607 = sbr.rel (%p605) target = $region60
      $region59: #{danet_head_forward.11} parent=47 // pred_region
        _
      $region60: #{danet_head_forward.11} parent=47 // pred_fallthru
        _
    $region48: #{danet_head_forward.11} parent=5 // pred_fallthru
      _
    %p608 = scmp.le.s32.totalorder 2, %s16
    // Predicated region
    $region61: #{danet_head_forward.11} parent=5 // pred_check
      %p609 = pneg %p608
    $region62: #{danet_head_forward.11} parent=5 // pred_check_branch
      %611 = sbr.rel (%p609) target = $region64
    $region63: #{danet_head_forward.11} parent=5 // pred_region
      %s612 = ssub.s32 %s16, 2
      // Predicated region
      $region65: #{danet_head_forward.11} parent=63 // pred_check
        %p613 = pneg %p202
      $region66: #{danet_head_forward.11} parent=63 // pred_check_branch
        %615 = sbr.rel (%p613) target = $region68
      $region67: #{danet_head_forward.11} parent=63 // pred_region
        %p616 = scmp.lt.s32.totalorder %s22, 1
        %s617 = scalar_select %p616, %s22, 1
        %s618 = smul.addr %s617, 4
        %s619 = smul.addr %s618, 8
        %s620 = scalar_lea.vmem %s7, %s619
      $region68: #{danet_head_forward.11} parent=63 // pred_fallthru
        _
      // Predicated region
      $region69: #{danet_head_forward.11} parent=63 // pred_check
        %p621 = pneg %p228
      $region70: #{danet_head_forward.11} parent=63 // pred_check_branch
        %623 = sbr.rel (%p621) target = $region72
      $region71: #{danet_head_forward.11} parent=63 // pred_region
        %p624 = scmp.lt.s32.totalorder %s22, 1
        %s625 = scalar_select %p624, %s22, 1
        %s626 = smul.addr %s625, 4
        %s627 = smul.addr %s626, 8
        %s628 = scalar_lea.vmem %s8, %s627
      $region72: #{danet_head_forward.11} parent=63 // pred_fallthru
        _
      // Predicated region
      $region73: #{danet_head_forward.11} parent=63 // pred_check
        %p629 = pneg %p254
      $region74: #{danet_head_forward.11} parent=63 // pred_check_branch
        %631 = sbr.rel (%p629) target = $region76
      $region75: #{danet_head_forward.11} parent=63 // pred_region
        %p632 = scmp.lt.s32.totalorder %s22, 1
        %s633 = scalar_select %p632, %s22, 1
        %s634 = smul.addr %s633, 4
        %s635 = smul.addr %s634, 8
        %s636 = scalar_lea.vmem %s9, %s635
      $region76: #{danet_head_forward.11} parent=63 // pred_fallthru
        _
    $region64: #{danet_head_forward.11} parent=5 // pred_fallthru
      _
  $region6: #{danet_head_forward.11} parent=0 // loop_footer
    %s20 = sadd.s32 1, %s16
  $region7: #{danet_head_forward.11} parent=0 // loop_footer_branch
    %15 = sbr.rel target = $region3
  $region8: #{danet_head_forward.11} parent=0 // loop_exit
    _

</llo_original>
